<compile_context>
chip_gen: v6e
topology: v6e:2x2x1
jax: 0.10.0
libtpu: 0.0.40
codegen_flags: <defaults>
</compile_context>

<pallas_src>
import functools

import numpy as np

import jax
import jax.numpy as jnp
from jax.experimental import pallas as pl
from jax.experimental.pallas import tpu as pltpu


# ------------------------------- fused kernel --------------------------------


def _res_block_kernel(x_ref, masks_ref, w1_ref, b1_ref, g1_ref, be1_ref,
                      w2_ref, b2_ref, g2_ref, be2_ref, out_ref, *,
                      k, B, H, W, C, eps):
    p = k // 2
    S = H * W
    BS = B * S

    # (B, C, S) -> channel-major (C, B*S).  Batch offsets are multiples of
    # S = 256 lanes, so this is an aligned lane concat: no transpose/relayout.
    xcm = jnp.concatenate([x_ref[b] for b in range(B)], axis=1)

    # Static per-tap metadata: lane-roll amount + whether a halo mask is needed.
    taps = []
    for dy in range(k):
        for dx in range(k):
            oy, ox = dy - p, dx - p
            taps.append(((-(oy * W + ox)) % BS, not (oy == 0 and ox == 0)))

    def conv(inp, w_ref, b_ref):
        # Direct 'same' cross-correlation on the VPU: for each tap, rotate the
        # lane axis so x[.., i+oy, j+ox] lines up with output position (i, j),
        # zero the halo with the precomputed mask, then accumulate Cin
        # outer-product FMAs: (Cout, 1) weight column x (1, B*S) input row.
        acc = jnp.zeros((C, BS), jnp.float32)
        for t, (shift, needs_mask) in enumerate(taps):
            xs = inp if shift == 0 else pltpu.roll(inp, shift, axis=1)
            if needs_mask:
                xs = xs * masks_ref[t]                     # (1, BS) halo mask
            for ci in range(C):
                acc = acc + w_ref[t * C + ci] * xs[ci:ci + 1, :]
        return acc + b_ref[...]                            # (C, 1) conv bias

    def bn(acc, g_ref, be_ref):
        # Training-mode BN; stats reduce over the lane axis (batch*spatial).
        # Two-pass variance, affine folded into one scale/shift FMA.
        inv_n = 1.0 / BS
        mean = jnp.sum(acc, axis=1, keepdims=True) * inv_n          # (C, 1)
        cen = acc - mean
        var = jnp.sum(cen * cen, axis=1, keepdims=True) * inv_n     # (C, 1)
        scale = g_ref[...] * jax.lax.rsqrt(var + eps)               # (C, 1)
        return cen * scale + be_ref[...]

    y1 = jnp.maximum(bn(conv(xcm, w1_ref, b1_ref), g1_ref, be1_ref), 0.0)
    y2 = bn(conv(y1, w2_ref, b2_ref), g2_ref, be2_ref)
    ycm = jnp.maximum(y2 + xcm, 0.0)            # + identity shortcut -> ReLU

    # Lane-aligned (offset = b*256) slices back to the (B, C, S) output layout.
    for b in range(B):
        out_ref[b] = ycm[:, b * S:(b + 1) * S]


# --------------------------------- wrapper -----------------------------------


def res_block_forward(x_nchw, params, *, k, eps=1e-5):
    """params: dict with w1,b1,g1,be1,w2,b2,g2,be2 (PyTorch shapes)."""
    assert k % 2 == 1, "padding='same' implemented for odd kernel sizes"
    B, C, H, W = x_nchw.shape
    assert params["w1"].shape[0] == C, "identity shortcut needs Cin == Cout"
    p = k // 2
    S = H * W
    BS = B * S

    # Free reshape of contiguous NCHW -> (B, C, S); no transposes anywhere.
    x2d = x_nchw.reshape(B, C, S).astype(jnp.float32)

    # OIHW -> (k*k*Cin, Cout, 1); row r = (dy*k + dx)*Cin + ci so the kernel
    # loads each (Cout, 1) weight column directly (no in-kernel value slicing).
    def reshape_w(w):
        return (jnp.transpose(w, (2, 3, 1, 0))
                .reshape(k * k * w.shape[1], w.shape[0], 1)
                .astype(jnp.float32))

    w1 = reshape_w(params["w1"])
    w2 = reshape_w(params["w2"])
    b1 = params["b1"].reshape(C, 1).astype(jnp.float32)
    b2 = params["b2"].reshape(C, 1).astype(jnp.float32)
    g1 = params["g1"].reshape(C, 1).astype(jnp.float32)
    be1 = params["be1"].reshape(C, 1).astype(jnp.float32)
    g2 = params["g2"].reshape(C, 1).astype(jnp.float32)
    be2 = params["be2"].reshape(C, 1).astype(jnp.float32)

    # Host-precomputed per-tap halo-validity masks over the flattened
    # (B*H*W) lane axis; shared by both convs.
    ii, jj = np.meshgrid(np.arange(H), np.arange(W), indexing="ij")
    masks = np.empty((k * k, 1, BS), np.float32)
    for dy in range(k):
        for dx in range(k):
            oy, ox = dy - p, dx - p
            valid = ((ii + oy >= 0) & (ii + oy < H) &
                     (jj + ox >= 0) & (jj + ox < W)).astype(np.float32)
            masks[dy * k + dx, 0, :] = np.tile(valid.reshape(-1), B)
    masks = jnp.asarray(masks)

    io_spec = pl.BlockSpec((B, C, S), lambda i: (0, 0, 0))
    m_spec = pl.BlockSpec((k * k, 1, BS), lambda i: (0, 0, 0))
    w_spec = pl.BlockSpec((k * k * C, C, 1), lambda i: (0, 0, 0))
    v_spec = pl.BlockSpec((C, 1), lambda i: (0, 0))

    kernel = functools.partial(_res_block_kernel,
                               k=k, B=B, H=H, W=W, C=C, eps=eps)

    out2d = pl.pallas_call(
        kernel,
        out_shape=jax.ShapeDtypeStruct((B, C, S), jnp.float32),
        grid=(1,),
        in_specs=[io_spec, m_spec, w_spec, v_spec, v_spec, v_spec,
                  w_spec, v_spec, v_spec, v_spec],
        out_specs=io_spec,
        compiler_params=pltpu.CompilerParams(
            dimension_semantics=("arbitrary",),
            vmem_limit_bytes=32 * 1024 * 1024),
    )(x2d, masks, w1, b1, g1, be1, w2, b2, g2, be2)

    return out2d.reshape(B, C, H, W)       # free reshape back to NCHW


# --------------------------- pure-JAX reference ------------------------------


def res_block_reference(x, params, *, k, eps=1e-5):
    def conv(x, w, b):
        y = jax.lax.conv_general_dilated(
            x, w, window_strides=(1, 1), padding="SAME",
            dimension_numbers=("NCHW", "OIHW", "NCHW"))
        return y + b[None, :, None, None]

    def bn(x, g, be):
        mean = jnp.mean(x, axis=(0, 2, 3), keepdims=True)
        var = jnp.mean((x - mean) ** 2, axis=(0, 2, 3), keepdims=True)
        return (x - mean) * jax.lax.rsqrt(var + eps) * g[None, :, None, None] \
            + be[None, :, None, None]

    y = jax.nn.relu(bn(conv(x, params["w1"], params["b1"]),
                       params["g1"], params["be1"]))
    y = bn(conv(y, params["w2"], params["b2"]), params["g2"], params["be2"])
    return jax.nn.relu(y + x)


# ---------------------------------- main -------------------------------------


if __name__ == "__main__":
    B, C, H, W, K = 2, 4, 16, 16, 3

    key = jax.random.PRNGKey(0)
    ks = jax.random.split(key, 9)
    params = {
        "w1": 0.2 * jax.random.normal(ks[0], (C, C, K, K), jnp.float32),
        "b1": 0.1 * jax.random.normal(ks[1], (C,), jnp.float32),
        "g1": 1.0 + 0.1 * jax.random.normal(ks[2], (C,), jnp.float32),
        "be1": 0.1 * jax.random.normal(ks[3], (C,), jnp.float32),
        "w2": 0.2 * jax.random.normal(ks[4], (C, C, K, K), jnp.float32),
        "b2": 0.1 * jax.random.normal(ks[5], (C,), jnp.float32),
        "g2": 1.0 + 0.1 * jax.random.normal(ks[6], (C,), jnp.float32),
        "be2": 0.1 * jax.random.normal(ks[7], (C,), jnp.float32),
    }
    x = jax.random.normal(ks[8], (B, C, H, W), jnp.float32)

    out = jax.block_until_ready(res_block_forward(x, params, k=K))
    ref = jax.block_until_ready(res_block_reference(x, params, k=K))

    assert out.shape == (B, C, H, W)
    assert jnp.allclose(out, ref, atol=5e-4, rtol=5e-4), "mismatch vs reference"

    print("KERNEL_OK")
</pallas_src>

<mosaic_0001>
module attributes {stable_mosaic.version = 11 : i64} {
  func.func @_res_block_kernel(%arg0: i32, %arg1: memref<2x4x256xf32, #tpu.memory_space<vmem>>, %arg2: memref<9x1x512xf32, #tpu.memory_space<vmem>>, %arg3: memref<36x4x1xf32, #tpu.memory_space<vmem>>, %arg4: memref<4x1xf32, #tpu.memory_space<vmem>>, %arg5: memref<4x1xf32, #tpu.memory_space<vmem>>, %arg6: memref<4x1xf32, #tpu.memory_space<vmem>>, %arg7: memref<36x4x1xf32, #tpu.memory_space<vmem>>, %arg8: memref<4x1xf32, #tpu.memory_space<vmem>>, %arg9: memref<4x1xf32, #tpu.memory_space<vmem>>, %arg10: memref<4x1xf32, #tpu.memory_space<vmem>>, %arg11: memref<2x4x256xf32, #tpu.memory_space<vmem>>) attributes {dimension_semantics = [#tpu.dimension_semantics<arbitrary>], iteration_bounds = array<i64: 1>, scalar_prefetch = 0 : i64, scratch_operands = 0 : i64, tpu.core_type = #tpu.core_type<tc>, window_params = [{pipeline_mode = #tpu.pipeline_mode<synchronous>, transform_indices = @transform_0, window_bounds = array<i64: 2, 4, 256>}, {pipeline_mode = #tpu.pipeline_mode<synchronous>, transform_indices = @transform_1, window_bounds = array<i64: 9, 1, 512>}, {pipeline_mode = #tpu.pipeline_mode<synchronous>, transform_indices = @transform_2, window_bounds = array<i64: 36, 4, 1>}, {pipeline_mode = #tpu.pipeline_mode<synchronous>, transform_indices = @transform_3, window_bounds = array<i64: 4, 1>}, {pipeline_mode = #tpu.pipeline_mode<synchronous>, transform_indices = @transform_4, window_bounds = array<i64: 4, 1>}, {pipeline_mode = #tpu.pipeline_mode<synchronous>, transform_indices = @transform_5, window_bounds = array<i64: 4, 1>}, {pipeline_mode = #tpu.pipeline_mode<synchronous>, transform_indices = @transform_6, window_bounds = array<i64: 36, 4, 1>}, {pipeline_mode = #tpu.pipeline_mode<synchronous>, transform_indices = @transform_7, window_bounds = array<i64: 4, 1>}, {pipeline_mode = #tpu.pipeline_mode<synchronous>, transform_indices = @transform_8, window_bounds = array<i64: 4, 1>}, {pipeline_mode = #tpu.pipeline_mode<synchronous>, transform_indices = @transform_9, window_bounds = array<i64: 4, 1>}, {pipeline_mode = #tpu.pipeline_mode<synchronous>, transform_indices = @transform_10, window_bounds = array<i64: 2, 4, 256>}]} {
    %c0 = arith.constant 0 : index
    %c0_0 = arith.constant 0 : index
    %c0_1 = arith.constant 0 : index
    %0 = vector.load %arg1[%c0, %c0_0, %c0_1] : memref<2x4x256xf32, #tpu.memory_space<vmem>>, vector<1x4x256xf32>
    %1 = vector.shape_cast %0 : vector<1x4x256xf32> to vector<4x256xf32>
    %c1 = arith.constant 1 : index
    %c0_2 = arith.constant 0 : index
    %c0_3 = arith.constant 0 : index
    %2 = vector.load %arg1[%c1, %c0_2, %c0_3] : memref<2x4x256xf32, #tpu.memory_space<vmem>>, vector<1x4x256xf32>
    %3 = vector.shape_cast %2 : vector<1x4x256xf32> to vector<4x256xf32>
    %4 = tpu.concatenate %1, %3 in 1 : vector<4x256xf32>, vector<4x256xf32> -> vector<4x512xf32>
    %cst = arith.constant 0.000000e+00 : f32
    %5 = vector.broadcast %cst : f32 to vector<4x512xf32>
    %c17_i32 = arith.constant 17 : i32
    %6 = tpu.dynamic_rotate %4 by %c17_i32 dim 1 : vector<4x512xf32>, i32 -> vector<4x512xf32>
    %c0_4 = arith.constant 0 : index
    %c0_5 = arith.constant 0 : index
    %c0_6 = arith.constant 0 : index
    %7 = vector.load %arg2[%c0_4, %c0_5, %c0_6] : memref<9x1x512xf32, #tpu.memory_space<vmem>>, vector<1x1x512xf32>
    %8 = vector.shape_cast %7 : vector<1x1x512xf32> to vector<1x512xf32>
    %9 = vector.broadcast %8 : vector<1x512xf32> to vector<4x512xf32>
    %10 = arith.mulf %6, %9 : vector<4x512xf32>
    %c0_7 = arith.constant 0 : index
    %c0_8 = arith.constant 0 : index
    %c0_9 = arith.constant 0 : index
    %11 = vector.load %arg3[%c0_7, %c0_8, %c0_9] : memref<36x4x1xf32, #tpu.memory_space<vmem>>, vector<1x4x1xf32>
    %12 = vector.shape_cast %11 : vector<1x4x1xf32> to vector<4x1xf32>
    %13 = vector.extract_strided_slice %10 {offsets = [0, 0], sizes = [1, 512], strides = [1, 1]} : vector<4x512xf32> to vector<1x512xf32>
    %14 = vector.broadcast %12 : vector<4x1xf32> to vector<4x512xf32>
    %15 = vector.broadcast %13 : vector<1x512xf32> to vector<4x512xf32>
    %16 = arith.mulf %14, %15 : vector<4x512xf32>
    %17 = arith.addf %5, %16 : vector<4x512xf32>
    %c1_10 = arith.constant 1 : index
    %c0_11 = arith.constant 0 : index
    %c0_12 = arith.constant 0 : index
    %18 = vector.load %arg3[%c1_10, %c0_11, %c0_12] : memref<36x4x1xf32, #tpu.memory_space<vmem>>, vector<1x4x1xf32>
    %19 = vector.shape_cast %18 : vector<1x4x1xf32> to vector<4x1xf32>
    %20 = vector.extract_strided_slice %10 {offsets = [1, 0], sizes = [1, 512], strides = [1, 1]} : vector<4x512xf32> to vector<1x512xf32>
    %21 = vector.broadcast %19 : vector<4x1xf32> to vector<4x512xf32>
    %22 = vector.broadcast %20 : vector<1x512xf32> to vector<4x512xf32>
    %23 = arith.mulf %21, %22 : vector<4x512xf32>
    %24 = arith.addf %17, %23 : vector<4x512xf32>
    %c2 = arith.constant 2 : index
    %c0_13 = arith.constant 0 : index
    %c0_14 = arith.constant 0 : index
    %25 = vector.load %arg3[%c2, %c0_13, %c0_14] : memref<36x4x1xf32, #tpu.memory_space<vmem>>, vector<1x4x1xf32>
    %26 = vector.shape_cast %25 : vector<1x4x1xf32> to vector<4x1xf32>
    %27 = vector.extract_strided_slice %10 {offsets = [2, 0], sizes = [1, 512], strides = [1, 1]} : vector<4x512xf32> to vector<1x512xf32>
    %28 = vector.broadcast %26 : vector<4x1xf32> to vector<4x512xf32>
    %29 = vector.broadcast %27 : vector<1x512xf32> to vector<4x512xf32>
    %30 = arith.mulf %28, %29 : vector<4x512xf32>
    %31 = arith.addf %24, %30 : vector<4x512xf32>
    %c3 = arith.constant 3 : index
    %c0_15 = arith.constant 0 : index
    %c0_16 = arith.constant 0 : index
    %32 = vector.load %arg3[%c3, %c0_15, %c0_16] : memref<36x4x1xf32, #tpu.memory_space<vmem>>, vector<1x4x1xf32>
    %33 = vector.shape_cast %32 : vector<1x4x1xf32> to vector<4x1xf32>
    %34 = vector.extract_strided_slice %10 {offsets = [3, 0], sizes = [1, 512], strides = [1, 1]} : vector<4x512xf32> to vector<1x512xf32>
    %35 = vector.broadcast %33 : vector<4x1xf32> to vector<4x512xf32>
    %36 = vector.broadcast %34 : vector<1x512xf32> to vector<4x512xf32>
    %37 = arith.mulf %35, %36 : vector<4x512xf32>
    %38 = arith.addf %31, %37 : vector<4x512xf32>
    %c16_i32 = arith.constant 16 : i32
    %39 = tpu.dynamic_rotate %4 by %c16_i32 dim 1 : vector<4x512xf32>, i32 -> vector<4x512xf32>
    %c1_17 = arith.constant 1 : index
    %c0_18 = arith.constant 0 : index
    %c0_19 = arith.constant 0 : index
    %40 = vector.load %arg2[%c1_17, %c0_18, %c0_19] : memref<9x1x512xf32, #tpu.memory_space<vmem>>, vector<1x1x512xf32>
    %41 = vector.shape_cast %40 : vector<1x1x512xf32> to vector<1x512xf32>
    %42 = vector.broadcast %41 : vector<1x512xf32> to vector<4x512xf32>
    %43 = arith.mulf %39, %42 : vector<4x512xf32>
    %c4 = arith.constant 4 : index
    %c0_20 = arith.constant 0 : index
    %c0_21 = arith.constant 0 : index
    %44 = vector.load %arg3[%c4, %c0_20, %c0_21] : memref<36x4x1xf32, #tpu.memory_space<vmem>>, vector<1x4x1xf32>
    %45 = vector.shape_cast %44 : vector<1x4x1xf32> to vector<4x1xf32>
    %46 = vector.extract_strided_slice %43 {offsets = [0, 0], sizes = [1, 512], strides = [1, 1]} : vector<4x512xf32> to vector<1x512xf32>
    %47 = vector.broadcast %45 : vector<4x1xf32> to vector<4x512xf32>
    %48 = vector.broadcast %46 : vector<1x512xf32> to vector<4x512xf32>
    %49 = arith.mulf %47, %48 : vector<4x512xf32>
    %50 = arith.addf %38, %49 : vector<4x512xf32>
    %c5 = arith.constant 5 : index
    %c0_22 = arith.constant 0 : index
    %c0_23 = arith.constant 0 : index
    %51 = vector.load %arg3[%c5, %c0_22, %c0_23] : memref<36x4x1xf32, #tpu.memory_space<vmem>>, vector<1x4x1xf32>
    %52 = vector.shape_cast %51 : vector<1x4x1xf32> to vector<4x1xf32>
    %53 = vector.extract_strided_slice %43 {offsets = [1, 0], sizes = [1, 512], strides = [1, 1]} : vector<4x512xf32> to vector<1x512xf32>
    %54 = vector.broadcast %52 : vector<4x1xf32> to vector<4x512xf32>
    %55 = vector.broadcast %53 : vector<1x512xf32> to vector<4x512xf32>
    %56 = arith.mulf %54, %55 : vector<4x512xf32>
    %57 = arith.addf %50, %56 : vector<4x512xf32>
    %c6 = arith.constant 6 : index
    %c0_24 = arith.constant 0 : index
    %c0_25 = arith.constant 0 : index
    %58 = vector.load %arg3[%c6, %c0_24, %c0_25] : memref<36x4x1xf32, #tpu.memory_space<vmem>>, vector<1x4x1xf32>
    %59 = vector.shape_cast %58 : vector<1x4x1xf32> to vector<4x1xf32>
    %60 = vector.extract_strided_slice %43 {offsets = [2, 0], sizes = [1, 512], strides = [1, 1]} : vector<4x512xf32> to vector<1x512xf32>
    %61 = vector.broadcast %59 : vector<4x1xf32> to vector<4x512xf32>
    %62 = vector.broadcast %60 : vector<1x512xf32> to vector<4x512xf32>
    %63 = arith.mulf %61, %62 : vector<4x512xf32>
    %64 = arith.addf %57, %63 : vector<4x512xf32>
    %c7 = arith.constant 7 : index
    %c0_26 = arith.constant 0 : index
    %c0_27 = arith.constant 0 : index
    %65 = vector.load %arg3[%c7, %c0_26, %c0_27] : memref<36x4x1xf32, #tpu.memory_space<vmem>>, vector<1x4x1xf32>
    %66 = vector.shape_cast %65 : vector<1x4x1xf32> to vector<4x1xf32>
    %67 = vector.extract_strided_slice %43 {offsets = [3, 0], sizes = [1, 512], strides = [1, 1]} : vector<4x512xf32> to vector<1x512xf32>
    %68 = vector.broadcast %66 : vector<4x1xf32> to vector<4x512xf32>
    %69 = vector.broadcast %67 : vector<1x512xf32> to vector<4x512xf32>
    %70 = arith.mulf %68, %69 : vector<4x512xf32>
    %71 = arith.addf %64, %70 : vector<4x512xf32>
    %c15_i32 = arith.constant 15 : i32
    %72 = tpu.dynamic_rotate %4 by %c15_i32 dim 1 : vector<4x512xf32>, i32 -> vector<4x512xf32>
    %c2_28 = arith.constant 2 : index
    %c0_29 = arith.constant 0 : index
    %c0_30 = arith.constant 0 : index
    %73 = vector.load %arg2[%c2_28, %c0_29, %c0_30] : memref<9x1x512xf32, #tpu.memory_space<vmem>>, vector<1x1x512xf32>
    %74 = vector.shape_cast %73 : vector<1x1x512xf32> to vector<1x512xf32>
    %75 = vector.broadcast %74 : vector<1x512xf32> to vector<4x512xf32>
    %76 = arith.mulf %72, %75 : vector<4x512xf32>
    %c8 = arith.constant 8 : index
    %c0_31 = arith.constant 0 : index
    %c0_32 = arith.constant 0 : index
    %77 = vector.load %arg3[%c8, %c0_31, %c0_32] : memref<36x4x1xf32, #tpu.memory_space<vmem>>, vector<1x4x1xf32>
    %78 = vector.shape_cast %77 : vector<1x4x1xf32> to vector<4x1xf32>
    %79 = vector.extract_strided_slice %76 {offsets = [0, 0], sizes = [1, 512], strides = [1, 1]} : vector<4x512xf32> to vector<1x512xf32>
    %80 = vector.broadcast %78 : vector<4x1xf32> to vector<4x512xf32>
    %81 = vector.broadcast %79 : vector<1x512xf32> to vector<4x512xf32>
    %82 = arith.mulf %80, %81 : vector<4x512xf32>
    %83 = arith.addf %71, %82 : vector<4x512xf32>
    %c9 = arith.constant 9 : index
    %c0_33 = arith.constant 0 : index
    %c0_34 = arith.constant 0 : index
    %84 = vector.load %arg3[%c9, %c0_33, %c0_34] : memref<36x4x1xf32, #tpu.memory_space<vmem>>, vector<1x4x1xf32>
    %85 = vector.shape_cast %84 : vector<1x4x1xf32> to vector<4x1xf32>
    %86 = vector.extract_strided_slice %76 {offsets = [1, 0], sizes = [1, 512], strides = [1, 1]} : vector<4x512xf32> to vector<1x512xf32>
    %87 = vector.broadcast %85 : vector<4x1xf32> to vector<4x512xf32>
    %88 = vector.broadcast %86 : vector<1x512xf32> to vector<4x512xf32>
    %89 = arith.mulf %87, %88 : vector<4x512xf32>
    %90 = arith.addf %83, %89 : vector<4x512xf32>
    %c10 = arith.constant 10 : index
    %c0_35 = arith.constant 0 : index
    %c0_36 = arith.constant 0 : index
    %91 = vector.load %arg3[%c10, %c0_35, %c0_36] : memref<36x4x1xf32, #tpu.memory_space<vmem>>, vector<1x4x1xf32>
    %92 = vector.shape_cast %91 : vector<1x4x1xf32> to vector<4x1xf32>
    %93 = vector.extract_strided_slice %76 {offsets = [2, 0], sizes = [1, 512], strides = [1, 1]} : vector<4x512xf32> to vector<1x512xf32>
    %94 = vector.broadcast %92 : vector<4x1xf32> to vector<4x512xf32>
    %95 = vector.broadcast %93 : vector<1x512xf32> to vector<4x512xf32>
    %96 = arith.mulf %94, %95 : vector<4x512xf32>
    %97 = arith.addf %90, %96 : vector<4x512xf32>
    %c11 = arith.constant 11 : index
    %c0_37 = arith.constant 0 : index
    %c0_38 = arith.constant 0 : index
    %98 = vector.load %arg3[%c11, %c0_37, %c0_38] : memref<36x4x1xf32, #tpu.memory_space<vmem>>, vector<1x4x1xf32>
    %99 = vector.shape_cast %98 : vector<1x4x1xf32> to vector<4x1xf32>
    %100 = vector.extract_strided_slice %76 {offsets = [3, 0], sizes = [1, 512], strides = [1, 1]} : vector<4x512xf32> to vector<1x512xf32>
    %101 = vector.broadcast %99 : vector<4x1xf32> to vector<4x512xf32>
    %102 = vector.broadcast %100 : vector<1x512xf32> to vector<4x512xf32>
    %103 = arith.mulf %101, %102 : vector<4x512xf32>
    %104 = arith.addf %97, %103 : vector<4x512xf32>
    %c1_i32 = arith.constant 1 : i32
    %105 = tpu.dynamic_rotate %4 by %c1_i32 dim 1 : vector<4x512xf32>, i32 -> vector<4x512xf32>
    %c3_39 = arith.constant 3 : index
    %c0_40 = arith.constant 0 : index
    %c0_41 = arith.constant 0 : index
    %106 = vector.load %arg2[%c3_39, %c0_40, %c0_41] : memref<9x1x512xf32, #tpu.memory_space<vmem>>, vector<1x1x512xf32>
    %107 = vector.shape_cast %106 : vector<1x1x512xf32> to vector<1x512xf32>
    %108 = vector.broadcast %107 : vector<1x512xf32> to vector<4x512xf32>
    %109 = arith.mulf %105, %108 : vector<4x512xf32>
    %c12 = arith.constant 12 : index
    %c0_42 = arith.constant 0 : index
    %c0_43 = arith.constant 0 : index
    %110 = vector.load %arg3[%c12, %c0_42, %c0_43] : memref<36x4x1xf32, #tpu.memory_space<vmem>>, vector<1x4x1xf32>
    %111 = vector.shape_cast %110 : vector<1x4x1xf32> to vector<4x1xf32>
    %112 = vector.extract_strided_slice %109 {offsets = [0, 0], sizes = [1, 512], strides = [1, 1]} : vector<4x512xf32> to vector<1x512xf32>
    %113 = vector.broadcast %111 : vector<4x1xf32> to vector<4x512xf32>
    %114 = vector.broadcast %112 : vector<1x512xf32> to vector<4x512xf32>
    %115 = arith.mulf %113, %114 : vector<4x512xf32>
    %116 = arith.addf %104, %115 : vector<4x512xf32>
    %c13 = arith.constant 13 : index
    %c0_44 = arith.constant 0 : index
    %c0_45 = arith.constant 0 : index
    %117 = vector.load %arg3[%c13, %c0_44, %c0_45] : memref<36x4x1xf32, #tpu.memory_space<vmem>>, vector<1x4x1xf32>
    %118 = vector.shape_cast %117 : vector<1x4x1xf32> to vector<4x1xf32>
    %119 = vector.extract_strided_slice %109 {offsets = [1, 0], sizes = [1, 512], strides = [1, 1]} : vector<4x512xf32> to vector<1x512xf32>
    %120 = vector.broadcast %118 : vector<4x1xf32> to vector<4x512xf32>
    %121 = vector.broadcast %119 : vector<1x512xf32> to vector<4x512xf32>
    %122 = arith.mulf %120, %121 : vector<4x512xf32>
    %123 = arith.addf %116, %122 : vector<4x512xf32>
    %c14 = arith.constant 14 : index
    %c0_46 = arith.constant 0 : index
    %c0_47 = arith.constant 0 : index
    %124 = vector.load %arg3[%c14, %c0_46, %c0_47] : memref<36x4x1xf32, #tpu.memory_space<vmem>>, vector<1x4x1xf32>
    %125 = vector.shape_cast %124 : vector<1x4x1xf32> to vector<4x1xf32>
    %126 = vector.extract_strided_slice %109 {offsets = [2, 0], sizes = [1, 512], strides = [1, 1]} : vector<4x512xf32> to vector<1x512xf32>
    %127 = vector.broadcast %125 : vector<4x1xf32> to vector<4x512xf32>
    %128 = vector.broadcast %126 : vector<1x512xf32> to vector<4x512xf32>
    %129 = arith.mulf %127, %128 : vector<4x512xf32>
    %130 = arith.addf %123, %129 : vector<4x512xf32>
    %c15 = arith.constant 15 : index
    %c0_48 = arith.constant 0 : index
    %c0_49 = arith.constant 0 : index
    %131 = vector.load %arg3[%c15, %c0_48, %c0_49] : memref<36x4x1xf32, #tpu.memory_space<vmem>>, vector<1x4x1xf32>
    %132 = vector.shape_cast %131 : vector<1x4x1xf32> to vector<4x1xf32>
    %133 = vector.extract_strided_slice %109 {offsets = [3, 0], sizes = [1, 512], strides = [1, 1]} : vector<4x512xf32> to vector<1x512xf32>
    %134 = vector.broadcast %132 : vector<4x1xf32> to vector<4x512xf32>
    %135 = vector.broadcast %133 : vector<1x512xf32> to vector<4x512xf32>
    %136 = arith.mulf %134, %135 : vector<4x512xf32>
    %137 = arith.addf %130, %136 : vector<4x512xf32>
    %c16 = arith.constant 16 : index
    %c0_50 = arith.constant 0 : index
    %c0_51 = arith.constant 0 : index
    %138 = vector.load %arg3[%c16, %c0_50, %c0_51] : memref<36x4x1xf32, #tpu.memory_space<vmem>>, vector<1x4x1xf32>
    %139 = vector.shape_cast %138 : vector<1x4x1xf32> to vector<4x1xf32>
    %140 = vector.extract_strided_slice %4 {offsets = [0, 0], sizes = [1, 512], strides = [1, 1]} : vector<4x512xf32> to vector<1x512xf32>
    %141 = vector.broadcast %139 : vector<4x1xf32> to vector<4x512xf32>
    %142 = vector.broadcast %140 : vector<1x512xf32> to vector<4x512xf32>
    %143 = arith.mulf %141, %142 : vector<4x512xf32>
    %144 = arith.addf %137, %143 : vector<4x512xf32>
    %c17 = arith.constant 17 : index
    %c0_52 = arith.constant 0 : index
    %c0_53 = arith.constant 0 : index
    %145 = vector.load %arg3[%c17, %c0_52, %c0_53] : memref<36x4x1xf32, #tpu.memory_space<vmem>>, vector<1x4x1xf32>
    %146 = vector.shape_cast %145 : vector<1x4x1xf32> to vector<4x1xf32>
    %147 = vector.extract_strided_slice %4 {offsets = [1, 0], sizes = [1, 512], strides = [1, 1]} : vector<4x512xf32> to vector<1x512xf32>
    %148 = vector.broadcast %146 : vector<4x1xf32> to vector<4x512xf32>
    %149 = vector.broadcast %147 : vector<1x512xf32> to vector<4x512xf32>
    %150 = arith.mulf %148, %149 : vector<4x512xf32>
    %151 = arith.addf %144, %150 : vector<4x512xf32>
    %c18 = arith.constant 18 : index
    %c0_54 = arith.constant 0 : index
    %c0_55 = arith.constant 0 : index
    %152 = vector.load %arg3[%c18, %c0_54, %c0_55] : memref<36x4x1xf32, #tpu.memory_space<vmem>>, vector<1x4x1xf32>
    %153 = vector.shape_cast %152 : vector<1x4x1xf32> to vector<4x1xf32>
    %154 = vector.extract_strided_slice %4 {offsets = [2, 0], sizes = [1, 512], strides = [1, 1]} : vector<4x512xf32> to vector<1x512xf32>
    %155 = vector.broadcast %153 : vector<4x1xf32> to vector<4x512xf32>
    %156 = vector.broadcast %154 : vector<1x512xf32> to vector<4x512xf32>
    %157 = arith.mulf %155, %156 : vector<4x512xf32>
    %158 = arith.addf %151, %157 : vector<4x512xf32>
    %c19 = arith.constant 19 : index
    %c0_56 = arith.constant 0 : index
    %c0_57 = arith.constant 0 : index
    %159 = vector.load %arg3[%c19, %c0_56, %c0_57] : memref<36x4x1xf32, #tpu.memory_space<vmem>>, vector<1x4x1xf32>
    %160 = vector.shape_cast %159 : vector<1x4x1xf32> to vector<4x1xf32>
    %161 = vector.extract_strided_slice %4 {offsets = [3, 0], sizes = [1, 512], strides = [1, 1]} : vector<4x512xf32> to vector<1x512xf32>
    %162 = vector.broadcast %160 : vector<4x1xf32> to vector<4x512xf32>
    %163 = vector.broadcast %161 : vector<1x512xf32> to vector<4x512xf32>
    %164 = arith.mulf %162, %163 : vector<4x512xf32>
    %165 = arith.addf %158, %164 : vector<4x512xf32>
    %c511_i32 = arith.constant 511 : i32
    %166 = tpu.dynamic_rotate %4 by %c511_i32 dim 1 : vector<4x512xf32>, i32 -> vector<4x512xf32>
    %c5_58 = arith.constant 5 : index
    %c0_59 = arith.constant 0 : index
    %c0_60 = arith.constant 0 : index
    %167 = vector.load %arg2[%c5_58, %c0_59, %c0_60] : memref<9x1x512xf32, #tpu.memory_space<vmem>>, vector<1x1x512xf32>
    %168 = vector.shape_cast %167 : vector<1x1x512xf32> to vector<1x512xf32>
    %169 = vector.broadcast %168 : vector<1x512xf32> to vector<4x512xf32>
    %170 = arith.mulf %166, %169 : vector<4x512xf32>
    %c20 = arith.constant 20 : index
    %c0_61 = arith.constant 0 : index
    %c0_62 = arith.constant 0 : index
    %171 = vector.load %arg3[%c20, %c0_61, %c0_62] : memref<36x4x1xf32, #tpu.memory_space<vmem>>, vector<1x4x1xf32>
    %172 = vector.shape_cast %171 : vector<1x4x1xf32> to vector<4x1xf32>
    %173 = vector.extract_strided_slice %170 {offsets = [0, 0], sizes = [1, 512], strides = [1, 1]} : vector<4x512xf32> to vector<1x512xf32>
    %174 = vector.broadcast %172 : vector<4x1xf32> to vector<4x512xf32>
    %175 = vector.broadcast %173 : vector<1x512xf32> to vector<4x512xf32>
    %176 = arith.mulf %174, %175 : vector<4x512xf32>
    %177 = arith.addf %165, %176 : vector<4x512xf32>
    %c21 = arith.constant 21 : index
    %c0_63 = arith.constant 0 : index
    %c0_64 = arith.constant 0 : index
    %178 = vector.load %arg3[%c21, %c0_63, %c0_64] : memref<36x4x1xf32, #tpu.memory_space<vmem>>, vector<1x4x1xf32>
    %179 = vector.shape_cast %178 : vector<1x4x1xf32> to vector<4x1xf32>
    %180 = vector.extract_strided_slice %170 {offsets = [1, 0], sizes = [1, 512], strides = [1, 1]} : vector<4x512xf32> to vector<1x512xf32>
    %181 = vector.broadcast %179 : vector<4x1xf32> to vector<4x512xf32>
    %182 = vector.broadcast %180 : vector<1x512xf32> to vector<4x512xf32>
    %183 = arith.mulf %181, %182 : vector<4x512xf32>
    %184 = arith.addf %177, %183 : vector<4x512xf32>
    %c22 = arith.constant 22 : index
    %c0_65 = arith.constant 0 : index
    %c0_66 = arith.constant 0 : index
    %185 = vector.load %arg3[%c22, %c0_65, %c0_66] : memref<36x4x1xf32, #tpu.memory_space<vmem>>, vector<1x4x1xf32>
    %186 = vector.shape_cast %185 : vector<1x4x1xf32> to vector<4x1xf32>
    %187 = vector.extract_strided_slice %170 {offsets = [2, 0], sizes = [1, 512], strides = [1, 1]} : vector<4x512xf32> to vector<1x512xf32>
    %188 = vector.broadcast %186 : vector<4x1xf32> to vector<4x512xf32>
    %189 = vector.broadcast %187 : vector<1x512xf32> to vector<4x512xf32>
    %190 = arith.mulf %188, %189 : vector<4x512xf32>
    %191 = arith.addf %184, %190 : vector<4x512xf32>
    %c23 = arith.constant 23 : index
    %c0_67 = arith.constant 0 : index
    %c0_68 = arith.constant 0 : index
    %192 = vector.load %arg3[%c23, %c0_67, %c0_68] : memref<36x4x1xf32, #tpu.memory_space<vmem>>, vector<1x4x1xf32>
    %193 = vector.shape_cast %192 : vector<1x4x1xf32> to vector<4x1xf32>
    %194 = vector.extract_strided_slice %170 {offsets = [3, 0], sizes = [1, 512], strides = [1, 1]} : vector<4x512xf32> to vector<1x512xf32>
    %195 = vector.broadcast %193 : vector<4x1xf32> to vector<4x512xf32>
    %196 = vector.broadcast %194 : vector<1x512xf32> to vector<4x512xf32>
    %197 = arith.mulf %195, %196 : vector<4x512xf32>
    %198 = arith.addf %191, %197 : vector<4x512xf32>
    %c497_i32 = arith.constant 497 : i32
    %199 = tpu.dynamic_rotate %4 by %c497_i32 dim 1 : vector<4x512xf32>, i32 -> vector<4x512xf32>
    %c6_69 = arith.constant 6 : index
    %c0_70 = arith.constant 0 : index
    %c0_71 = arith.constant 0 : index
    %200 = vector.load %arg2[%c6_69, %c0_70, %c0_71] : memref<9x1x512xf32, #tpu.memory_space<vmem>>, vector<1x1x512xf32>
    %201 = vector.shape_cast %200 : vector<1x1x512xf32> to vector<1x512xf32>
    %202 = vector.broadcast %201 : vector<1x512xf32> to vector<4x512xf32>
    %203 = arith.mulf %199, %202 : vector<4x512xf32>
    %c24 = arith.constant 24 : index
    %c0_72 = arith.constant 0 : index
    %c0_73 = arith.constant 0 : index
    %204 = vector.load %arg3[%c24, %c0_72, %c0_73] : memref<36x4x1xf32, #tpu.memory_space<vmem>>, vector<1x4x1xf32>
    %205 = vector.shape_cast %204 : vector<1x4x1xf32> to vector<4x1xf32>
    %206 = vector.extract_strided_slice %203 {offsets = [0, 0], sizes = [1, 512], strides = [1, 1]} : vector<4x512xf32> to vector<1x512xf32>
    %207 = vector.broadcast %205 : vector<4x1xf32> to vector<4x512xf32>
    %208 = vector.broadcast %206 : vector<1x512xf32> to vector<4x512xf32>
    %209 = arith.mulf %207, %208 : vector<4x512xf32>
    %210 = arith.addf %198, %209 : vector<4x512xf32>
    %c25 = arith.constant 25 : index
    %c0_74 = arith.constant 0 : index
    %c0_75 = arith.constant 0 : index
    %211 = vector.load %arg3[%c25, %c0_74, %c0_75] : memref<36x4x1xf32, #tpu.memory_space<vmem>>, vector<1x4x1xf32>
    %212 = vector.shape_cast %211 : vector<1x4x1xf32> to vector<4x1xf32>
    %213 = vector.extract_strided_slice %203 {offsets = [1, 0], sizes = [1, 512], strides = [1, 1]} : vector<4x512xf32> to vector<1x512xf32>
    %214 = vector.broadcast %212 : vector<4x1xf32> to vector<4x512xf32>
    %215 = vector.broadcast %213 : vector<1x512xf32> to vector<4x512xf32>
    %216 = arith.mulf %214, %215 : vector<4x512xf32>
    %217 = arith.addf %210, %216 : vector<4x512xf32>
    %c26 = arith.constant 26 : index
    %c0_76 = arith.constant 0 : index
    %c0_77 = arith.constant 0 : index
    %218 = vector.load %arg3[%c26, %c0_76, %c0_77] : memref<36x4x1xf32, #tpu.memory_space<vmem>>, vector<1x4x1xf32>
    %219 = vector.shape_cast %218 : vector<1x4x1xf32> to vector<4x1xf32>
    %220 = vector.extract_strided_slice %203 {offsets = [2, 0], sizes = [1, 512], strides = [1, 1]} : vector<4x512xf32> to vector<1x512xf32>
    %221 = vector.broadcast %219 : vector<4x1xf32> to vector<4x512xf32>
    %222 = vector.broadcast %220 : vector<1x512xf32> to vector<4x512xf32>
    %223 = arith.mulf %221, %222 : vector<4x512xf32>
    %224 = arith.addf %217, %223 : vector<4x512xf32>
    %c27 = arith.constant 27 : index
    %c0_78 = arith.constant 0 : index
    %c0_79 = arith.constant 0 : index
    %225 = vector.load %arg3[%c27, %c0_78, %c0_79] : memref<36x4x1xf32, #tpu.memory_space<vmem>>, vector<1x4x1xf32>
    %226 = vector.shape_cast %225 : vector<1x4x1xf32> to vector<4x1xf32>
    %227 = vector.extract_strided_slice %203 {offsets = [3, 0], sizes = [1, 512], strides = [1, 1]} : vector<4x512xf32> to vector<1x512xf32>
    %228 = vector.broadcast %226 : vector<4x1xf32> to vector<4x512xf32>
    %229 = vector.broadcast %227 : vector<1x512xf32> to vector<4x512xf32>
    %230 = arith.mulf %228, %229 : vector<4x512xf32>
    %231 = arith.addf %224, %230 : vector<4x512xf32>
    %c496_i32 = arith.constant 496 : i32
    %232 = tpu.dynamic_rotate %4 by %c496_i32 dim 1 : vector<4x512xf32>, i32 -> vector<4x512xf32>
    %c7_80 = arith.constant 7 : index
    %c0_81 = arith.constant 0 : index
    %c0_82 = arith.constant 0 : index
    %233 = vector.load %arg2[%c7_80, %c0_81, %c0_82] : memref<9x1x512xf32, #tpu.memory_space<vmem>>, vector<1x1x512xf32>
    %234 = vector.shape_cast %233 : vector<1x1x512xf32> to vector<1x512xf32>
    %235 = vector.broadcast %234 : vector<1x512xf32> to vector<4x512xf32>
    %236 = arith.mulf %232, %235 : vector<4x512xf32>
    %c28 = arith.constant 28 : index
    %c0_83 = arith.constant 0 : index
    %c0_84 = arith.constant 0 : index
    %237 = vector.load %arg3[%c28, %c0_83, %c0_84] : memref<36x4x1xf32, #tpu.memory_space<vmem>>, vector<1x4x1xf32>
    %238 = vector.shape_cast %237 : vector<1x4x1xf32> to vector<4x1xf32>
    %239 = vector.extract_strided_slice %236 {offsets = [0, 0], sizes = [1, 512], strides = [1, 1]} : vector<4x512xf32> to vector<1x512xf32>
    %240 = vector.broadcast %238 : vector<4x1xf32> to vector<4x512xf32>
    %241 = vector.broadcast %239 : vector<1x512xf32> to vector<4x512xf32>
    %242 = arith.mulf %240, %241 : vector<4x512xf32>
    %243 = arith.addf %231, %242 : vector<4x512xf32>
    %c29 = arith.constant 29 : index
    %c0_85 = arith.constant 0 : index
    %c0_86 = arith.constant 0 : index
    %244 = vector.load %arg3[%c29, %c0_85, %c0_86] : memref<36x4x1xf32, #tpu.memory_space<vmem>>, vector<1x4x1xf32>
    %245 = vector.shape_cast %244 : vector<1x4x1xf32> to vector<4x1xf32>
    %246 = vector.extract_strided_slice %236 {offsets = [1, 0], sizes = [1, 512], strides = [1, 1]} : vector<4x512xf32> to vector<1x512xf32>
    %247 = vector.broadcast %245 : vector<4x1xf32> to vector<4x512xf32>
    %248 = vector.broadcast %246 : vector<1x512xf32> to vector<4x512xf32>
    %249 = arith.mulf %247, %248 : vector<4x512xf32>
    %250 = arith.addf %243, %249 : vector<4x512xf32>
    %c30 = arith.constant 30 : index
    %c0_87 = arith.constant 0 : index
    %c0_88 = arith.constant 0 : index
    %251 = vector.load %arg3[%c30, %c0_87, %c0_88] : memref<36x4x1xf32, #tpu.memory_space<vmem>>, vector<1x4x1xf32>
    %252 = vector.shape_cast %251 : vector<1x4x1xf32> to vector<4x1xf32>
    %253 = vector.extract_strided_slice %236 {offsets = [2, 0], sizes = [1, 512], strides = [1, 1]} : vector<4x512xf32> to vector<1x512xf32>
    %254 = vector.broadcast %252 : vector<4x1xf32> to vector<4x512xf32>
    %255 = vector.broadcast %253 : vector<1x512xf32> to vector<4x512xf32>
    %256 = arith.mulf %254, %255 : vector<4x512xf32>
    %257 = arith.addf %250, %256 : vector<4x512xf32>
    %c31 = arith.constant 31 : index
    %c0_89 = arith.constant 0 : index
    %c0_90 = arith.constant 0 : index
    %258 = vector.load %arg3[%c31, %c0_89, %c0_90] : memref<36x4x1xf32, #tpu.memory_space<vmem>>, vector<1x4x1xf32>
    %259 = vector.shape_cast %258 : vector<1x4x1xf32> to vector<4x1xf32>
    %260 = vector.extract_strided_slice %236 {offsets = [3, 0], sizes = [1, 512], strides = [1, 1]} : vector<4x512xf32> to vector<1x512xf32>
    %261 = vector.broadcast %259 : vector<4x1xf32> to vector<4x512xf32>
    %262 = vector.broadcast %260 : vector<1x512xf32> to vector<4x512xf32>
    %263 = arith.mulf %261, %262 : vector<4x512xf32>
    %264 = arith.addf %257, %263 : vector<4x512xf32>
    %c495_i32 = arith.constant 495 : i32
    %265 = tpu.dynamic_rotate %4 by %c495_i32 dim 1 : vector<4x512xf32>, i32 -> vector<4x512xf32>
    %c8_91 = arith.constant 8 : index
    %c0_92 = arith.constant 0 : index
    %c0_93 = arith.constant 0 : index
    %266 = vector.load %arg2[%c8_91, %c0_92, %c0_93] : memref<9x1x512xf32, #tpu.memory_space<vmem>>, vector<1x1x512xf32>
    %267 = vector.shape_cast %266 : vector<1x1x512xf32> to vector<1x512xf32>
    %268 = vector.broadcast %267 : vector<1x512xf32> to vector<4x512xf32>
    %269 = arith.mulf %265, %268 : vector<4x512xf32>
    %c32 = arith.constant 32 : index
    %c0_94 = arith.constant 0 : index
    %c0_95 = arith.constant 0 : index
    %270 = vector.load %arg3[%c32, %c0_94, %c0_95] : memref<36x4x1xf32, #tpu.memory_space<vmem>>, vector<1x4x1xf32>
    %271 = vector.shape_cast %270 : vector<1x4x1xf32> to vector<4x1xf32>
    %272 = vector.extract_strided_slice %269 {offsets = [0, 0], sizes = [1, 512], strides = [1, 1]} : vector<4x512xf32> to vector<1x512xf32>
    %273 = vector.broadcast %271 : vector<4x1xf32> to vector<4x512xf32>
    %274 = vector.broadcast %272 : vector<1x512xf32> to vector<4x512xf32>
    %275 = arith.mulf %273, %274 : vector<4x512xf32>
    %276 = arith.addf %264, %275 : vector<4x512xf32>
    %c33 = arith.constant 33 : index
    %c0_96 = arith.constant 0 : index
    %c0_97 = arith.constant 0 : index
    %277 = vector.load %arg3[%c33, %c0_96, %c0_97] : memref<36x4x1xf32, #tpu.memory_space<vmem>>, vector<1x4x1xf32>
    %278 = vector.shape_cast %277 : vector<1x4x1xf32> to vector<4x1xf32>
    %279 = vector.extract_strided_slice %269 {offsets = [1, 0], sizes = [1, 512], strides = [1, 1]} : vector<4x512xf32> to vector<1x512xf32>
    %280 = vector.broadcast %278 : vector<4x1xf32> to vector<4x512xf32>
    %281 = vector.broadcast %279 : vector<1x512xf32> to vector<4x512xf32>
    %282 = arith.mulf %280, %281 : vector<4x512xf32>
    %283 = arith.addf %276, %282 : vector<4x512xf32>
    %c34 = arith.constant 34 : index
    %c0_98 = arith.constant 0 : index
    %c0_99 = arith.constant 0 : index
    %284 = vector.load %arg3[%c34, %c0_98, %c0_99] : memref<36x4x1xf32, #tpu.memory_space<vmem>>, vector<1x4x1xf32>
    %285 = vector.shape_cast %284 : vector<1x4x1xf32> to vector<4x1xf32>
    %286 = vector.extract_strided_slice %269 {offsets = [2, 0], sizes = [1, 512], strides = [1, 1]} : vector<4x512xf32> to vector<1x512xf32>
    %287 = vector.broadcast %285 : vector<4x1xf32> to vector<4x512xf32>
    %288 = vector.broadcast %286 : vector<1x512xf32> to vector<4x512xf32>
    %289 = arith.mulf %287, %288 : vector<4x512xf32>
    %290 = arith.addf %283, %289 : vector<4x512xf32>
    %c35 = arith.constant 35 : index
    %c0_100 = arith.constant 0 : index
    %c0_101 = arith.constant 0 : index
    %291 = vector.load %arg3[%c35, %c0_100, %c0_101] : memref<36x4x1xf32, #tpu.memory_space<vmem>>, vector<1x4x1xf32>
    %292 = vector.shape_cast %291 : vector<1x4x1xf32> to vector<4x1xf32>
    %293 = vector.extract_strided_slice %269 {offsets = [3, 0], sizes = [1, 512], strides = [1, 1]} : vector<4x512xf32> to vector<1x512xf32>
    %294 = vector.broadcast %292 : vector<4x1xf32> to vector<4x512xf32>
    %295 = vector.broadcast %293 : vector<1x512xf32> to vector<4x512xf32>
    %296 = arith.mulf %294, %295 : vector<4x512xf32>
    %297 = arith.addf %290, %296 : vector<4x512xf32>
    %c0_102 = arith.constant 0 : index
    %c0_103 = arith.constant 0 : index
    %298 = vector.load %arg4[%c0_102, %c0_103] : memref<4x1xf32, #tpu.memory_space<vmem>>, vector<4x1xf32>
    %299 = vector.broadcast %298 : vector<4x1xf32> to vector<4x512xf32>
    %300 = arith.addf %297, %299 : vector<4x512xf32>
    %cst_104 = arith.constant dense<0.000000e+00> : vector<4xf32>
    %301 = vector.multi_reduction <add>, %300, %cst_104 [1] : vector<4x512xf32> to vector<4xf32>
    %302 = vector.shape_cast %301 : vector<4xf32> to vector<4x1xf32>
    %cst_105 = arith.constant 0.001953125 : f32
    %303 = vector.broadcast %cst_105 : f32 to vector<4x1xf32>
    %304 = arith.mulf %302, %303 : vector<4x1xf32>
    %305 = vector.broadcast %304 : vector<4x1xf32> to vector<4x512xf32>
    %306 = arith.subf %300, %305 : vector<4x512xf32>
    %307 = arith.mulf %306, %306 : vector<4x512xf32>
    %cst_106 = arith.constant dense<0.000000e+00> : vector<4xf32>
    %308 = vector.multi_reduction <add>, %307, %cst_106 [1] : vector<4x512xf32> to vector<4xf32>
    %309 = vector.shape_cast %308 : vector<4xf32> to vector<4x1xf32>
    %cst_107 = arith.constant 0.001953125 : f32
    %310 = vector.broadcast %cst_107 : f32 to vector<4x1xf32>
    %311 = arith.mulf %309, %310 : vector<4x1xf32>
    %c0_108 = arith.constant 0 : index
    %c0_109 = arith.constant 0 : index
    %312 = vector.load %arg5[%c0_108, %c0_109] : memref<4x1xf32, #tpu.memory_space<vmem>>, vector<4x1xf32>
    %cst_110 = arith.constant 9.99999974E-6 : f32
    %313 = vector.broadcast %cst_110 : f32 to vector<4x1xf32>
    %314 = arith.addf %311, %313 : vector<4x1xf32>
    %315 = math.rsqrt %314 : vector<4x1xf32>
    %316 = arith.mulf %312, %315 : vector<4x1xf32>
    %317 = vector.broadcast %316 : vector<4x1xf32> to vector<4x512xf32>
    %318 = arith.mulf %306, %317 : vector<4x512xf32>
    %c0_111 = arith.constant 0 : index
    %c0_112 = arith.constant 0 : index
    %319 = vector.load %arg6[%c0_111, %c0_112] : memref<4x1xf32, #tpu.memory_space<vmem>>, vector<4x1xf32>
    %320 = vector.broadcast %319 : vector<4x1xf32> to vector<4x512xf32>
    %321 = arith.addf %318, %320 : vector<4x512xf32>
    %cst_113 = arith.constant 0.000000e+00 : f32
    %322 = vector.broadcast %cst_113 : f32 to vector<4x512xf32>
    %323 = arith.maximumf %321, %322 : vector<4x512xf32>
    %cst_114 = arith.constant 0.000000e+00 : f32
    %324 = vector.broadcast %cst_114 : f32 to vector<4x512xf32>
    %c17_i32_115 = arith.constant 17 : i32
    %325 = tpu.dynamic_rotate %323 by %c17_i32_115 dim 1 : vector<4x512xf32>, i32 -> vector<4x512xf32>
    %c0_116 = arith.constant 0 : index
    %c0_117 = arith.constant 0 : index
    %c0_118 = arith.constant 0 : index
    %326 = vector.load %arg2[%c0_116, %c0_117, %c0_118] : memref<9x1x512xf32, #tpu.memory_space<vmem>>, vector<1x1x512xf32>
    %327 = vector.shape_cast %326 : vector<1x1x512xf32> to vector<1x512xf32>
    %328 = vector.broadcast %327 : vector<1x512xf32> to vector<4x512xf32>
    %329 = arith.mulf %325, %328 : vector<4x512xf32>
    %c0_119 = arith.constant 0 : index
    %c0_120 = arith.constant 0 : index
    %c0_121 = arith.constant 0 : index
    %330 = vector.load %arg7[%c0_119, %c0_120, %c0_121] : memref<36x4x1xf32, #tpu.memory_space<vmem>>, vector<1x4x1xf32>
    %331 = vector.shape_cast %330 : vector<1x4x1xf32> to vector<4x1xf32>
    %332 = vector.extract_strided_slice %329 {offsets = [0, 0], sizes = [1, 512], strides = [1, 1]} : vector<4x512xf32> to vector<1x512xf32>
    %333 = vector.broadcast %331 : vector<4x1xf32> to vector<4x512xf32>
    %334 = vector.broadcast %332 : vector<1x512xf32> to vector<4x512xf32>
    %335 = arith.mulf %333, %334 : vector<4x512xf32>
    %336 = arith.addf %324, %335 : vector<4x512xf32>
    %c1_122 = arith.constant 1 : index
    %c0_123 = arith.constant 0 : index
    %c0_124 = arith.constant 0 : index
    %337 = vector.load %arg7[%c1_122, %c0_123, %c0_124] : memref<36x4x1xf32, #tpu.memory_space<vmem>>, vector<1x4x1xf32>
    %338 = vector.shape_cast %337 : vector<1x4x1xf32> to vector<4x1xf32>
    %339 = vector.extract_strided_slice %329 {offsets = [1, 0], sizes = [1, 512], strides = [1, 1]} : vector<4x512xf32> to vector<1x512xf32>
    %340 = vector.broadcast %338 : vector<4x1xf32> to vector<4x512xf32>
    %341 = vector.broadcast %339 : vector<1x512xf32> to vector<4x512xf32>
    %342 = arith.mulf %340, %341 : vector<4x512xf32>
    %343 = arith.addf %336, %342 : vector<4x512xf32>
    %c2_125 = arith.constant 2 : index
    %c0_126 = arith.constant 0 : index
    %c0_127 = arith.constant 0 : index
    %344 = vector.load %arg7[%c2_125, %c0_126, %c0_127] : memref<36x4x1xf32, #tpu.memory_space<vmem>>, vector<1x4x1xf32>
    %345 = vector.shape_cast %344 : vector<1x4x1xf32> to vector<4x1xf32>
    %346 = vector.extract_strided_slice %329 {offsets = [2, 0], sizes = [1, 512], strides = [1, 1]} : vector<4x512xf32> to vector<1x512xf32>
    %347 = vector.broadcast %345 : vector<4x1xf32> to vector<4x512xf32>
    %348 = vector.broadcast %346 : vector<1x512xf32> to vector<4x512xf32>
    %349 = arith.mulf %347, %348 : vector<4x512xf32>
    %350 = arith.addf %343, %349 : vector<4x512xf32>
    %c3_128 = arith.constant 3 : index
    %c0_129 = arith.constant 0 : index
    %c0_130 = arith.constant 0 : index
    %351 = vector.load %arg7[%c3_128, %c0_129, %c0_130] : memref<36x4x1xf32, #tpu.memory_space<vmem>>, vector<1x4x1xf32>
    %352 = vector.shape_cast %351 : vector<1x4x1xf32> to vector<4x1xf32>
    %353 = vector.extract_strided_slice %329 {offsets = [3, 0], sizes = [1, 512], strides = [1, 1]} : vector<4x512xf32> to vector<1x512xf32>
    %354 = vector.broadcast %352 : vector<4x1xf32> to vector<4x512xf32>
    %355 = vector.broadcast %353 : vector<1x512xf32> to vector<4x512xf32>
    %356 = arith.mulf %354, %355 : vector<4x512xf32>
    %357 = arith.addf %350, %356 : vector<4x512xf32>
    %c16_i32_131 = arith.constant 16 : i32
    %358 = tpu.dynamic_rotate %323 by %c16_i32_131 dim 1 : vector<4x512xf32>, i32 -> vector<4x512xf32>
    %c1_132 = arith.constant 1 : index
    %c0_133 = arith.constant 0 : index
    %c0_134 = arith.constant 0 : index
    %359 = vector.load %arg2[%c1_132, %c0_133, %c0_134] : memref<9x1x512xf32, #tpu.memory_space<vmem>>, vector<1x1x512xf32>
    %360 = vector.shape_cast %359 : vector<1x1x512xf32> to vector<1x512xf32>
    %361 = vector.broadcast %360 : vector<1x512xf32> to vector<4x512xf32>
    %362 = arith.mulf %358, %361 : vector<4x512xf32>
    %c4_135 = arith.constant 4 : index
    %c0_136 = arith.constant 0 : index
    %c0_137 = arith.constant 0 : index
    %363 = vector.load %arg7[%c4_135, %c0_136, %c0_137] : memref<36x4x1xf32, #tpu.memory_space<vmem>>, vector<1x4x1xf32>
    %364 = vector.shape_cast %363 : vector<1x4x1xf32> to vector<4x1xf32>
    %365 = vector.extract_strided_slice %362 {offsets = [0, 0], sizes = [1, 512], strides = [1, 1]} : vector<4x512xf32> to vector<1x512xf32>
    %366 = vector.broadcast %364 : vector<4x1xf32> to vector<4x512xf32>
    %367 = vector.broadcast %365 : vector<1x512xf32> to vector<4x512xf32>
    %368 = arith.mulf %366, %367 : vector<4x512xf32>
    %369 = arith.addf %357, %368 : vector<4x512xf32>
    %c5_138 = arith.constant 5 : index
    %c0_139 = arith.constant 0 : index
    %c0_140 = arith.constant 0 : index
    %370 = vector.load %arg7[%c5_138, %c0_139, %c0_140] : memref<36x4x1xf32, #tpu.memory_space<vmem>>, vector<1x4x1xf32>
    %371 = vector.shape_cast %370 : vector<1x4x1xf32> to vector<4x1xf32>
    %372 = vector.extract_strided_slice %362 {offsets = [1, 0], sizes = [1, 512], strides = [1, 1]} : vector<4x512xf32> to vector<1x512xf32>
    %373 = vector.broadcast %371 : vector<4x1xf32> to vector<4x512xf32>
    %374 = vector.broadcast %372 : vector<1x512xf32> to vector<4x512xf32>
    %375 = arith.mulf %373, %374 : vector<4x512xf32>
    %376 = arith.addf %369, %375 : vector<4x512xf32>
    %c6_141 = arith.constant 6 : index
    %c0_142 = arith.constant 0 : index
    %c0_143 = arith.constant 0 : index
    %377 = vector.load %arg7[%c6_141, %c0_142, %c0_143] : memref<36x4x1xf32, #tpu.memory_space<vmem>>, vector<1x4x1xf32>
    %378 = vector.shape_cast %377 : vector<1x4x1xf32> to vector<4x1xf32>
    %379 = vector.extract_strided_slice %362 {offsets = [2, 0], sizes = [1, 512], strides = [1, 1]} : vector<4x512xf32> to vector<1x512xf32>
    %380 = vector.broadcast %378 : vector<4x1xf32> to vector<4x512xf32>
    %381 = vector.broadcast %379 : vector<1x512xf32> to vector<4x512xf32>
    %382 = arith.mulf %380, %381 : vector<4x512xf32>
    %383 = arith.addf %376, %382 : vector<4x512xf32>
    %c7_144 = arith.constant 7 : index
    %c0_145 = arith.constant 0 : index
    %c0_146 = arith.constant 0 : index
    %384 = vector.load %arg7[%c7_144, %c0_145, %c0_146] : memref<36x4x1xf32, #tpu.memory_space<vmem>>, vector<1x4x1xf32>
    %385 = vector.shape_cast %384 : vector<1x4x1xf32> to vector<4x1xf32>
    %386 = vector.extract_strided_slice %362 {offsets = [3, 0], sizes = [1, 512], strides = [1, 1]} : vector<4x512xf32> to vector<1x512xf32>
    %387 = vector.broadcast %385 : vector<4x1xf32> to vector<4x512xf32>
    %388 = vector.broadcast %386 : vector<1x512xf32> to vector<4x512xf32>
    %389 = arith.mulf %387, %388 : vector<4x512xf32>
    %390 = arith.addf %383, %389 : vector<4x512xf32>
    %c15_i32_147 = arith.constant 15 : i32
    %391 = tpu.dynamic_rotate %323 by %c15_i32_147 dim 1 : vector<4x512xf32>, i32 -> vector<4x512xf32>
    %c2_148 = arith.constant 2 : index
    %c0_149 = arith.constant 0 : index
    %c0_150 = arith.constant 0 : index
    %392 = vector.load %arg2[%c2_148, %c0_149, %c0_150] : memref<9x1x512xf32, #tpu.memory_space<vmem>>, vector<1x1x512xf32>
    %393 = vector.shape_cast %392 : vector<1x1x512xf32> to vector<1x512xf32>
    %394 = vector.broadcast %393 : vector<1x512xf32> to vector<4x512xf32>
    %395 = arith.mulf %391, %394 : vector<4x512xf32>
    %c8_151 = arith.constant 8 : index
    %c0_152 = arith.constant 0 : index
    %c0_153 = arith.constant 0 : index
    %396 = vector.load %arg7[%c8_151, %c0_152, %c0_153] : memref<36x4x1xf32, #tpu.memory_space<vmem>>, vector<1x4x1xf32>
    %397 = vector.shape_cast %396 : vector<1x4x1xf32> to vector<4x1xf32>
    %398 = vector.extract_strided_slice %395 {offsets = [0, 0], sizes = [1, 512], strides = [1, 1]} : vector<4x512xf32> to vector<1x512xf32>
    %399 = vector.broadcast %397 : vector<4x1xf32> to vector<4x512xf32>
    %400 = vector.broadcast %398 : vector<1x512xf32> to vector<4x512xf32>
    %401 = arith.mulf %399, %400 : vector<4x512xf32>
    %402 = arith.addf %390, %401 : vector<4x512xf32>
    %c9_154 = arith.constant 9 : index
    %c0_155 = arith.constant 0 : index
    %c0_156 = arith.constant 0 : index
    %403 = vector.load %arg7[%c9_154, %c0_155, %c0_156] : memref<36x4x1xf32, #tpu.memory_space<vmem>>, vector<1x4x1xf32>
    %404 = vector.shape_cast %403 : vector<1x4x1xf32> to vector<4x1xf32>
    %405 = vector.extract_strided_slice %395 {offsets = [1, 0], sizes = [1, 512], strides = [1, 1]} : vector<4x512xf32> to vector<1x512xf32>
    %406 = vector.broadcast %404 : vector<4x1xf32> to vector<4x512xf32>
    %407 = vector.broadcast %405 : vector<1x512xf32> to vector<4x512xf32>
    %408 = arith.mulf %406, %407 : vector<4x512xf32>
    %409 = arith.addf %402, %408 : vector<4x512xf32>
    %c10_157 = arith.constant 10 : index
    %c0_158 = arith.constant 0 : index
    %c0_159 = arith.constant 0 : index
    %410 = vector.load %arg7[%c10_157, %c0_158, %c0_159] : memref<36x4x1xf32, #tpu.memory_space<vmem>>, vector<1x4x1xf32>
    %411 = vector.shape_cast %410 : vector<1x4x1xf32> to vector<4x1xf32>
    %412 = vector.extract_strided_slice %395 {offsets = [2, 0], sizes = [1, 512], strides = [1, 1]} : vector<4x512xf32> to vector<1x512xf32>
    %413 = vector.broadcast %411 : vector<4x1xf32> to vector<4x512xf32>
    %414 = vector.broadcast %412 : vector<1x512xf32> to vector<4x512xf32>
    %415 = arith.mulf %413, %414 : vector<4x512xf32>
    %416 = arith.addf %409, %415 : vector<4x512xf32>
    %c11_160 = arith.constant 11 : index
    %c0_161 = arith.constant 0 : index
    %c0_162 = arith.constant 0 : index
    %417 = vector.load %arg7[%c11_160, %c0_161, %c0_162] : memref<36x4x1xf32, #tpu.memory_space<vmem>>, vector<1x4x1xf32>
    %418 = vector.shape_cast %417 : vector<1x4x1xf32> to vector<4x1xf32>
    %419 = vector.extract_strided_slice %395 {offsets = [3, 0], sizes = [1, 512], strides = [1, 1]} : vector<4x512xf32> to vector<1x512xf32>
    %420 = vector.broadcast %418 : vector<4x1xf32> to vector<4x512xf32>
    %421 = vector.broadcast %419 : vector<1x512xf32> to vector<4x512xf32>
    %422 = arith.mulf %420, %421 : vector<4x512xf32>
    %423 = arith.addf %416, %422 : vector<4x512xf32>
    %c1_i32_163 = arith.constant 1 : i32
    %424 = tpu.dynamic_rotate %323 by %c1_i32_163 dim 1 : vector<4x512xf32>, i32 -> vector<4x512xf32>
    %c3_164 = arith.constant 3 : index
    %c0_165 = arith.constant 0 : index
    %c0_166 = arith.constant 0 : index
    %425 = vector.load %arg2[%c3_164, %c0_165, %c0_166] : memref<9x1x512xf32, #tpu.memory_space<vmem>>, vector<1x1x512xf32>
    %426 = vector.shape_cast %425 : vector<1x1x512xf32> to vector<1x512xf32>
    %427 = vector.broadcast %426 : vector<1x512xf32> to vector<4x512xf32>
    %428 = arith.mulf %424, %427 : vector<4x512xf32>
    %c12_167 = arith.constant 12 : index
    %c0_168 = arith.constant 0 : index
    %c0_169 = arith.constant 0 : index
    %429 = vector.load %arg7[%c12_167, %c0_168, %c0_169] : memref<36x4x1xf32, #tpu.memory_space<vmem>>, vector<1x4x1xf32>
    %430 = vector.shape_cast %429 : vector<1x4x1xf32> to vector<4x1xf32>
    %431 = vector.extract_strided_slice %428 {offsets = [0, 0], sizes = [1, 512], strides = [1, 1]} : vector<4x512xf32> to vector<1x512xf32>
    %432 = vector.broadcast %430 : vector<4x1xf32> to vector<4x512xf32>
    %433 = vector.broadcast %431 : vector<1x512xf32> to vector<4x512xf32>
    %434 = arith.mulf %432, %433 : vector<4x512xf32>
    %435 = arith.addf %423, %434 : vector<4x512xf32>
    %c13_170 = arith.constant 13 : index
    %c0_171 = arith.constant 0 : index
    %c0_172 = arith.constant 0 : index
    %436 = vector.load %arg7[%c13_170, %c0_171, %c0_172] : memref<36x4x1xf32, #tpu.memory_space<vmem>>, vector<1x4x1xf32>
    %437 = vector.shape_cast %436 : vector<1x4x1xf32> to vector<4x1xf32>
    %438 = vector.extract_strided_slice %428 {offsets = [1, 0], sizes = [1, 512], strides = [1, 1]} : vector<4x512xf32> to vector<1x512xf32>
    %439 = vector.broadcast %437 : vector<4x1xf32> to vector<4x512xf32>
    %440 = vector.broadcast %438 : vector<1x512xf32> to vector<4x512xf32>
    %441 = arith.mulf %439, %440 : vector<4x512xf32>
    %442 = arith.addf %435, %441 : vector<4x512xf32>
    %c14_173 = arith.constant 14 : index
    %c0_174 = arith.constant 0 : index
    %c0_175 = arith.constant 0 : index
    %443 = vector.load %arg7[%c14_173, %c0_174, %c0_175] : memref<36x4x1xf32, #tpu.memory_space<vmem>>, vector<1x4x1xf32>
    %444 = vector.shape_cast %443 : vector<1x4x1xf32> to vector<4x1xf32>
    %445 = vector.extract_strided_slice %428 {offsets = [2, 0], sizes = [1, 512], strides = [1, 1]} : vector<4x512xf32> to vector<1x512xf32>
    %446 = vector.broadcast %444 : vector<4x1xf32> to vector<4x512xf32>
    %447 = vector.broadcast %445 : vector<1x512xf32> to vector<4x512xf32>
    %448 = arith.mulf %446, %447 : vector<4x512xf32>
    %449 = arith.addf %442, %448 : vector<4x512xf32>
    %c15_176 = arith.constant 15 : index
    %c0_177 = arith.constant 0 : index
    %c0_178 = arith.constant 0 : index
    %450 = vector.load %arg7[%c15_176, %c0_177, %c0_178] : memref<36x4x1xf32, #tpu.memory_space<vmem>>, vector<1x4x1xf32>
    %451 = vector.shape_cast %450 : vector<1x4x1xf32> to vector<4x1xf32>
    %452 = vector.extract_strided_slice %428 {offsets = [3, 0], sizes = [1, 512], strides = [1, 1]} : vector<4x512xf32> to vector<1x512xf32>
    %453 = vector.broadcast %451 : vector<4x1xf32> to vector<4x512xf32>
    %454 = vector.broadcast %452 : vector<1x512xf32> to vector<4x512xf32>
    %455 = arith.mulf %453, %454 : vector<4x512xf32>
    %456 = arith.addf %449, %455 : vector<4x512xf32>
    %c16_179 = arith.constant 16 : index
    %c0_180 = arith.constant 0 : index
    %c0_181 = arith.constant 0 : index
    %457 = vector.load %arg7[%c16_179, %c0_180, %c0_181] : memref<36x4x1xf32, #tpu.memory_space<vmem>>, vector<1x4x1xf32>
    %458 = vector.shape_cast %457 : vector<1x4x1xf32> to vector<4x1xf32>
    %459 = vector.extract_strided_slice %323 {offsets = [0, 0], sizes = [1, 512], strides = [1, 1]} : vector<4x512xf32> to vector<1x512xf32>
    %460 = vector.broadcast %458 : vector<4x1xf32> to vector<4x512xf32>
    %461 = vector.broadcast %459 : vector<1x512xf32> to vector<4x512xf32>
    %462 = arith.mulf %460, %461 : vector<4x512xf32>
    %463 = arith.addf %456, %462 : vector<4x512xf32>
    %c17_182 = arith.constant 17 : index
    %c0_183 = arith.constant 0 : index
    %c0_184 = arith.constant 0 : index
    %464 = vector.load %arg7[%c17_182, %c0_183, %c0_184] : memref<36x4x1xf32, #tpu.memory_space<vmem>>, vector<1x4x1xf32>
    %465 = vector.shape_cast %464 : vector<1x4x1xf32> to vector<4x1xf32>
    %466 = vector.extract_strided_slice %323 {offsets = [1, 0], sizes = [1, 512], strides = [1, 1]} : vector<4x512xf32> to vector<1x512xf32>
    %467 = vector.broadcast %465 : vector<4x1xf32> to vector<4x512xf32>
    %468 = vector.broadcast %466 : vector<1x512xf32> to vector<4x512xf32>
    %469 = arith.mulf %467, %468 : vector<4x512xf32>
    %470 = arith.addf %463, %469 : vector<4x512xf32>
    %c18_185 = arith.constant 18 : index
    %c0_186 = arith.constant 0 : index
    %c0_187 = arith.constant 0 : index
    %471 = vector.load %arg7[%c18_185, %c0_186, %c0_187] : memref<36x4x1xf32, #tpu.memory_space<vmem>>, vector<1x4x1xf32>
    %472 = vector.shape_cast %471 : vector<1x4x1xf32> to vector<4x1xf32>
    %473 = vector.extract_strided_slice %323 {offsets = [2, 0], sizes = [1, 512], strides = [1, 1]} : vector<4x512xf32> to vector<1x512xf32>
    %474 = vector.broadcast %472 : vector<4x1xf32> to vector<4x512xf32>
    %475 = vector.broadcast %473 : vector<1x512xf32> to vector<4x512xf32>
    %476 = arith.mulf %474, %475 : vector<4x512xf32>
    %477 = arith.addf %470, %476 : vector<4x512xf32>
    %c19_188 = arith.constant 19 : index
    %c0_189 = arith.constant 0 : index
    %c0_190 = arith.constant 0 : index
    %478 = vector.load %arg7[%c19_188, %c0_189, %c0_190] : memref<36x4x1xf32, #tpu.memory_space<vmem>>, vector<1x4x1xf32>
    %479 = vector.shape_cast %478 : vector<1x4x1xf32> to vector<4x1xf32>
    %480 = vector.extract_strided_slice %323 {offsets = [3, 0], sizes = [1, 512], strides = [1, 1]} : vector<4x512xf32> to vector<1x512xf32>
    %481 = vector.broadcast %479 : vector<4x1xf32> to vector<4x512xf32>
    %482 = vector.broadcast %480 : vector<1x512xf32> to vector<4x512xf32>
    %483 = arith.mulf %481, %482 : vector<4x512xf32>
    %484 = arith.addf %477, %483 : vector<4x512xf32>
    %c511_i32_191 = arith.constant 511 : i32
    %485 = tpu.dynamic_rotate %323 by %c511_i32_191 dim 1 : vector<4x512xf32>, i32 -> vector<4x512xf32>
    %c5_192 = arith.constant 5 : index
    %c0_193 = arith.constant 0 : index
    %c0_194 = arith.constant 0 : index
    %486 = vector.load %arg2[%c5_192, %c0_193, %c0_194] : memref<9x1x512xf32, #tpu.memory_space<vmem>>, vector<1x1x512xf32>
    %487 = vector.shape_cast %486 : vector<1x1x512xf32> to vector<1x512xf32>
    %488 = vector.broadcast %487 : vector<1x512xf32> to vector<4x512xf32>
    %489 = arith.mulf %485, %488 : vector<4x512xf32>
    %c20_195 = arith.constant 20 : index
    %c0_196 = arith.constant 0 : index
    %c0_197 = arith.constant 0 : index
    %490 = vector.load %arg7[%c20_195, %c0_196, %c0_197] : memref<36x4x1xf32, #tpu.memory_space<vmem>>, vector<1x4x1xf32>
    %491 = vector.shape_cast %490 : vector<1x4x1xf32> to vector<4x1xf32>
    %492 = vector.extract_strided_slice %489 {offsets = [0, 0], sizes = [1, 512], strides = [1, 1]} : vector<4x512xf32> to vector<1x512xf32>
    %493 = vector.broadcast %491 : vector<4x1xf32> to vector<4x512xf32>
    %494 = vector.broadcast %492 : vector<1x512xf32> to vector<4x512xf32>
    %495 = arith.mulf %493, %494 : vector<4x512xf32>
    %496 = arith.addf %484, %495 : vector<4x512xf32>
    %c21_198 = arith.constant 21 : index
    %c0_199 = arith.constant 0 : index
    %c0_200 = arith.constant 0 : index
    %497 = vector.load %arg7[%c21_198, %c0_199, %c0_200] : memref<36x4x1xf32, #tpu.memory_space<vmem>>, vector<1x4x1xf32>
    %498 = vector.shape_cast %497 : vector<1x4x1xf32> to vector<4x1xf32>
    %499 = vector.extract_strided_slice %489 {offsets = [1, 0], sizes = [1, 512], strides = [1, 1]} : vector<4x512xf32> to vector<1x512xf32>
    %500 = vector.broadcast %498 : vector<4x1xf32> to vector<4x512xf32>
    %501 = vector.broadcast %499 : vector<1x512xf32> to vector<4x512xf32>
    %502 = arith.mulf %500, %501 : vector<4x512xf32>
    %503 = arith.addf %496, %502 : vector<4x512xf32>
    %c22_201 = arith.constant 22 : index
    %c0_202 = arith.constant 0 : index
    %c0_203 = arith.constant 0 : index
    %504 = vector.load %arg7[%c22_201, %c0_202, %c0_203] : memref<36x4x1xf32, #tpu.memory_space<vmem>>, vector<1x4x1xf32>
    %505 = vector.shape_cast %504 : vector<1x4x1xf32> to vector<4x1xf32>
    %506 = vector.extract_strided_slice %489 {offsets = [2, 0], sizes = [1, 512], strides = [1, 1]} : vector<4x512xf32> to vector<1x512xf32>
    %507 = vector.broadcast %505 : vector<4x1xf32> to vector<4x512xf32>
    %508 = vector.broadcast %506 : vector<1x512xf32> to vector<4x512xf32>
    %509 = arith.mulf %507, %508 : vector<4x512xf32>
    %510 = arith.addf %503, %509 : vector<4x512xf32>
    %c23_204 = arith.constant 23 : index
    %c0_205 = arith.constant 0 : index
    %c0_206 = arith.constant 0 : index
    %511 = vector.load %arg7[%c23_204, %c0_205, %c0_206] : memref<36x4x1xf32, #tpu.memory_space<vmem>>, vector<1x4x1xf32>
    %512 = vector.shape_cast %511 : vector<1x4x1xf32> to vector<4x1xf32>
    %513 = vector.extract_strided_slice %489 {offsets = [3, 0], sizes = [1, 512], strides = [1, 1]} : vector<4x512xf32> to vector<1x512xf32>
    %514 = vector.broadcast %512 : vector<4x1xf32> to vector<4x512xf32>
    %515 = vector.broadcast %513 : vector<1x512xf32> to vector<4x512xf32>
    %516 = arith.mulf %514, %515 : vector<4x512xf32>
    %517 = arith.addf %510, %516 : vector<4x512xf32>
    %c497_i32_207 = arith.constant 497 : i32
    %518 = tpu.dynamic_rotate %323 by %c497_i32_207 dim 1 : vector<4x512xf32>, i32 -> vector<4x512xf32>
    %c6_208 = arith.constant 6 : index
    %c0_209 = arith.constant 0 : index
    %c0_210 = arith.constant 0 : index
    %519 = vector.load %arg2[%c6_208, %c0_209, %c0_210] : memref<9x1x512xf32, #tpu.memory_space<vmem>>, vector<1x1x512xf32>
    %520 = vector.shape_cast %519 : vector<1x1x512xf32> to vector<1x512xf32>
    %521 = vector.broadcast %520 : vector<1x512xf32> to vector<4x512xf32>
    %522 = arith.mulf %518, %521 : vector<4x512xf32>
    %c24_211 = arith.constant 24 : index
    %c0_212 = arith.constant 0 : index
    %c0_213 = arith.constant 0 : index
    %523 = vector.load %arg7[%c24_211, %c0_212, %c0_213] : memref<36x4x1xf32, #tpu.memory_space<vmem>>, vector<1x4x1xf32>
    %524 = vector.shape_cast %523 : vector<1x4x1xf32> to vector<4x1xf32>
    %525 = vector.extract_strided_slice %522 {offsets = [0, 0], sizes = [1, 512], strides = [1, 1]} : vector<4x512xf32> to vector<1x512xf32>
    %526 = vector.broadcast %524 : vector<4x1xf32> to vector<4x512xf32>
    %527 = vector.broadcast %525 : vector<1x512xf32> to vector<4x512xf32>
    %528 = arith.mulf %526, %527 : vector<4x512xf32>
    %529 = arith.addf %517, %528 : vector<4x512xf32>
    %c25_214 = arith.constant 25 : index
    %c0_215 = arith.constant 0 : index
    %c0_216 = arith.constant 0 : index
    %530 = vector.load %arg7[%c25_214, %c0_215, %c0_216] : memref<36x4x1xf32, #tpu.memory_space<vmem>>, vector<1x4x1xf32>
    %531 = vector.shape_cast %530 : vector<1x4x1xf32> to vector<4x1xf32>
    %532 = vector.extract_strided_slice %522 {offsets = [1, 0], sizes = [1, 512], strides = [1, 1]} : vector<4x512xf32> to vector<1x512xf32>
    %533 = vector.broadcast %531 : vector<4x1xf32> to vector<4x512xf32>
    %534 = vector.broadcast %532 : vector<1x512xf32> to vector<4x512xf32>
    %535 = arith.mulf %533, %534 : vector<4x512xf32>
    %536 = arith.addf %529, %535 : vector<4x512xf32>
    %c26_217 = arith.constant 26 : index
    %c0_218 = arith.constant 0 : index
    %c0_219 = arith.constant 0 : index
    %537 = vector.load %arg7[%c26_217, %c0_218, %c0_219] : memref<36x4x1xf32, #tpu.memory_space<vmem>>, vector<1x4x1xf32>
    %538 = vector.shape_cast %537 : vector<1x4x1xf32> to vector<4x1xf32>
    %539 = vector.extract_strided_slice %522 {offsets = [2, 0], sizes = [1, 512], strides = [1, 1]} : vector<4x512xf32> to vector<1x512xf32>
    %540 = vector.broadcast %538 : vector<4x1xf32> to vector<4x512xf32>
    %541 = vector.broadcast %539 : vector<1x512xf32> to vector<4x512xf32>
    %542 = arith.mulf %540, %541 : vector<4x512xf32>
    %543 = arith.addf %536, %542 : vector<4x512xf32>
    %c27_220 = arith.constant 27 : index
    %c0_221 = arith.constant 0 : index
    %c0_222 = arith.constant 0 : index
    %544 = vector.load %arg7[%c27_220, %c0_221, %c0_222] : memref<36x4x1xf32, #tpu.memory_space<vmem>>, vector<1x4x1xf32>
    %545 = vector.shape_cast %544 : vector<1x4x1xf32> to vector<4x1xf32>
    %546 = vector.extract_strided_slice %522 {offsets = [3, 0], sizes = [1, 512], strides = [1, 1]} : vector<4x512xf32> to vector<1x512xf32>
    %547 = vector.broadcast %545 : vector<4x1xf32> to vector<4x512xf32>
    %548 = vector.broadcast %546 : vector<1x512xf32> to vector<4x512xf32>
    %549 = arith.mulf %547, %548 : vector<4x512xf32>
    %550 = arith.addf %543, %549 : vector<4x512xf32>
    %c496_i32_223 = arith.constant 496 : i32
    %551 = tpu.dynamic_rotate %323 by %c496_i32_223 dim 1 : vector<4x512xf32>, i32 -> vector<4x512xf32>
    %c7_224 = arith.constant 7 : index
    %c0_225 = arith.constant 0 : index
    %c0_226 = arith.constant 0 : index
    %552 = vector.load %arg2[%c7_224, %c0_225, %c0_226] : memref<9x1x512xf32, #tpu.memory_space<vmem>>, vector<1x1x512xf32>
    %553 = vector.shape_cast %552 : vector<1x1x512xf32> to vector<1x512xf32>
    %554 = vector.broadcast %553 : vector<1x512xf32> to vector<4x512xf32>
    %555 = arith.mulf %551, %554 : vector<4x512xf32>
    %c28_227 = arith.constant 28 : index
    %c0_228 = arith.constant 0 : index
    %c0_229 = arith.constant 0 : index
    %556 = vector.load %arg7[%c28_227, %c0_228, %c0_229] : memref<36x4x1xf32, #tpu.memory_space<vmem>>, vector<1x4x1xf32>
    %557 = vector.shape_cast %556 : vector<1x4x1xf32> to vector<4x1xf32>
    %558 = vector.extract_strided_slice %555 {offsets = [0, 0], sizes = [1, 512], strides = [1, 1]} : vector<4x512xf32> to vector<1x512xf32>
    %559 = vector.broadcast %557 : vector<4x1xf32> to vector<4x512xf32>
    %560 = vector.broadcast %558 : vector<1x512xf32> to vector<4x512xf32>
    %561 = arith.mulf %559, %560 : vector<4x512xf32>
    %562 = arith.addf %550, %561 : vector<4x512xf32>
    %c29_230 = arith.constant 29 : index
    %c0_231 = arith.constant 0 : index
    %c0_232 = arith.constant 0 : index
    %563 = vector.load %arg7[%c29_230, %c0_231, %c0_232] : memref<36x4x1xf32, #tpu.memory_space<vmem>>, vector<1x4x1xf32>
    %564 = vector.shape_cast %563 : vector<1x4x1xf32> to vector<4x1xf32>
    %565 = vector.extract_strided_slice %555 {offsets = [1, 0], sizes = [1, 512], strides = [1, 1]} : vector<4x512xf32> to vector<1x512xf32>
    %566 = vector.broadcast %564 : vector<4x1xf32> to vector<4x512xf32>
    %567 = vector.broadcast %565 : vector<1x512xf32> to vector<4x512xf32>
    %568 = arith.mulf %566, %567 : vector<4x512xf32>
    %569 = arith.addf %562, %568 : vector<4x512xf32>
    %c30_233 = arith.constant 30 : index
    %c0_234 = arith.constant 0 : index
    %c0_235 = arith.constant 0 : index
    %570 = vector.load %arg7[%c30_233, %c0_234, %c0_235] : memref<36x4x1xf32, #tpu.memory_space<vmem>>, vector<1x4x1xf32>
    %571 = vector.shape_cast %570 : vector<1x4x1xf32> to vector<4x1xf32>
    %572 = vector.extract_strided_slice %555 {offsets = [2, 0], sizes = [1, 512], strides = [1, 1]} : vector<4x512xf32> to vector<1x512xf32>
    %573 = vector.broadcast %571 : vector<4x1xf32> to vector<4x512xf32>
    %574 = vector.broadcast %572 : vector<1x512xf32> to vector<4x512xf32>
    %575 = arith.mulf %573, %574 : vector<4x512xf32>
    %576 = arith.addf %569, %575 : vector<4x512xf32>
    %c31_236 = arith.constant 31 : index
    %c0_237 = arith.constant 0 : index
    %c0_238 = arith.constant 0 : index
    %577 = vector.load %arg7[%c31_236, %c0_237, %c0_238] : memref<36x4x1xf32, #tpu.memory_space<vmem>>, vector<1x4x1xf32>
    %578 = vector.shape_cast %577 : vector<1x4x1xf32> to vector<4x1xf32>
    %579 = vector.extract_strided_slice %555 {offsets = [3, 0], sizes = [1, 512], strides = [1, 1]} : vector<4x512xf32> to vector<1x512xf32>
    %580 = vector.broadcast %578 : vector<4x1xf32> to vector<4x512xf32>
    %581 = vector.broadcast %579 : vector<1x512xf32> to vector<4x512xf32>
    %582 = arith.mulf %580, %581 : vector<4x512xf32>
    %583 = arith.addf %576, %582 : vector<4x512xf32>
    %c495_i32_239 = arith.constant 495 : i32
    %584 = tpu.dynamic_rotate %323 by %c495_i32_239 dim 1 : vector<4x512xf32>, i32 -> vector<4x512xf32>
    %c8_240 = arith.constant 8 : index
    %c0_241 = arith.constant 0 : index
    %c0_242 = arith.constant 0 : index
    %585 = vector.load %arg2[%c8_240, %c0_241, %c0_242] : memref<9x1x512xf32, #tpu.memory_space<vmem>>, vector<1x1x512xf32>
    %586 = vector.shape_cast %585 : vector<1x1x512xf32> to vector<1x512xf32>
    %587 = vector.broadcast %586 : vector<1x512xf32> to vector<4x512xf32>
    %588 = arith.mulf %584, %587 : vector<4x512xf32>
    %c32_243 = arith.constant 32 : index
    %c0_244 = arith.constant 0 : index
    %c0_245 = arith.constant 0 : index
    %589 = vector.load %arg7[%c32_243, %c0_244, %c0_245] : memref<36x4x1xf32, #tpu.memory_space<vmem>>, vector<1x4x1xf32>
    %590 = vector.shape_cast %589 : vector<1x4x1xf32> to vector<4x1xf32>
    %591 = vector.extract_strided_slice %588 {offsets = [0, 0], sizes = [1, 512], strides = [1, 1]} : vector<4x512xf32> to vector<1x512xf32>
    %592 = vector.broadcast %590 : vector<4x1xf32> to vector<4x512xf32>
    %593 = vector.broadcast %591 : vector<1x512xf32> to vector<4x512xf32>
    %594 = arith.mulf %592, %593 : vector<4x512xf32>
    %595 = arith.addf %583, %594 : vector<4x512xf32>
    %c33_246 = arith.constant 33 : index
    %c0_247 = arith.constant 0 : index
    %c0_248 = arith.constant 0 : index
    %596 = vector.load %arg7[%c33_246, %c0_247, %c0_248] : memref<36x4x1xf32, #tpu.memory_space<vmem>>, vector<1x4x1xf32>
    %597 = vector.shape_cast %596 : vector<1x4x1xf32> to vector<4x1xf32>
    %598 = vector.extract_strided_slice %588 {offsets = [1, 0], sizes = [1, 512], strides = [1, 1]} : vector<4x512xf32> to vector<1x512xf32>
    %599 = vector.broadcast %597 : vector<4x1xf32> to vector<4x512xf32>
    %600 = vector.broadcast %598 : vector<1x512xf32> to vector<4x512xf32>
    %601 = arith.mulf %599, %600 : vector<4x512xf32>
    %602 = arith.addf %595, %601 : vector<4x512xf32>
    %c34_249 = arith.constant 34 : index
    %c0_250 = arith.constant 0 : index
    %c0_251 = arith.constant 0 : index
    %603 = vector.load %arg7[%c34_249, %c0_250, %c0_251] : memref<36x4x1xf32, #tpu.memory_space<vmem>>, vector<1x4x1xf32>
    %604 = vector.shape_cast %603 : vector<1x4x1xf32> to vector<4x1xf32>
    %605 = vector.extract_strided_slice %588 {offsets = [2, 0], sizes = [1, 512], strides = [1, 1]} : vector<4x512xf32> to vector<1x512xf32>
    %606 = vector.broadcast %604 : vector<4x1xf32> to vector<4x512xf32>
    %607 = vector.broadcast %605 : vector<1x512xf32> to vector<4x512xf32>
    %608 = arith.mulf %606, %607 : vector<4x512xf32>
    %609 = arith.addf %602, %608 : vector<4x512xf32>
    %c35_252 = arith.constant 35 : index
    %c0_253 = arith.constant 0 : index
    %c0_254 = arith.constant 0 : index
    %610 = vector.load %arg7[%c35_252, %c0_253, %c0_254] : memref<36x4x1xf32, #tpu.memory_space<vmem>>, vector<1x4x1xf32>
    %611 = vector.shape_cast %610 : vector<1x4x1xf32> to vector<4x1xf32>
    %612 = vector.extract_strided_slice %588 {offsets = [3, 0], sizes = [1, 512], strides = [1, 1]} : vector<4x512xf32> to vector<1x512xf32>
    %613 = vector.broadcast %611 : vector<4x1xf32> to vector<4x512xf32>
    %614 = vector.broadcast %612 : vector<1x512xf32> to vector<4x512xf32>
    %615 = arith.mulf %613, %614 : vector<4x512xf32>
    %616 = arith.addf %609, %615 : vector<4x512xf32>
    %c0_255 = arith.constant 0 : index
    %c0_256 = arith.constant 0 : index
    %617 = vector.load %arg8[%c0_255, %c0_256] : memref<4x1xf32, #tpu.memory_space<vmem>>, vector<4x1xf32>
    %618 = vector.broadcast %617 : vector<4x1xf32> to vector<4x512xf32>
    %619 = arith.addf %616, %618 : vector<4x512xf32>
    %cst_257 = arith.constant dense<0.000000e+00> : vector<4xf32>
    %620 = vector.multi_reduction <add>, %619, %cst_257 [1] : vector<4x512xf32> to vector<4xf32>
    %621 = vector.shape_cast %620 : vector<4xf32> to vector<4x1xf32>
    %cst_258 = arith.constant 0.001953125 : f32
    %622 = vector.broadcast %cst_258 : f32 to vector<4x1xf32>
    %623 = arith.mulf %621, %622 : vector<4x1xf32>
    %624 = vector.broadcast %623 : vector<4x1xf32> to vector<4x512xf32>
    %625 = arith.subf %619, %624 : vector<4x512xf32>
    %626 = arith.mulf %625, %625 : vector<4x512xf32>
    %cst_259 = arith.constant dense<0.000000e+00> : vector<4xf32>
    %627 = vector.multi_reduction <add>, %626, %cst_259 [1] : vector<4x512xf32> to vector<4xf32>
    %628 = vector.shape_cast %627 : vector<4xf32> to vector<4x1xf32>
    %cst_260 = arith.constant 0.001953125 : f32
    %629 = vector.broadcast %cst_260 : f32 to vector<4x1xf32>
    %630 = arith.mulf %628, %629 : vector<4x1xf32>
    %c0_261 = arith.constant 0 : index
    %c0_262 = arith.constant 0 : index
    %631 = vector.load %arg9[%c0_261, %c0_262] : memref<4x1xf32, #tpu.memory_space<vmem>>, vector<4x1xf32>
    %cst_263 = arith.constant 9.99999974E-6 : f32
    %632 = vector.broadcast %cst_263 : f32 to vector<4x1xf32>
    %633 = arith.addf %630, %632 : vector<4x1xf32>
    %634 = math.rsqrt %633 : vector<4x1xf32>
    %635 = arith.mulf %631, %634 : vector<4x1xf32>
    %636 = vector.broadcast %635 : vector<4x1xf32> to vector<4x512xf32>
    %637 = arith.mulf %625, %636 : vector<4x512xf32>
    %c0_264 = arith.constant 0 : index
    %c0_265 = arith.constant 0 : index
    %638 = vector.load %arg10[%c0_264, %c0_265] : memref<4x1xf32, #tpu.memory_space<vmem>>, vector<4x1xf32>
    %639 = vector.broadcast %638 : vector<4x1xf32> to vector<4x512xf32>
    %640 = arith.addf %637, %639 : vector<4x512xf32>
    %641 = arith.addf %640, %4 : vector<4x512xf32>
    %cst_266 = arith.constant 0.000000e+00 : f32
    %642 = vector.broadcast %cst_266 : f32 to vector<4x512xf32>
    %643 = arith.maximumf %641, %642 : vector<4x512xf32>
    %644 = vector.extract_strided_slice %643 {offsets = [0, 0], sizes = [4, 256], strides = [1, 1]} : vector<4x512xf32> to vector<4x256xf32>
    %c0_267 = arith.constant 0 : index
    %c0_268 = arith.constant 0 : index
    %c0_269 = arith.constant 0 : index
    %645 = vector.load %arg11[%c0_267, %c0_268, %c0_269] : memref<2x4x256xf32, #tpu.memory_space<vmem>>, vector<1x4x256xf32>
    %646 = vector.shape_cast %645 : vector<1x4x256xf32> to vector<4x256xf32>
    %647 = vector.shape_cast %644 : vector<4x256xf32> to vector<1x4x256xf32>
    tpu.vector_store %arg11[%c0_267, %c0_268, %c0_269], %647 {strides = array<i32>} : memref<2x4x256xf32, #tpu.memory_space<vmem>>, vector<1x4x256xf32>,
    %648 = vector.extract_strided_slice %643 {offsets = [0, 256], sizes = [4, 256], strides = [1, 1]} : vector<4x512xf32> to vector<4x256xf32>
    %c1_270 = arith.constant 1 : index
    %c0_271 = arith.constant 0 : index
    %c0_272 = arith.constant 0 : index
    %649 = vector.load %arg11[%c1_270, %c0_271, %c0_272] : memref<2x4x256xf32, #tpu.memory_space<vmem>>, vector<1x4x256xf32>
    %650 = vector.shape_cast %649 : vector<1x4x256xf32> to vector<4x256xf32>
    %651 = vector.shape_cast %648 : vector<4x256xf32> to vector<1x4x256xf32>
    tpu.vector_store %arg11[%c1_270, %c0_271, %c0_272], %651 {strides = array<i32>} : memref<2x4x256xf32, #tpu.memory_space<vmem>>, vector<1x4x256xf32>,
    return
  }
  func.func @transform_0(%arg0: i32) -> (i32, i32, i32) {
    %c0_i32 = arith.constant 0 : i32
    %c0_i32_0 = arith.constant 0 : i32
    %c0_i32_1 = arith.constant 0 : i32
    %c0_i32_2 = arith.constant 0 : i32
    return %c0_i32, %c0_i32_0, %c0_i32_1 : i32, i32, i32
  }
  func.func @transform_1(%arg0: i32) -> (i32, i32, i32) {
    %c0_i32 = arith.constant 0 : i32
    %c0_i32_0 = arith.constant 0 : i32
    %c0_i32_1 = arith.constant 0 : i32
    %c0_i32_2 = arith.constant 0 : i32
    return %c0_i32, %c0_i32_0, %c0_i32_1 : i32, i32, i32
  }
  func.func @transform_2(%arg0: i32) -> (i32, i32, i32) {
    %c0_i32 = arith.constant 0 : i32
    %c0_i32_0 = arith.constant 0 : i32
    %c0_i32_1 = arith.constant 0 : i32
    %c0_i32_2 = arith.constant 0 : i32
    return %c0_i32, %c0_i32_0, %c0_i32_1 : i32, i32, i32
  }
  func.func @transform_3(%arg0: i32) -> (i32, i32) {
    %c0_i32 = arith.constant 0 : i32
    %c0_i32_0 = arith.constant 0 : i32
    %c0_i32_1 = arith.constant 0 : i32
    return %c0_i32, %c0_i32_0 : i32, i32
  }
  func.func @transform_4(%arg0: i32) -> (i32, i32) {
    %c0_i32 = arith.constant 0 : i32
    %c0_i32_0 = arith.constant 0 : i32
    %c0_i32_1 = arith.constant 0 : i32
    return %c0_i32, %c0_i32_0 : i32, i32
  }
  func.func @transform_5(%arg0: i32) -> (i32, i32) {
    %c0_i32 = arith.constant 0 : i32
    %c0_i32_0 = arith.constant 0 : i32
    %c0_i32_1 = arith.constant 0 : i32
    return %c0_i32, %c0_i32_0 : i32, i32
  }
  func.func @transform_6(%arg0: i32) -> (i32, i32, i32) {
    %c0_i32 = arith.constant 0 : i32
    %c0_i32_0 = arith.constant 0 : i32
    %c0_i32_1 = arith.constant 0 : i32
    %c0_i32_2 = arith.constant 0 : i32
    return %c0_i32, %c0_i32_0, %c0_i32_1 : i32, i32, i32
  }
  func.func @transform_7(%arg0: i32) -> (i32, i32) {
    %c0_i32 = arith.constant 0 : i32
    %c0_i32_0 = arith.constant 0 : i32
    %c0_i32_1 = arith.constant 0 : i32
    return %c0_i32, %c0_i32_0 : i32, i32
  }
  func.func @transform_8(%arg0: i32) -> (i32, i32) {
    %c0_i32 = arith.constant 0 : i32
    %c0_i32_0 = arith.constant 0 : i32
    %c0_i32_1 = arith.constant 0 : i32
    return %c0_i32, %c0_i32_0 : i32, i32
  }
  func.func @transform_9(%arg0: i32) -> (i32, i32) {
    %c0_i32 = arith.constant 0 : i32
    %c0_i32_0 = arith.constant 0 : i32
    %c0_i32_1 = arith.constant 0 : i32
    return %c0_i32, %c0_i32_0 : i32, i32
  }
  func.func @transform_10(%arg0: i32) -> (i32, i32, i32) {
    %c0_i32 = arith.constant 0 : i32
    %c0_i32_0 = arith.constant 0 : i32
    %c0_i32_1 = arith.constant 0 : i32
    %c0_i32_2 = arith.constant 0 : i32
    return %c0_i32, %c0_i32_0, %c0_i32_1 : i32, i32, i32
  }
}

</mosaic_0001>

<llo_original>
// kernel: tpu_custom_call.1
$region0: #{tpu_custom_call.1}
  #allocation0 [shape = 'u32[]', space=smem, size = 0x4, offset = 0x4, fixed_abs, tag = 'smem constant byte address 0x4 - core index']
  #allocation1 [shape = 'u32[144,128]{1,0:T(1,128)}', space=vmem, size = 0x12000, scoped, tag = 'internal scratch']
  %s0 = inlined_call_operand.vmem [shape: f32[2,4,256], index: 0, kind: input, shape index: {}]
  %s1 = inlined_call_operand.vmem [shape: f32[9,1,512], index: 1, kind: input, shape index: {}]
  %s2 = inlined_call_operand.vmem [shape: f32[36,4,1], index: 2, kind: input, shape index: {}]
  %s3 = inlined_call_operand.vmem [shape: f32[4,1], index: 3, kind: input, shape index: {}]
  %s4 = inlined_call_operand.vmem [shape: f32[4,1], index: 4, kind: input, shape index: {}]
  %s5 = inlined_call_operand.vmem [shape: f32[4,1], index: 5, kind: input, shape index: {}]
  %s6 = inlined_call_operand.vmem [shape: f32[36,4,1], index: 6, kind: input, shape index: {}]
  %s7 = inlined_call_operand.vmem [shape: f32[4,1], index: 7, kind: input, shape index: {}]
  %s8 = inlined_call_operand.vmem [shape: f32[4,1], index: 8, kind: input, shape index: {}]
  %s9 = inlined_call_operand.vmem [shape: f32[4,1], index: 9, kind: input, shape index: {}]
  %s10 = inlined_call_operand.hbm [shape: f32[2,4,256], index: 10, kind: output, shape index: {}]
  %s11 = sld [smem:[#allocation0]]
  $region50: #{tpu_custom_call.1} parent=0
    _
  %s13 = ssub.s32 1, %s11
  %s14 = scalar_select 0, %s13, %s11
  $region1: #{tpu_custom_call.1} parent=0
    #allocation2 [shape = 'u8[8192]{0}', space=vmem, size = 0x2000, scoped, tag = 'output window, operand 0, single buffered']
    #allocation3 [shape = 's32[1]{0}', space=sflag, size = 0x4, scoped, tag = 'scoped memory for tpu_custom_call.1']
    %15 = vsyncpa [#allocation3], 0
    // Predicated region
    $region2: #{tpu_custom_call.1} parent=1 // pred_check
      _
    $region3: #{tpu_custom_call.1} parent=1 // pred_check_branch
      %17 = sbr.rel (0) target = $region5
    $region4: #{tpu_custom_call.1} parent=1 // pred_region
      _
    $region5: #{tpu_custom_call.1} parent=1 // pred_fallthru
      _
    // Predicated region
    $region6: #{tpu_custom_call.1} parent=1 // pred_check
      _
    $region7: #{tpu_custom_call.1} parent=1 // pred_check_branch
      %19 = sbr.rel (0) target = $region9
    $region8: #{tpu_custom_call.1} parent=1 // pred_region
      _
    $region9: #{tpu_custom_call.1} parent=1 // pred_fallthru
      _
    // Predicated region
    $region10: #{tpu_custom_call.1} parent=1 // pred_check
      _
    $region11: #{tpu_custom_call.1} parent=1 // pred_check_branch
      %21 = sbr.rel (0) target = $region13
    $region12: #{tpu_custom_call.1} parent=1 // pred_region
      _
    $region13: #{tpu_custom_call.1} parent=1 // pred_fallthru
      _
    // Predicated region
    $region14: #{tpu_custom_call.1} parent=1 // pred_check
      _
    $region15: #{tpu_custom_call.1} parent=1 // pred_check_branch
      %23 = sbr.rel (0) target = $region17
    $region16: #{tpu_custom_call.1} parent=1 // pred_region
      _
    $region17: #{tpu_custom_call.1} parent=1 // pred_fallthru
      _
    // Predicated region
    $region18: #{tpu_custom_call.1} parent=1 // pred_check
      _
    $region19: #{tpu_custom_call.1} parent=1 // pred_check_branch
      %25 = sbr.rel (0) target = $region21
    $region20: #{tpu_custom_call.1} parent=1 // pred_region
      _
    $region21: #{tpu_custom_call.1} parent=1 // pred_fallthru
      _
    // Predicated region
    $region22: #{tpu_custom_call.1} parent=1 // pred_check
      _
    $region23: #{tpu_custom_call.1} parent=1 // pred_check_branch
      %27 = sbr.rel (0) target = $region25
    $region24: #{tpu_custom_call.1} parent=1 // pred_region
      _
    $region25: #{tpu_custom_call.1} parent=1 // pred_fallthru
      _
    // Predicated region
    $region26: #{tpu_custom_call.1} parent=1 // pred_check
      _
    $region27: #{tpu_custom_call.1} parent=1 // pred_check_branch
      %29 = sbr.rel (0) target = $region29
    $region28: #{tpu_custom_call.1} parent=1 // pred_region
      _
    $region29: #{tpu_custom_call.1} parent=1 // pred_fallthru
      _
    // Predicated region
    $region30: #{tpu_custom_call.1} parent=1 // pred_check
      _
    $region31: #{tpu_custom_call.1} parent=1 // pred_check_branch
      %31 = sbr.rel (0) target = $region33
    $region32: #{tpu_custom_call.1} parent=1 // pred_region
      _
    $region33: #{tpu_custom_call.1} parent=1 // pred_fallthru
      _
    // Predicated region
    $region34: #{tpu_custom_call.1} parent=1 // pred_check
      _
    $region35: #{tpu_custom_call.1} parent=1 // pred_check_branch
      %33 = sbr.rel (0) target = $region37
    $region36: #{tpu_custom_call.1} parent=1 // pred_region
      _
    $region37: #{tpu_custom_call.1} parent=1 // pred_fallthru
      _
    // Predicated region
    $region38: #{tpu_custom_call.1} parent=1 // pred_check
      _
    $region39: #{tpu_custom_call.1} parent=1 // pred_check_branch
      %35 = sbr.rel (0) target = $region41
    $region40: #{tpu_custom_call.1} parent=1 // pred_region
      _
    $region41: #{tpu_custom_call.1} parent=1 // pred_fallthru
      _
    %v36 = vld [vmem:[%s0] sm:$0xff]
    %s37 = scalar_lea.vmem %s0, 8
    %v38 = vld [vmem:[%s37] sm:$0xff]
    %v40 = vcombine.high %v36, %v36
    %v43 = vcombine.high %v38, %v38
    %45 = vrot.lane.b32.xlu0 %v36, 17
    %v46 = vpop.permute.xlu0 %45
    %47 = vrot.lane.b32.xlu0 %v40, 17
    %v48 = vpop.permute.xlu0 %47
    %49 = vrot.lane.b32.xlu0 %v38, 17
    %v50 = vpop.permute.xlu0 %49
    %51 = vrot.lane.b32.xlu0 %v43, 17
    %v52 = vpop.permute.xlu0 %51
    %v53 = vlaneseq
    %v54 = vand.u32 %v53, 127
    %vm55 = vcmp.lt.s32.totalorder %v54, 17
    %v56 = vsel %vm55, %v50, %v52
    %v57 = vsel %vm55, %v48, %v50
    %v58 = vsel %vm55, %v46, %v48
    %v59 = vsel %vm55, %v52, %v46
    %v60 = vld [vmem:[%s1] sm:$0xf]
    %v62 = vlaneseq
    %v63 = vshrl.u32 %v62, 7
    %v64 = vsub.s32 0, %v63
    %v65 = vrot.slane %v60, %v64
    %v66 = vlaneseq
    %v67 = vshrl.u32 %v66, 7
    %v68 = vsub.s32 1, %v67
    %v69 = vrot.slane %v60, %v68
    %v70 = vlaneseq
    %v71 = vshrl.u32 %v70, 7
    %v72 = vsub.s32 2, %v71
    %v73 = vrot.slane %v60, %v72
    %v74 = vlaneseq
    %v75 = vshrl.u32 %v74, 7
    %v76 = vsub.s32 3, %v75
    %v77 = vrot.slane %v60, %v76
    %v82 = vmul.f32 %v59, %v65
    %v83 = vmul.f32 %v58, %v69
    %v84 = vmul.f32 %v57, %v73
    %v85 = vmul.f32 %v56, %v77
    %v86 = vld [vmem:[%s2] sm:$0xf]
    %88 = vset.pattern.permute.xlu0 0
    %89 = vperm.xlu0 %88, %v86
    %v90 = vpop.permute.xlu0 %89
    %v92 = vlaneseq
    %v93 = vshrl.u32 %v92, 7
    %v94 = vsub.s32 0, %v93
    %v95 = vrot.slane %v82, %v94
    %v96 = vlaneseq
    %v97 = vshrl.u32 %v96, 7
    %v98 = vsub.s32 0, %v97
    %v99 = vrot.slane %v83, %v98
    %v100 = vlaneseq
    %v101 = vshrl.u32 %v100, 7
    %v102 = vsub.s32 0, %v101
    %v103 = vrot.slane %v84, %v102
    %v104 = vlaneseq
    %v105 = vshrl.u32 %v104, 7
    %v106 = vsub.s32 0, %v105
    %v107 = vrot.slane %v85, %v106
    %v108 = vmul.f32 %v90, %v95
    %v109 = vmul.f32 %v90, %v99
    %v110 = vmul.f32 %v90, %v103
    %v111 = vmul.f32 %v90, %v107
    %v112 = vadd.f32 %v108, 0.0
    %v113 = vadd.f32 %v109, 0.0
    %v114 = vadd.f32 %v110, 0.0
    %v115 = vadd.f32 %v111, 0.0
    %s116 = scalar_lea.vmem %s2, 4
    %v117 = vld [vmem:[%s116] sm:$0xf]
    %119 = vset.pattern.permute.xlu0 0
    %120 = vperm.xlu0 %119, %v117
    %v121 = vpop.permute.xlu0 %120
    %v123 = vlaneseq
    %v124 = vshrl.u32 %v123, 7
    %v125 = vsub.s32 1, %v124
    %v126 = vrot.slane %v82, %v125
    %v127 = vlaneseq
    %v128 = vshrl.u32 %v127, 7
    %v129 = vsub.s32 1, %v128
    %v130 = vrot.slane %v83, %v129
    %v131 = vlaneseq
    %v132 = vshrl.u32 %v131, 7
    %v133 = vsub.s32 1, %v132
    %v134 = vrot.slane %v84, %v133
    %v135 = vlaneseq
    %v136 = vshrl.u32 %v135, 7
    %v137 = vsub.s32 1, %v136
    %v138 = vrot.slane %v85, %v137
    %v139 = vmul.f32 %v121, %v126
    %v140 = vmul.f32 %v121, %v130
    %v141 = vmul.f32 %v121, %v134
    %v142 = vmul.f32 %v121, %v138
    %v143 = vadd.f32 %v112, %v139
    %v144 = vadd.f32 %v113, %v140
    %v145 = vadd.f32 %v114, %v141
    %v146 = vadd.f32 %v115, %v142
    %s147 = scalar_lea.vmem %s2, 8
    %v148 = vld [vmem:[%s147] sm:$0xf]
    %150 = vset.pattern.permute.xlu0 0
    %151 = vperm.xlu0 %150, %v148
    %v152 = vpop.permute.xlu0 %151
    %v154 = vlaneseq
    %v155 = vshrl.u32 %v154, 7
    %v156 = vsub.s32 2, %v155
    %v157 = vrot.slane %v82, %v156
    %v158 = vlaneseq
    %v159 = vshrl.u32 %v158, 7
    %v160 = vsub.s32 2, %v159
    %v161 = vrot.slane %v83, %v160
    %v162 = vlaneseq
    %v163 = vshrl.u32 %v162, 7
    %v164 = vsub.s32 2, %v163
    %v165 = vrot.slane %v84, %v164
    %v166 = vlaneseq
    %v167 = vshrl.u32 %v166, 7
    %v168 = vsub.s32 2, %v167
    %v169 = vrot.slane %v85, %v168
    %v170 = vmul.f32 %v152, %v157
    %v171 = vmul.f32 %v152, %v161
    %v172 = vmul.f32 %v152, %v165
    %v173 = vmul.f32 %v152, %v169
    %v174 = vadd.f32 %v143, %v170
    %v175 = vadd.f32 %v144, %v171
    %v176 = vadd.f32 %v145, %v172
    %v177 = vadd.f32 %v146, %v173
    %s178 = scalar_lea.vmem %s2, 12
    %v179 = vld [vmem:[%s178] sm:$0xf]
    %181 = vset.pattern.permute.xlu0 0
    %182 = vperm.xlu0 %181, %v179
    %v183 = vpop.permute.xlu0 %182
    %v185 = vlaneseq
    %v186 = vshrl.u32 %v185, 7
    %v187 = vsub.s32 3, %v186
    %v188 = vrot.slane %v82, %v187
    %v189 = vlaneseq
    %v190 = vshrl.u32 %v189, 7
    %v191 = vsub.s32 3, %v190
    %v192 = vrot.slane %v83, %v191
    %v193 = vlaneseq
    %v194 = vshrl.u32 %v193, 7
    %v195 = vsub.s32 3, %v194
    %v196 = vrot.slane %v84, %v195
    %v197 = vlaneseq
    %v198 = vshrl.u32 %v197, 7
    %v199 = vsub.s32 3, %v198
    %v200 = vrot.slane %v85, %v199
    %v201 = vmul.f32 %v183, %v188
    %v202 = vmul.f32 %v183, %v192
    %v203 = vmul.f32 %v183, %v196
    %v204 = vmul.f32 %v183, %v200
    %v205 = vadd.f32 %v174, %v201
    %v206 = vadd.f32 %v175, %v202
    %v207 = vadd.f32 %v176, %v203
    %v208 = vadd.f32 %v177, %v204
    %209 = vrot.lane.b32.xlu0 %v36, 16
    %v210 = vpop.permute.xlu0 %209
    %211 = vrot.lane.b32.xlu0 %v40, 16
    %v212 = vpop.permute.xlu0 %211
    %213 = vrot.lane.b32.xlu0 %v38, 16
    %v214 = vpop.permute.xlu0 %213
    %215 = vrot.lane.b32.xlu0 %v43, 16
    %v216 = vpop.permute.xlu0 %215
    %vm217 = vcmp.lt.s32.totalorder %v54, 16
    %v218 = vsel %vm217, %v214, %v216
    %v219 = vsel %vm217, %v212, %v214
    %v220 = vsel %vm217, %v210, %v212
    %v221 = vsel %vm217, %v216, %v210
    %s222 = scalar_lea.vmem %s1, 4
    %v223 = vld [vmem:[%s222] sm:$0xf]
    %v225 = vlaneseq
    %v226 = vshrl.u32 %v225, 7
    %v227 = vsub.s32 0, %v226
    %v228 = vrot.slane %v223, %v227
    %v229 = vlaneseq
    %v230 = vshrl.u32 %v229, 7
    %v231 = vsub.s32 1, %v230
    %v232 = vrot.slane %v223, %v231
    %v233 = vlaneseq
    %v234 = vshrl.u32 %v233, 7
    %v235 = vsub.s32 2, %v234
    %v236 = vrot.slane %v223, %v235
    %v237 = vlaneseq
    %v238 = vshrl.u32 %v237, 7
    %v239 = vsub.s32 3, %v238
    %v240 = vrot.slane %v223, %v239
    %v245 = vmul.f32 %v221, %v228
    %v246 = vmul.f32 %v220, %v232
    %v247 = vmul.f32 %v219, %v236
    %v248 = vmul.f32 %v218, %v240
    %s249 = scalar_lea.vmem %s2, 16
    %v250 = vld [vmem:[%s249] sm:$0xf]
    %252 = vset.pattern.permute.xlu0 0
    %253 = vperm.xlu0 %252, %v250
    %v254 = vpop.permute.xlu0 %253
    %v256 = vlaneseq
    %v257 = vshrl.u32 %v256, 7
    %v258 = vsub.s32 0, %v257
    %v259 = vrot.slane %v245, %v258
    %v260 = vlaneseq
    %v261 = vshrl.u32 %v260, 7
    %v262 = vsub.s32 0, %v261
    %v263 = vrot.slane %v246, %v262
    %v264 = vlaneseq
    %v265 = vshrl.u32 %v264, 7
    %v266 = vsub.s32 0, %v265
    %v267 = vrot.slane %v247, %v266
    %v268 = vlaneseq
    %v269 = vshrl.u32 %v268, 7
    %v270 = vsub.s32 0, %v269
    %v271 = vrot.slane %v248, %v270
    %v272 = vmul.f32 %v254, %v259
    %v273 = vmul.f32 %v254, %v263
    %v274 = vmul.f32 %v254, %v267
    %v275 = vmul.f32 %v254, %v271
    %v276 = vadd.f32 %v205, %v272
    %v277 = vadd.f32 %v206, %v273
    %v278 = vadd.f32 %v207, %v274
    %v279 = vadd.f32 %v208, %v275
    %s280 = scalar_lea.vmem %s2, 20
    %v281 = vld [vmem:[%s280] sm:$0xf]
    %283 = vset.pattern.permute.xlu0 0
    %284 = vperm.xlu0 %283, %v281
    %v285 = vpop.permute.xlu0 %284
    %v287 = vlaneseq
    %v288 = vshrl.u32 %v287, 7
    %v289 = vsub.s32 1, %v288
    %v290 = vrot.slane %v245, %v289
    %v291 = vlaneseq
    %v292 = vshrl.u32 %v291, 7
    %v293 = vsub.s32 1, %v292
    %v294 = vrot.slane %v246, %v293
    %v295 = vlaneseq
    %v296 = vshrl.u32 %v295, 7
    %v297 = vsub.s32 1, %v296
    %v298 = vrot.slane %v247, %v297
    %v299 = vlaneseq
    %v300 = vshrl.u32 %v299, 7
    %v301 = vsub.s32 1, %v300
    %v302 = vrot.slane %v248, %v301
    %v303 = vmul.f32 %v285, %v290
    %v304 = vmul.f32 %v285, %v294
    %v305 = vmul.f32 %v285, %v298
    %v306 = vmul.f32 %v285, %v302
    %v307 = vadd.f32 %v276, %v303
    %v308 = vadd.f32 %v277, %v304
    %v309 = vadd.f32 %v278, %v305
    %v310 = vadd.f32 %v279, %v306
    %s311 = scalar_lea.vmem %s2, 24
    %v312 = vld [vmem:[%s311] sm:$0xf]
    %314 = vset.pattern.permute.xlu0 0
    %315 = vperm.xlu0 %314, %v312
    %v316 = vpop.permute.xlu0 %315
    %v318 = vlaneseq
    %v319 = vshrl.u32 %v318, 7
    %v320 = vsub.s32 2, %v319
    %v321 = vrot.slane %v245, %v320
    %v322 = vlaneseq
    %v323 = vshrl.u32 %v322, 7
    %v324 = vsub.s32 2, %v323
    %v325 = vrot.slane %v246, %v324
    %v326 = vlaneseq
    %v327 = vshrl.u32 %v326, 7
    %v328 = vsub.s32 2, %v327
    %v329 = vrot.slane %v247, %v328
    %v330 = vlaneseq
    %v331 = vshrl.u32 %v330, 7
    %v332 = vsub.s32 2, %v331
    %v333 = vrot.slane %v248, %v332
    %v334 = vmul.f32 %v316, %v321
    %v335 = vmul.f32 %v316, %v325
    %v336 = vmul.f32 %v316, %v329
    %v337 = vmul.f32 %v316, %v333
    %v338 = vadd.f32 %v307, %v334
    %v339 = vadd.f32 %v308, %v335
    %v340 = vadd.f32 %v309, %v336
    %v341 = vadd.f32 %v310, %v337
    %s342 = scalar_lea.vmem %s2, 28
    %v343 = vld [vmem:[%s342] sm:$0xf]
    %345 = vset.pattern.permute.xlu0 0
    %346 = vperm.xlu0 %345, %v343
    %v347 = vpop.permute.xlu0 %346
    %v349 = vlaneseq
    %v350 = vshrl.u32 %v349, 7
    %v351 = vsub.s32 3, %v350
    %v352 = vrot.slane %v245, %v351
    %v353 = vlaneseq
    %v354 = vshrl.u32 %v353, 7
    %v355 = vsub.s32 3, %v354
    %v356 = vrot.slane %v246, %v355
    %v357 = vlaneseq
    %v358 = vshrl.u32 %v357, 7
    %v359 = vsub.s32 3, %v358
    %v360 = vrot.slane %v247, %v359
    %v361 = vlaneseq
    %v362 = vshrl.u32 %v361, 7
    %v363 = vsub.s32 3, %v362
    %v364 = vrot.slane %v248, %v363
    %v365 = vmul.f32 %v347, %v352
    %v366 = vmul.f32 %v347, %v356
    %v367 = vmul.f32 %v347, %v360
    %v368 = vmul.f32 %v347, %v364
    %v369 = vadd.f32 %v338, %v365
    %v370 = vadd.f32 %v339, %v366
    %v371 = vadd.f32 %v340, %v367
    %v372 = vadd.f32 %v341, %v368
    %373 = vrot.lane.b32.xlu0 %v36, 15
    %v374 = vpop.permute.xlu0 %373
    %375 = vrot.lane.b32.xlu0 %v40, 15
    %v376 = vpop.permute.xlu0 %375
    %377 = vrot.lane.b32.xlu0 %v38, 15
    %v378 = vpop.permute.xlu0 %377
    %379 = vrot.lane.b32.xlu0 %v43, 15
    %v380 = vpop.permute.xlu0 %379
    %vm381 = vcmp.lt.s32.totalorder %v54, 15
    %v382 = vsel %vm381, %v378, %v380
    %v383 = vsel %vm381, %v376, %v378
    %v384 = vsel %vm381, %v374, %v376
    %v385 = vsel %vm381, %v380, %v374
    %s386 = scalar_lea.vmem %s1, 8
    %v387 = vld [vmem:[%s386] sm:$0xf]
    %v389 = vlaneseq
    %v390 = vshrl.u32 %v389, 7
    %v391 = vsub.s32 0, %v390
    %v392 = vrot.slane %v387, %v391
    %v393 = vlaneseq
    %v394 = vshrl.u32 %v393, 7
    %v395 = vsub.s32 1, %v394
    %v396 = vrot.slane %v387, %v395
    %v397 = vlaneseq
    %v398 = vshrl.u32 %v397, 7
    %v399 = vsub.s32 2, %v398
    %v400 = vrot.slane %v387, %v399
    %v401 = vlaneseq
    %v402 = vshrl.u32 %v401, 7
    %v403 = vsub.s32 3, %v402
    %v404 = vrot.slane %v387, %v403
    %v409 = vmul.f32 %v385, %v392
    %v410 = vmul.f32 %v384, %v396
    %v411 = vmul.f32 %v383, %v400
    %v412 = vmul.f32 %v382, %v404
    %s413 = scalar_lea.vmem %s2, 32
    %v414 = vld [vmem:[%s413] sm:$0xf]
    %416 = vset.pattern.permute.xlu0 0
    %417 = vperm.xlu0 %416, %v414
    %v418 = vpop.permute.xlu0 %417
    %v420 = vlaneseq
    %v421 = vshrl.u32 %v420, 7
    %v422 = vsub.s32 0, %v421
    %v423 = vrot.slane %v409, %v422
    %v424 = vlaneseq
    %v425 = vshrl.u32 %v424, 7
    %v426 = vsub.s32 0, %v425
    %v427 = vrot.slane %v410, %v426
    %v428 = vlaneseq
    %v429 = vshrl.u32 %v428, 7
    %v430 = vsub.s32 0, %v429
    %v431 = vrot.slane %v411, %v430
    %v432 = vlaneseq
    %v433 = vshrl.u32 %v432, 7
    %v434 = vsub.s32 0, %v433
    %v435 = vrot.slane %v412, %v434
    %v436 = vmul.f32 %v418, %v423
    %v437 = vmul.f32 %v418, %v427
    %v438 = vmul.f32 %v418, %v431
    %v439 = vmul.f32 %v418, %v435
    %v440 = vadd.f32 %v369, %v436
    %v441 = vadd.f32 %v370, %v437
    %v442 = vadd.f32 %v371, %v438
    %v443 = vadd.f32 %v372, %v439
    %s444 = scalar_lea.vmem %s2, 36
    %v445 = vld [vmem:[%s444] sm:$0xf]
    %447 = vset.pattern.permute.xlu0 0
    %448 = vperm.xlu0 %447, %v445
    %v449 = vpop.permute.xlu0 %448
    %v451 = vlaneseq
    %v452 = vshrl.u32 %v451, 7
    %v453 = vsub.s32 1, %v452
    %v454 = vrot.slane %v409, %v453
    %v455 = vlaneseq
    %v456 = vshrl.u32 %v455, 7
    %v457 = vsub.s32 1, %v456
    %v458 = vrot.slane %v410, %v457
    %v459 = vlaneseq
    %v460 = vshrl.u32 %v459, 7
    %v461 = vsub.s32 1, %v460
    %v462 = vrot.slane %v411, %v461
    %v463 = vlaneseq
    %v464 = vshrl.u32 %v463, 7
    %v465 = vsub.s32 1, %v464
    %v466 = vrot.slane %v412, %v465
    %v467 = vmul.f32 %v449, %v454
    %v468 = vmul.f32 %v449, %v458
    %v469 = vmul.f32 %v449, %v462
    %v470 = vmul.f32 %v449, %v466
    %v471 = vadd.f32 %v440, %v467
    %v472 = vadd.f32 %v441, %v468
    %v473 = vadd.f32 %v442, %v469
    %v474 = vadd.f32 %v443, %v470
    %s475 = scalar_lea.vmem %s2, 40
    %v476 = vld [vmem:[%s475] sm:$0xf]
    %478 = vset.pattern.permute.xlu0 0
    %479 = vperm.xlu0 %478, %v476
    %v480 = vpop.permute.xlu0 %479
    %v482 = vlaneseq
    %v483 = vshrl.u32 %v482, 7
    %v484 = vsub.s32 2, %v483
    %v485 = vrot.slane %v409, %v484
    %v486 = vlaneseq
    %v487 = vshrl.u32 %v486, 7
    %v488 = vsub.s32 2, %v487
    %v489 = vrot.slane %v410, %v488
    %v490 = vlaneseq
    %v491 = vshrl.u32 %v490, 7
    %v492 = vsub.s32 2, %v491
    %v493 = vrot.slane %v411, %v492
    %v494 = vlaneseq
    %v495 = vshrl.u32 %v494, 7
    %v496 = vsub.s32 2, %v495
    %v497 = vrot.slane %v412, %v496
    %v498 = vmul.f32 %v480, %v485
    %v499 = vmul.f32 %v480, %v489
    %v500 = vmul.f32 %v480, %v493
    %v501 = vmul.f32 %v480, %v497
    %v502 = vadd.f32 %v471, %v498
    %v503 = vadd.f32 %v472, %v499
    %v504 = vadd.f32 %v473, %v500
    %v505 = vadd.f32 %v474, %v501
    %s506 = scalar_lea.vmem %s2, 44
    %v507 = vld [vmem:[%s506] sm:$0xf]
    %509 = vset.pattern.permute.xlu0 0
    %510 = vperm.xlu0 %509, %v507
    %v511 = vpop.permute.xlu0 %510
    %v513 = vlaneseq
    %v514 = vshrl.u32 %v513, 7
    %v515 = vsub.s32 3, %v514
    %v516 = vrot.slane %v409, %v515
    %v517 = vlaneseq
    %v518 = vshrl.u32 %v517, 7
    %v519 = vsub.s32 3, %v518
    %v520 = vrot.slane %v410, %v519
    %v521 = vlaneseq
    %v522 = vshrl.u32 %v521, 7
    %v523 = vsub.s32 3, %v522
    %v524 = vrot.slane %v411, %v523
    %v525 = vlaneseq
    %v526 = vshrl.u32 %v525, 7
    %v527 = vsub.s32 3, %v526
    %v528 = vrot.slane %v412, %v527
    %v529 = vmul.f32 %v511, %v516
    %v530 = vmul.f32 %v511, %v520
    %v531 = vmul.f32 %v511, %v524
    %v532 = vmul.f32 %v511, %v528
    %v533 = vadd.f32 %v502, %v529
    %v534 = vadd.f32 %v503, %v530
    %v535 = vadd.f32 %v504, %v531
    %v536 = vadd.f32 %v505, %v532
    %537 = vrot.lane.b32.xlu0 %v36, 1
    %v538 = vpop.permute.xlu0 %537
    %539 = vrot.lane.b32.xlu0 %v40, 1
    %v540 = vpop.permute.xlu0 %539
    %541 = vrot.lane.b32.xlu0 %v38, 1
    %v542 = vpop.permute.xlu0 %541
    %543 = vrot.lane.b32.xlu0 %v43, 1
    %v544 = vpop.permute.xlu0 %543
    %vm545 = vcmp.lt.s32.totalorder %v54, 1
    %v546 = vsel %vm545, %v542, %v544
    %v547 = vsel %vm545, %v540, %v542
    %v548 = vsel %vm545, %v538, %v540
    %v549 = vsel %vm545, %v544, %v538
    %s550 = scalar_lea.vmem %s1, 12
    %v551 = vld [vmem:[%s550] sm:$0xf]
    %v553 = vlaneseq
    %v554 = vshrl.u32 %v553, 7
    %v555 = vsub.s32 0, %v554
    %v556 = vrot.slane %v551, %v555
    %v557 = vlaneseq
    %v558 = vshrl.u32 %v557, 7
    %v559 = vsub.s32 1, %v558
    %v560 = vrot.slane %v551, %v559
    %v561 = vlaneseq
    %v562 = vshrl.u32 %v561, 7
    %v563 = vsub.s32 2, %v562
    %v564 = vrot.slane %v551, %v563
    %v565 = vlaneseq
    %v566 = vshrl.u32 %v565, 7
    %v567 = vsub.s32 3, %v566
    %v568 = vrot.slane %v551, %v567
    %v573 = vmul.f32 %v549, %v556
    %v574 = vmul.f32 %v548, %v560
    %v575 = vmul.f32 %v547, %v564
    %v576 = vmul.f32 %v546, %v568
    %s577 = scalar_lea.vmem %s2, 48
    %v578 = vld [vmem:[%s577] sm:$0xf]
    %580 = vset.pattern.permute.xlu0 0
    %581 = vperm.xlu0 %580, %v578
    %v582 = vpop.permute.xlu0 %581
    %v584 = vlaneseq
    %v585 = vshrl.u32 %v584, 7
    %v586 = vsub.s32 0, %v585
    %v587 = vrot.slane %v573, %v586
    %v588 = vlaneseq
    %v589 = vshrl.u32 %v588, 7
    %v590 = vsub.s32 0, %v589
    %v591 = vrot.slane %v574, %v590
    %v592 = vlaneseq
    %v593 = vshrl.u32 %v592, 7
    %v594 = vsub.s32 0, %v593
    %v595 = vrot.slane %v575, %v594
    %v596 = vlaneseq
    %v597 = vshrl.u32 %v596, 7
    %v598 = vsub.s32 0, %v597
    %v599 = vrot.slane %v576, %v598
    %v600 = vmul.f32 %v582, %v587
    %v601 = vmul.f32 %v582, %v591
    %v602 = vmul.f32 %v582, %v595
    %v603 = vmul.f32 %v582, %v599
    %v604 = vadd.f32 %v533, %v600
    %v605 = vadd.f32 %v534, %v601
    %v606 = vadd.f32 %v535, %v602
    %v607 = vadd.f32 %v536, %v603
    %s608 = scalar_lea.vmem %s2, 52
    %v609 = vld [vmem:[%s608] sm:$0xf]
    %611 = vset.pattern.permute.xlu0 0
    %612 = vperm.xlu0 %611, %v609
    %v613 = vpop.permute.xlu0 %612
    %v615 = vlaneseq
    %v616 = vshrl.u32 %v615, 7
    %v617 = vsub.s32 1, %v616
    %v618 = vrot.slane %v573, %v617
    %v619 = vlaneseq
    %v620 = vshrl.u32 %v619, 7
    %v621 = vsub.s32 1, %v620
    %v622 = vrot.slane %v574, %v621
    %v623 = vlaneseq
    %v624 = vshrl.u32 %v623, 7
    %v625 = vsub.s32 1, %v624
    %v626 = vrot.slane %v575, %v625
    %v627 = vlaneseq
    %v628 = vshrl.u32 %v627, 7
    %v629 = vsub.s32 1, %v628
    %v630 = vrot.slane %v576, %v629
    %v631 = vmul.f32 %v613, %v618
    %v632 = vmul.f32 %v613, %v622
    %v633 = vmul.f32 %v613, %v626
    %v634 = vmul.f32 %v613, %v630
    %v635 = vadd.f32 %v604, %v631
    %v636 = vadd.f32 %v605, %v632
    %v637 = vadd.f32 %v606, %v633
    %v638 = vadd.f32 %v607, %v634
    %s639 = scalar_lea.vmem %s2, 56
    %v640 = vld [vmem:[%s639] sm:$0xf]
    %642 = vset.pattern.permute.xlu0 0
    %643 = vperm.xlu0 %642, %v640
    %v644 = vpop.permute.xlu0 %643
    %v646 = vlaneseq
    %v647 = vshrl.u32 %v646, 7
    %v648 = vsub.s32 2, %v647
    %v649 = vrot.slane %v573, %v648
    %v650 = vlaneseq
    %v651 = vshrl.u32 %v650, 7
    %v652 = vsub.s32 2, %v651
    %v653 = vrot.slane %v574, %v652
    %v654 = vlaneseq
    %v655 = vshrl.u32 %v654, 7
    %v656 = vsub.s32 2, %v655
    %v657 = vrot.slane %v575, %v656
    %v658 = vlaneseq
    %v659 = vshrl.u32 %v658, 7
    %v660 = vsub.s32 2, %v659
    %v661 = vrot.slane %v576, %v660
    %v662 = vmul.f32 %v644, %v649
    %v663 = vmul.f32 %v644, %v653
    %v664 = vmul.f32 %v644, %v657
    %v665 = vmul.f32 %v644, %v661
    %v666 = vadd.f32 %v635, %v662
    %v667 = vadd.f32 %v636, %v663
    %v668 = vadd.f32 %v637, %v664
    %v669 = vadd.f32 %v638, %v665
    %s670 = scalar_lea.vmem %s2, 60
    %v671 = vld [vmem:[%s670] sm:$0xf]
    %673 = vset.pattern.permute.xlu0 0
    %674 = vperm.xlu0 %673, %v671
    %v675 = vpop.permute.xlu0 %674
    %v677 = vlaneseq
    %v678 = vshrl.u32 %v677, 7
    %v679 = vsub.s32 3, %v678
    %v680 = vrot.slane %v573, %v679
    %v681 = vlaneseq
    %v682 = vshrl.u32 %v681, 7
    %v683 = vsub.s32 3, %v682
    %v684 = vrot.slane %v574, %v683
    %v685 = vlaneseq
    %v686 = vshrl.u32 %v685, 7
    %v687 = vsub.s32 3, %v686
    %v688 = vrot.slane %v575, %v687
    %v689 = vlaneseq
    %v690 = vshrl.u32 %v689, 7
    %v691 = vsub.s32 3, %v690
    %v692 = vrot.slane %v576, %v691
    %v693 = vmul.f32 %v675, %v680
    %v694 = vmul.f32 %v675, %v684
    %v695 = vmul.f32 %v675, %v688
    %v696 = vmul.f32 %v675, %v692
    %v697 = vadd.f32 %v666, %v693
    %v698 = vadd.f32 %v667, %v694
    %v699 = vadd.f32 %v668, %v695
    %v700 = vadd.f32 %v669, %v696
    %s701 = scalar_lea.vmem %s2, 64
    %v702 = vld [vmem:[%s701] sm:$0xf]
    %704 = vset.pattern.permute.xlu0 0
    %705 = vperm.xlu0 %704, %v702
    %v706 = vpop.permute.xlu0 %705
    %v708 = vlaneseq
    %v709 = vshrl.u32 %v708, 7
    %v710 = vsub.s32 0, %v709
    %v711 = vrot.slane %v36, %v710
    %v712 = vlaneseq
    %v713 = vshrl.u32 %v712, 7
    %v714 = vsub.s32 0, %v713
    %v715 = vrot.slane %v40, %v714
    %v716 = vlaneseq
    %v717 = vshrl.u32 %v716, 7
    %v718 = vsub.s32 0, %v717
    %v719 = vrot.slane %v38, %v718
    %v720 = vlaneseq
    %v721 = vshrl.u32 %v720, 7
    %v722 = vsub.s32 0, %v721
    %v723 = vrot.slane %v43, %v722
    %v724 = vmul.f32 %v706, %v711
    %v725 = vmul.f32 %v706, %v715
    %v726 = vmul.f32 %v706, %v719
    %v727 = vmul.f32 %v706, %v723
    %v728 = vadd.f32 %v697, %v724
    %v729 = vadd.f32 %v698, %v725
    %v730 = vadd.f32 %v699, %v726
    %v731 = vadd.f32 %v700, %v727
    %s732 = scalar_lea.vmem %s2, 68
    %v733 = vld [vmem:[%s732] sm:$0xf]
    %735 = vset.pattern.permute.xlu0 0
    %736 = vperm.xlu0 %735, %v733
    %v737 = vpop.permute.xlu0 %736
    %v739 = vlaneseq
    %v740 = vshrl.u32 %v739, 7
    %v741 = vsub.s32 1, %v740
    %v742 = vrot.slane %v36, %v741
    %v743 = vlaneseq
    %v744 = vshrl.u32 %v743, 7
    %v745 = vsub.s32 1, %v744
    %v746 = vrot.slane %v40, %v745
    %v747 = vlaneseq
    %v748 = vshrl.u32 %v747, 7
    %v749 = vsub.s32 1, %v748
    %v750 = vrot.slane %v38, %v749
    %v751 = vlaneseq
    %v752 = vshrl.u32 %v751, 7
    %v753 = vsub.s32 1, %v752
    %v754 = vrot.slane %v43, %v753
    %v755 = vmul.f32 %v737, %v742
    %v756 = vmul.f32 %v737, %v746
    %v757 = vmul.f32 %v737, %v750
    %v758 = vmul.f32 %v737, %v754
    %v759 = vadd.f32 %v728, %v755
    %v760 = vadd.f32 %v729, %v756
    %v761 = vadd.f32 %v730, %v757
    %v762 = vadd.f32 %v731, %v758
    %s763 = scalar_lea.vmem %s2, 72
    %v764 = vld [vmem:[%s763] sm:$0xf]
    %766 = vset.pattern.permute.xlu0 0
    %767 = vperm.xlu0 %766, %v764
    %v768 = vpop.permute.xlu0 %767
    %v770 = vlaneseq
    %v771 = vshrl.u32 %v770, 7
    %v772 = vsub.s32 2, %v771
    %v773 = vrot.slane %v36, %v772
    %v774 = vlaneseq
    %v775 = vshrl.u32 %v774, 7
    %v776 = vsub.s32 2, %v775
    %v777 = vrot.slane %v40, %v776
    %v778 = vlaneseq
    %v779 = vshrl.u32 %v778, 7
    %v780 = vsub.s32 2, %v779
    %v781 = vrot.slane %v38, %v780
    %v782 = vlaneseq
    %v783 = vshrl.u32 %v782, 7
    %v784 = vsub.s32 2, %v783
    %v785 = vrot.slane %v43, %v784
    %v786 = vmul.f32 %v768, %v773
    %v787 = vmul.f32 %v768, %v777
    %v788 = vmul.f32 %v768, %v781
    %v789 = vmul.f32 %v768, %v785
    %v790 = vadd.f32 %v759, %v786
    %v791 = vadd.f32 %v760, %v787
    %v792 = vadd.f32 %v761, %v788
    %v793 = vadd.f32 %v762, %v789
    %s794 = scalar_lea.vmem %s2, 76
    %v795 = vld [vmem:[%s794] sm:$0xf]
    %797 = vset.pattern.permute.xlu0 0
    %798 = vperm.xlu0 %797, %v795
    %v799 = vpop.permute.xlu0 %798
    %v801 = vlaneseq
    %v802 = vshrl.u32 %v801, 7
    %v803 = vsub.s32 3, %v802
    %v804 = vrot.slane %v36, %v803
    %v805 = vlaneseq
    %v806 = vshrl.u32 %v805, 7
    %v807 = vsub.s32 3, %v806
    %v808 = vrot.slane %v40, %v807
    %v809 = vlaneseq
    %v810 = vshrl.u32 %v809, 7
    %v811 = vsub.s32 3, %v810
    %v812 = vrot.slane %v38, %v811
    %v813 = vlaneseq
    %v814 = vshrl.u32 %v813, 7
    %v815 = vsub.s32 3, %v814
    %v816 = vrot.slane %v43, %v815
    %v817 = vmul.f32 %v799, %v804
    %v818 = vmul.f32 %v799, %v808
    %v819 = vmul.f32 %v799, %v812
    %v820 = vmul.f32 %v799, %v816
    %v821 = vadd.f32 %v790, %v817
    %v822 = vadd.f32 %v791, %v818
    %v823 = vadd.f32 %v792, %v819
    %v824 = vadd.f32 %v793, %v820
    %825 = vrot.lane.b32.xlu0 %v36, 127
    %v826 = vpop.permute.xlu0 %825
    %827 = vrot.lane.b32.xlu0 %v40, 127
    %v828 = vpop.permute.xlu0 %827
    %829 = vrot.lane.b32.xlu0 %v38, 127
    %v830 = vpop.permute.xlu0 %829
    %831 = vrot.lane.b32.xlu0 %v43, 127
    %v832 = vpop.permute.xlu0 %831
    %vm833 = vcmp.lt.s32.totalorder %v54, 127
    %v834 = vsel %vm833, %v830, %v832
    %v835 = vsel %vm833, %v828, %v830
    %v836 = vsel %vm833, %v826, %v828
    %v837 = vsel %vm833, %v832, %v826
    %s838 = scalar_lea.vmem %s1, 20
    %v839 = vld [vmem:[%s838] sm:$0xf]
    %v841 = vlaneseq
    %v842 = vshrl.u32 %v841, 7
    %v843 = vsub.s32 0, %v842
    %v844 = vrot.slane %v839, %v843
    %v845 = vlaneseq
    %v846 = vshrl.u32 %v845, 7
    %v847 = vsub.s32 1, %v846
    %v848 = vrot.slane %v839, %v847
    %v849 = vlaneseq
    %v850 = vshrl.u32 %v849, 7
    %v851 = vsub.s32 2, %v850
    %v852 = vrot.slane %v839, %v851
    %v853 = vlaneseq
    %v854 = vshrl.u32 %v853, 7
    %v855 = vsub.s32 3, %v854
    %v856 = vrot.slane %v839, %v855
    %v861 = vmul.f32 %v836, %v844
    %v862 = vmul.f32 %v835, %v848
    %v863 = vmul.f32 %v834, %v852
    %v864 = vmul.f32 %v837, %v856
    %s865 = scalar_lea.vmem %s2, 80
    %v866 = vld [vmem:[%s865] sm:$0xf]
    %868 = vset.pattern.permute.xlu0 0
    %869 = vperm.xlu0 %868, %v866
    %v870 = vpop.permute.xlu0 %869
    %v872 = vlaneseq
    %v873 = vshrl.u32 %v872, 7
    %v874 = vsub.s32 0, %v873
    %v875 = vrot.slane %v861, %v874
    %v876 = vlaneseq
    %v877 = vshrl.u32 %v876, 7
    %v878 = vsub.s32 0, %v877
    %v879 = vrot.slane %v862, %v878
    %v880 = vlaneseq
    %v881 = vshrl.u32 %v880, 7
    %v882 = vsub.s32 0, %v881
    %v883 = vrot.slane %v863, %v882
    %v884 = vlaneseq
    %v885 = vshrl.u32 %v884, 7
    %v886 = vsub.s32 0, %v885
    %v887 = vrot.slane %v864, %v886
    %v888 = vmul.f32 %v870, %v875
    %v889 = vmul.f32 %v870, %v879
    %v890 = vmul.f32 %v870, %v883
    %v891 = vmul.f32 %v870, %v887
    %v892 = vadd.f32 %v821, %v888
    %v893 = vadd.f32 %v822, %v889
    %v894 = vadd.f32 %v823, %v890
    %v895 = vadd.f32 %v824, %v891
    %s896 = scalar_lea.vmem %s2, 84
    %v897 = vld [vmem:[%s896] sm:$0xf]
    %899 = vset.pattern.permute.xlu0 0
    %900 = vperm.xlu0 %899, %v897
    %v901 = vpop.permute.xlu0 %900
    %v903 = vlaneseq
    %v904 = vshrl.u32 %v903, 7
    %v905 = vsub.s32 1, %v904
    %v906 = vrot.slane %v861, %v905
    %v907 = vlaneseq
    %v908 = vshrl.u32 %v907, 7
    %v909 = vsub.s32 1, %v908
    %v910 = vrot.slane %v862, %v909
    %v911 = vlaneseq
    %v912 = vshrl.u32 %v911, 7
    %v913 = vsub.s32 1, %v912
    %v914 = vrot.slane %v863, %v913
    %v915 = vlaneseq
    %v916 = vshrl.u32 %v915, 7
    %v917 = vsub.s32 1, %v916
    %v918 = vrot.slane %v864, %v917
    %v919 = vmul.f32 %v901, %v906
    %v920 = vmul.f32 %v901, %v910
    %v921 = vmul.f32 %v901, %v914
    %v922 = vmul.f32 %v901, %v918
    %v923 = vadd.f32 %v892, %v919
    %v924 = vadd.f32 %v893, %v920
    %v925 = vadd.f32 %v894, %v921
    %v926 = vadd.f32 %v895, %v922
    %s927 = scalar_lea.vmem %s2, 88
    %v928 = vld [vmem:[%s927] sm:$0xf]
    %930 = vset.pattern.permute.xlu0 0
    %931 = vperm.xlu0 %930, %v928
    %v932 = vpop.permute.xlu0 %931
    %v934 = vlaneseq
    %v935 = vshrl.u32 %v934, 7
    %v936 = vsub.s32 2, %v935
    %v937 = vrot.slane %v861, %v936
    %v938 = vlaneseq
    %v939 = vshrl.u32 %v938, 7
    %v940 = vsub.s32 2, %v939
    %v941 = vrot.slane %v862, %v940
    %v942 = vlaneseq
    %v943 = vshrl.u32 %v942, 7
    %v944 = vsub.s32 2, %v943
    %v945 = vrot.slane %v863, %v944
    %v946 = vlaneseq
    %v947 = vshrl.u32 %v946, 7
    %v948 = vsub.s32 2, %v947
    %v949 = vrot.slane %v864, %v948
    %v950 = vmul.f32 %v932, %v937
    %v951 = vmul.f32 %v932, %v941
    %v952 = vmul.f32 %v932, %v945
    %v953 = vmul.f32 %v932, %v949
    %v954 = vadd.f32 %v923, %v950
    %v955 = vadd.f32 %v924, %v951
    %v956 = vadd.f32 %v925, %v952
    %v957 = vadd.f32 %v926, %v953
    %s958 = scalar_lea.vmem %s2, 92
    %v959 = vld [vmem:[%s958] sm:$0xf]
    %961 = vset.pattern.permute.xlu0 0
    %962 = vperm.xlu0 %961, %v959
    %v963 = vpop.permute.xlu0 %962
    %v965 = vlaneseq
    %v966 = vshrl.u32 %v965, 7
    %v967 = vsub.s32 3, %v966
    %v968 = vrot.slane %v861, %v967
    %v969 = vlaneseq
    %v970 = vshrl.u32 %v969, 7
    %v971 = vsub.s32 3, %v970
    %v972 = vrot.slane %v862, %v971
    %v973 = vlaneseq
    %v974 = vshrl.u32 %v973, 7
    %v975 = vsub.s32 3, %v974
    %v976 = vrot.slane %v863, %v975
    %v977 = vlaneseq
    %v978 = vshrl.u32 %v977, 7
    %v979 = vsub.s32 3, %v978
    %v980 = vrot.slane %v864, %v979
    %v981 = vmul.f32 %v963, %v968
    %v982 = vmul.f32 %v963, %v972
    %v983 = vmul.f32 %v963, %v976
    %v984 = vmul.f32 %v963, %v980
    %v985 = vadd.f32 %v954, %v981
    %v986 = vadd.f32 %v955, %v982
    %v987 = vadd.f32 %v956, %v983
    %v988 = vadd.f32 %v957, %v984
    %989 = vrot.lane.b32.xlu0 %v36, 113
    %v990 = vpop.permute.xlu0 %989
    %991 = vrot.lane.b32.xlu0 %v40, 113
    %v992 = vpop.permute.xlu0 %991
    %993 = vrot.lane.b32.xlu0 %v38, 113
    %v994 = vpop.permute.xlu0 %993
    %995 = vrot.lane.b32.xlu0 %v43, 113
    %v996 = vpop.permute.xlu0 %995
    %vm997 = vcmp.lt.s32.totalorder %v54, 113
    %v998 = vsel %vm997, %v994, %v996
    %v999 = vsel %vm997, %v992, %v994
    %v1000 = vsel %vm997, %v990, %v992
    %v1001 = vsel %vm997, %v996, %v990
    %s1002 = scalar_lea.vmem %s1, 24
    %v1003 = vld [vmem:[%s1002] sm:$0xf]
    %v1005 = vlaneseq
    %v1006 = vshrl.u32 %v1005, 7
    %v1007 = vsub.s32 0, %v1006
    %v1008 = vrot.slane %v1003, %v1007
    %v1009 = vlaneseq
    %v1010 = vshrl.u32 %v1009, 7
    %v1011 = vsub.s32 1, %v1010
    %v1012 = vrot.slane %v1003, %v1011
    %v1013 = vlaneseq
    %v1014 = vshrl.u32 %v1013, 7
    %v1015 = vsub.s32 2, %v1014
    %v1016 = vrot.slane %v1003, %v1015
    %v1017 = vlaneseq
    %v1018 = vshrl.u32 %v1017, 7
    %v1019 = vsub.s32 3, %v1018
    %v1020 = vrot.slane %v1003, %v1019
    %v1025 = vmul.f32 %v1000, %v1008
    %v1026 = vmul.f32 %v999, %v1012
    %v1027 = vmul.f32 %v998, %v1016
    %v1028 = vmul.f32 %v1001, %v1020
    %s1029 = scalar_lea.vmem %s2, 96
    %v1030 = vld [vmem:[%s1029] sm:$0xf]
    %1032 = vset.pattern.permute.xlu0 0
    %1033 = vperm.xlu0 %1032, %v1030
    %v1034 = vpop.permute.xlu0 %1033
    %v1036 = vlaneseq
    %v1037 = vshrl.u32 %v1036, 7
    %v1038 = vsub.s32 0, %v1037
    %v1039 = vrot.slane %v1025, %v1038
    %v1040 = vlaneseq
    %v1041 = vshrl.u32 %v1040, 7
    %v1042 = vsub.s32 0, %v1041
    %v1043 = vrot.slane %v1026, %v1042
    %v1044 = vlaneseq
    %v1045 = vshrl.u32 %v1044, 7
    %v1046 = vsub.s32 0, %v1045
    %v1047 = vrot.slane %v1027, %v1046
    %v1048 = vlaneseq
    %v1049 = vshrl.u32 %v1048, 7
    %v1050 = vsub.s32 0, %v1049
    %v1051 = vrot.slane %v1028, %v1050
    %v1052 = vmul.f32 %v1034, %v1039
    %v1053 = vmul.f32 %v1034, %v1043
    %v1054 = vmul.f32 %v1034, %v1047
    %v1055 = vmul.f32 %v1034, %v1051
    %v1056 = vadd.f32 %v985, %v1052
    %v1057 = vadd.f32 %v986, %v1053
    %v1058 = vadd.f32 %v987, %v1054
    %v1059 = vadd.f32 %v988, %v1055
    %s1060 = scalar_lea.vmem %s2, 100
    %v1061 = vld [vmem:[%s1060] sm:$0xf]
    %1063 = vset.pattern.permute.xlu0 0
    %1064 = vperm.xlu0 %1063, %v1061
    %v1065 = vpop.permute.xlu0 %1064
    %v1067 = vlaneseq
    %v1068 = vshrl.u32 %v1067, 7
    %v1069 = vsub.s32 1, %v1068
    %v1070 = vrot.slane %v1025, %v1069
    %v1071 = vlaneseq
    %v1072 = vshrl.u32 %v1071, 7
    %v1073 = vsub.s32 1, %v1072
    %v1074 = vrot.slane %v1026, %v1073
    %v1075 = vlaneseq
    %v1076 = vshrl.u32 %v1075, 7
    %v1077 = vsub.s32 1, %v1076
    %v1078 = vrot.slane %v1027, %v1077
    %v1079 = vlaneseq
    %v1080 = vshrl.u32 %v1079, 7
    %v1081 = vsub.s32 1, %v1080
    %v1082 = vrot.slane %v1028, %v1081
    %v1083 = vmul.f32 %v1065, %v1070
    %v1084 = vmul.f32 %v1065, %v1074
    %v1085 = vmul.f32 %v1065, %v1078
    %v1086 = vmul.f32 %v1065, %v1082
    %v1087 = vadd.f32 %v1056, %v1083
    %v1088 = vadd.f32 %v1057, %v1084
    %v1089 = vadd.f32 %v1058, %v1085
    %v1090 = vadd.f32 %v1059, %v1086
    %s1091 = scalar_lea.vmem %s2, 104
    %v1092 = vld [vmem:[%s1091] sm:$0xf]
    %1094 = vset.pattern.permute.xlu0 0
    %1095 = vperm.xlu0 %1094, %v1092
    %v1096 = vpop.permute.xlu0 %1095
    %v1098 = vlaneseq
    %v1099 = vshrl.u32 %v1098, 7
    %v1100 = vsub.s32 2, %v1099
    %v1101 = vrot.slane %v1025, %v1100
    %v1102 = vlaneseq
    %v1103 = vshrl.u32 %v1102, 7
    %v1104 = vsub.s32 2, %v1103
    %v1105 = vrot.slane %v1026, %v1104
    %v1106 = vlaneseq
    %v1107 = vshrl.u32 %v1106, 7
    %v1108 = vsub.s32 2, %v1107
    %v1109 = vrot.slane %v1027, %v1108
    %v1110 = vlaneseq
    %v1111 = vshrl.u32 %v1110, 7
    %v1112 = vsub.s32 2, %v1111
    %v1113 = vrot.slane %v1028, %v1112
    %v1114 = vmul.f32 %v1096, %v1101
    %v1115 = vmul.f32 %v1096, %v1105
    %v1116 = vmul.f32 %v1096, %v1109
    %v1117 = vmul.f32 %v1096, %v1113
    %v1118 = vadd.f32 %v1087, %v1114
    %v1119 = vadd.f32 %v1088, %v1115
    %v1120 = vadd.f32 %v1089, %v1116
    %v1121 = vadd.f32 %v1090, %v1117
    %s1122 = scalar_lea.vmem %s2, 108
    %v1123 = vld [vmem:[%s1122] sm:$0xf]
    %1125 = vset.pattern.permute.xlu0 0
    %1126 = vperm.xlu0 %1125, %v1123
    %v1127 = vpop.permute.xlu0 %1126
    %v1129 = vlaneseq
    %v1130 = vshrl.u32 %v1129, 7
    %v1131 = vsub.s32 3, %v1130
    %v1132 = vrot.slane %v1025, %v1131
    %v1133 = vlaneseq
    %v1134 = vshrl.u32 %v1133, 7
    %v1135 = vsub.s32 3, %v1134
    %v1136 = vrot.slane %v1026, %v1135
    %v1137 = vlaneseq
    %v1138 = vshrl.u32 %v1137, 7
    %v1139 = vsub.s32 3, %v1138
    %v1140 = vrot.slane %v1027, %v1139
    %v1141 = vlaneseq
    %v1142 = vshrl.u32 %v1141, 7
    %v1143 = vsub.s32 3, %v1142
    %v1144 = vrot.slane %v1028, %v1143
    %v1145 = vmul.f32 %v1127, %v1132
    %v1146 = vmul.f32 %v1127, %v1136
    %v1147 = vmul.f32 %v1127, %v1140
    %v1148 = vmul.f32 %v1127, %v1144
    %v1149 = vadd.f32 %v1118, %v1145
    %v1150 = vadd.f32 %v1119, %v1146
    %v1151 = vadd.f32 %v1120, %v1147
    %v1152 = vadd.f32 %v1121, %v1148
    %1153 = vrot.lane.b32.xlu0 %v36, 112
    %v1154 = vpop.permute.xlu0 %1153
    %1155 = vrot.lane.b32.xlu0 %v40, 112
    %v1156 = vpop.permute.xlu0 %1155
    %1157 = vrot.lane.b32.xlu0 %v38, 112
    %v1158 = vpop.permute.xlu0 %1157
    %1159 = vrot.lane.b32.xlu0 %v43, 112
    %v1160 = vpop.permute.xlu0 %1159
    %vm1161 = vcmp.lt.s32.totalorder %v54, 112
    %v1162 = vsel %vm1161, %v1158, %v1160
    %v1163 = vsel %vm1161, %v1156, %v1158
    %v1164 = vsel %vm1161, %v1154, %v1156
    %v1165 = vsel %vm1161, %v1160, %v1154
    %s1166 = scalar_lea.vmem %s1, 28
    %v1167 = vld [vmem:[%s1166] sm:$0xf]
    %v1169 = vlaneseq
    %v1170 = vshrl.u32 %v1169, 7
    %v1171 = vsub.s32 0, %v1170
    %v1172 = vrot.slane %v1167, %v1171
    %v1173 = vlaneseq
    %v1174 = vshrl.u32 %v1173, 7
    %v1175 = vsub.s32 1, %v1174
    %v1176 = vrot.slane %v1167, %v1175
    %v1177 = vlaneseq
    %v1178 = vshrl.u32 %v1177, 7
    %v1179 = vsub.s32 2, %v1178
    %v1180 = vrot.slane %v1167, %v1179
    %v1181 = vlaneseq
    %v1182 = vshrl.u32 %v1181, 7
    %v1183 = vsub.s32 3, %v1182
    %v1184 = vrot.slane %v1167, %v1183
    %v1189 = vmul.f32 %v1164, %v1172
    %v1190 = vmul.f32 %v1163, %v1176
    %v1191 = vmul.f32 %v1162, %v1180
    %v1192 = vmul.f32 %v1165, %v1184
    %s1193 = scalar_lea.vmem %s2, 112
    %v1194 = vld [vmem:[%s1193] sm:$0xf]
    %1196 = vset.pattern.permute.xlu0 0
    %1197 = vperm.xlu0 %1196, %v1194
    %v1198 = vpop.permute.xlu0 %1197
    %v1200 = vlaneseq
    %v1201 = vshrl.u32 %v1200, 7
    %v1202 = vsub.s32 0, %v1201
    %v1203 = vrot.slane %v1189, %v1202
    %v1204 = vlaneseq
    %v1205 = vshrl.u32 %v1204, 7
    %v1206 = vsub.s32 0, %v1205
    %v1207 = vrot.slane %v1190, %v1206
    %v1208 = vlaneseq
    %v1209 = vshrl.u32 %v1208, 7
    %v1210 = vsub.s32 0, %v1209
    %v1211 = vrot.slane %v1191, %v1210
    %v1212 = vlaneseq
    %v1213 = vshrl.u32 %v1212, 7
    %v1214 = vsub.s32 0, %v1213
    %v1215 = vrot.slane %v1192, %v1214
    %v1216 = vmul.f32 %v1198, %v1203
    %v1217 = vmul.f32 %v1198, %v1207
    %v1218 = vmul.f32 %v1198, %v1211
    %v1219 = vmul.f32 %v1198, %v1215
    %v1220 = vadd.f32 %v1149, %v1216
    %v1221 = vadd.f32 %v1150, %v1217
    %v1222 = vadd.f32 %v1151, %v1218
    %v1223 = vadd.f32 %v1152, %v1219
    %s1224 = scalar_lea.vmem %s2, 116
    %v1225 = vld [vmem:[%s1224] sm:$0xf]
    %1227 = vset.pattern.permute.xlu0 0
    %1228 = vperm.xlu0 %1227, %v1225
    %v1229 = vpop.permute.xlu0 %1228
    %v1231 = vlaneseq
    %v1232 = vshrl.u32 %v1231, 7
    %v1233 = vsub.s32 1, %v1232
    %v1234 = vrot.slane %v1189, %v1233
    %v1235 = vlaneseq
    %v1236 = vshrl.u32 %v1235, 7
    %v1237 = vsub.s32 1, %v1236
    %v1238 = vrot.slane %v1190, %v1237
    %v1239 = vlaneseq
    %v1240 = vshrl.u32 %v1239, 7
    %v1241 = vsub.s32 1, %v1240
    %v1242 = vrot.slane %v1191, %v1241
    %v1243 = vlaneseq
    %v1244 = vshrl.u32 %v1243, 7
    %v1245 = vsub.s32 1, %v1244
    %v1246 = vrot.slane %v1192, %v1245
    %v1247 = vmul.f32 %v1229, %v1234
    %v1248 = vmul.f32 %v1229, %v1238
    %v1249 = vmul.f32 %v1229, %v1242
    %v1250 = vmul.f32 %v1229, %v1246
    %v1251 = vadd.f32 %v1220, %v1247
    %v1252 = vadd.f32 %v1221, %v1248
    %v1253 = vadd.f32 %v1222, %v1249
    %v1254 = vadd.f32 %v1223, %v1250
    %s1255 = scalar_lea.vmem %s2, 120
    %v1256 = vld [vmem:[%s1255] sm:$0xf]
    %1258 = vset.pattern.permute.xlu0 0
    %1259 = vperm.xlu0 %1258, %v1256
    %v1260 = vpop.permute.xlu0 %1259
    %v1262 = vlaneseq
    %v1263 = vshrl.u32 %v1262, 7
    %v1264 = vsub.s32 2, %v1263
    %v1265 = vrot.slane %v1189, %v1264
    %v1266 = vlaneseq
    %v1267 = vshrl.u32 %v1266, 7
    %v1268 = vsub.s32 2, %v1267
    %v1269 = vrot.slane %v1190, %v1268
    %v1270 = vlaneseq
    %v1271 = vshrl.u32 %v1270, 7
    %v1272 = vsub.s32 2, %v1271
    %v1273 = vrot.slane %v1191, %v1272
    %v1274 = vlaneseq
    %v1275 = vshrl.u32 %v1274, 7
    %v1276 = vsub.s32 2, %v1275
    %v1277 = vrot.slane %v1192, %v1276
    %v1278 = vmul.f32 %v1260, %v1265
    %v1279 = vmul.f32 %v1260, %v1269
    %v1280 = vmul.f32 %v1260, %v1273
    %v1281 = vmul.f32 %v1260, %v1277
    %v1282 = vadd.f32 %v1251, %v1278
    %v1283 = vadd.f32 %v1252, %v1279
    %v1284 = vadd.f32 %v1253, %v1280
    %v1285 = vadd.f32 %v1254, %v1281
    %s1286 = scalar_lea.vmem %s2, 124
    %v1287 = vld [vmem:[%s1286] sm:$0xf]
    %1289 = vset.pattern.permute.xlu0 0
    %1290 = vperm.xlu0 %1289, %v1287
    %v1291 = vpop.permute.xlu0 %1290
    %v1293 = vlaneseq
    %v1294 = vshrl.u32 %v1293, 7
    %v1295 = vsub.s32 3, %v1294
    %v1296 = vrot.slane %v1189, %v1295
    %v1297 = vlaneseq
    %v1298 = vshrl.u32 %v1297, 7
    %v1299 = vsub.s32 3, %v1298
    %v1300 = vrot.slane %v1190, %v1299
    %v1301 = vlaneseq
    %v1302 = vshrl.u32 %v1301, 7
    %v1303 = vsub.s32 3, %v1302
    %v1304 = vrot.slane %v1191, %v1303
    %v1305 = vlaneseq
    %v1306 = vshrl.u32 %v1305, 7
    %v1307 = vsub.s32 3, %v1306
    %v1308 = vrot.slane %v1192, %v1307
    %v1309 = vmul.f32 %v1291, %v1296
    %v1310 = vmul.f32 %v1291, %v1300
    %v1311 = vmul.f32 %v1291, %v1304
    %v1312 = vmul.f32 %v1291, %v1308
    %v1313 = vadd.f32 %v1282, %v1309
    %v1314 = vadd.f32 %v1283, %v1310
    %v1315 = vadd.f32 %v1284, %v1311
    %v1316 = vadd.f32 %v1285, %v1312
    %1317 = vrot.lane.b32.xlu0 %v36, 111
    %v1318 = vpop.permute.xlu0 %1317
    %1319 = vrot.lane.b32.xlu0 %v40, 111
    %v1320 = vpop.permute.xlu0 %1319
    %1321 = vrot.lane.b32.xlu0 %v38, 111
    %v1322 = vpop.permute.xlu0 %1321
    %1323 = vrot.lane.b32.xlu0 %v43, 111
    %v1324 = vpop.permute.xlu0 %1323
    %vm1325 = vcmp.lt.s32.totalorder %v54, 111
    %v1326 = vsel %vm1325, %v1322, %v1324
    %v1327 = vsel %vm1325, %v1320, %v1322
    %v1328 = vsel %vm1325, %v1318, %v1320
    %v1329 = vsel %vm1325, %v1324, %v1318
    %s1330 = scalar_lea.vmem %s1, 32
    %v1331 = vld [vmem:[%s1330] sm:$0xf]
    %v1333 = vlaneseq
    %v1334 = vshrl.u32 %v1333, 7
    %v1335 = vsub.s32 0, %v1334
    %v1336 = vrot.slane %v1331, %v1335
    %v1337 = vlaneseq
    %v1338 = vshrl.u32 %v1337, 7
    %v1339 = vsub.s32 1, %v1338
    %v1340 = vrot.slane %v1331, %v1339
    %v1341 = vlaneseq
    %v1342 = vshrl.u32 %v1341, 7
    %v1343 = vsub.s32 2, %v1342
    %v1344 = vrot.slane %v1331, %v1343
    %v1345 = vlaneseq
    %v1346 = vshrl.u32 %v1345, 7
    %v1347 = vsub.s32 3, %v1346
    %v1348 = vrot.slane %v1331, %v1347
    %v1353 = vmul.f32 %v1328, %v1336
    %v1354 = vmul.f32 %v1327, %v1340
    %v1355 = vmul.f32 %v1326, %v1344
    %v1356 = vmul.f32 %v1329, %v1348
    %s1357 = scalar_lea.vmem %s2, 128
    %v1358 = vld [vmem:[%s1357] sm:$0xf]
    %1360 = vset.pattern.permute.xlu0 0
    %1361 = vperm.xlu0 %1360, %v1358
    %v1362 = vpop.permute.xlu0 %1361
    %v1364 = vlaneseq
    %v1365 = vshrl.u32 %v1364, 7
    %v1366 = vsub.s32 0, %v1365
    %v1367 = vrot.slane %v1353, %v1366
    %v1368 = vlaneseq
    %v1369 = vshrl.u32 %v1368, 7
    %v1370 = vsub.s32 0, %v1369
    %v1371 = vrot.slane %v1354, %v1370
    %v1372 = vlaneseq
    %v1373 = vshrl.u32 %v1372, 7
    %v1374 = vsub.s32 0, %v1373
    %v1375 = vrot.slane %v1355, %v1374
    %v1376 = vlaneseq
    %v1377 = vshrl.u32 %v1376, 7
    %v1378 = vsub.s32 0, %v1377
    %v1379 = vrot.slane %v1356, %v1378
    %v1380 = vmul.f32 %v1362, %v1367
    %v1381 = vmul.f32 %v1362, %v1371
    %v1382 = vmul.f32 %v1362, %v1375
    %v1383 = vmul.f32 %v1362, %v1379
    %v1384 = vadd.f32 %v1313, %v1380
    %v1385 = vadd.f32 %v1314, %v1381
    %v1386 = vadd.f32 %v1315, %v1382
    %v1387 = vadd.f32 %v1316, %v1383
    %s1388 = scalar_lea.vmem %s2, 132
    %v1389 = vld [vmem:[%s1388] sm:$0xf]
    %1391 = vset.pattern.permute.xlu0 0
    %1392 = vperm.xlu0 %1391, %v1389
    %v1393 = vpop.permute.xlu0 %1392
    %v1395 = vlaneseq
    %v1396 = vshrl.u32 %v1395, 7
    %v1397 = vsub.s32 1, %v1396
    %v1398 = vrot.slane %v1353, %v1397
    %v1399 = vlaneseq
    %v1400 = vshrl.u32 %v1399, 7
    %v1401 = vsub.s32 1, %v1400
    %v1402 = vrot.slane %v1354, %v1401
    %v1403 = vlaneseq
    %v1404 = vshrl.u32 %v1403, 7
    %v1405 = vsub.s32 1, %v1404
    %v1406 = vrot.slane %v1355, %v1405
    %v1407 = vlaneseq
    %v1408 = vshrl.u32 %v1407, 7
    %v1409 = vsub.s32 1, %v1408
    %v1410 = vrot.slane %v1356, %v1409
    %v1411 = vmul.f32 %v1393, %v1398
    %v1412 = vmul.f32 %v1393, %v1402
    %v1413 = vmul.f32 %v1393, %v1406
    %v1414 = vmul.f32 %v1393, %v1410
    %v1415 = vadd.f32 %v1384, %v1411
    %v1416 = vadd.f32 %v1385, %v1412
    %v1417 = vadd.f32 %v1386, %v1413
    %v1418 = vadd.f32 %v1387, %v1414
    %s1419 = scalar_lea.vmem %s2, 136
    %v1420 = vld [vmem:[%s1419] sm:$0xf]
    %1422 = vset.pattern.permute.xlu0 0
    %1423 = vperm.xlu0 %1422, %v1420
    %v1424 = vpop.permute.xlu0 %1423
    %v1426 = vlaneseq
    %v1427 = vshrl.u32 %v1426, 7
    %v1428 = vsub.s32 2, %v1427
    %v1429 = vrot.slane %v1353, %v1428
    %v1430 = vlaneseq
    %v1431 = vshrl.u32 %v1430, 7
    %v1432 = vsub.s32 2, %v1431
    %v1433 = vrot.slane %v1354, %v1432
    %v1434 = vlaneseq
    %v1435 = vshrl.u32 %v1434, 7
    %v1436 = vsub.s32 2, %v1435
    %v1437 = vrot.slane %v1355, %v1436
    %v1438 = vlaneseq
    %v1439 = vshrl.u32 %v1438, 7
    %v1440 = vsub.s32 2, %v1439
    %v1441 = vrot.slane %v1356, %v1440
    %v1442 = vmul.f32 %v1424, %v1429
    %v1443 = vmul.f32 %v1424, %v1433
    %v1444 = vmul.f32 %v1424, %v1437
    %v1445 = vmul.f32 %v1424, %v1441
    %v1446 = vadd.f32 %v1415, %v1442
    %v1447 = vadd.f32 %v1416, %v1443
    %v1448 = vadd.f32 %v1417, %v1444
    %v1449 = vadd.f32 %v1418, %v1445
    %s1450 = scalar_lea.vmem %s2, 140
    %v1451 = vld [vmem:[%s1450] sm:$0xf]
    %1453 = vset.pattern.permute.xlu0 0
    %1454 = vperm.xlu0 %1453, %v1451
    %v1455 = vpop.permute.xlu0 %1454
    %v1457 = vlaneseq
    %v1458 = vshrl.u32 %v1457, 7
    %v1459 = vsub.s32 3, %v1458
    %v1460 = vrot.slane %v1353, %v1459
    %v1461 = vlaneseq
    %v1462 = vshrl.u32 %v1461, 7
    %v1463 = vsub.s32 3, %v1462
    %v1464 = vrot.slane %v1354, %v1463
    %v1465 = vlaneseq
    %v1466 = vshrl.u32 %v1465, 7
    %v1467 = vsub.s32 3, %v1466
    %v1468 = vrot.slane %v1355, %v1467
    %v1469 = vlaneseq
    %v1470 = vshrl.u32 %v1469, 7
    %v1471 = vsub.s32 3, %v1470
    %v1472 = vrot.slane %v1356, %v1471
    %v1473 = vmul.f32 %v1455, %v1460
    %v1474 = vmul.f32 %v1455, %v1464
    %v1475 = vmul.f32 %v1455, %v1468
    %v1476 = vmul.f32 %v1455, %v1472
    %v1477 = vadd.f32 %v1446, %v1473
    %v1478 = vadd.f32 %v1447, %v1474
    %v1479 = vadd.f32 %v1448, %v1475
    %v1480 = vadd.f32 %v1449, %v1476
    %v1481 = vld [vmem:[%s3] sm:$0xf]
    %1483 = vset.pattern.permute.xlu0 0
    %1484 = vperm.xlu0 %1483, %v1481
    %v1485 = vpop.permute.xlu0 %1484
    %v1487 = vadd.f32 %v1477, %v1485
    %v1488 = vadd.f32 %v1478, %v1485
    %v1489 = vadd.f32 %v1479, %v1485
    %v1490 = vadd.f32 %v1480, %v1485
    %vm1491 = vcmask 1043456
    %v1492 = vsel %vm1491, %v1487, 0.0
    %v1493 = vsel %vm1491, %v1488, 0.0
    %v1494 = vadd.f32 %v1492, %v1493
    %v1495 = vsel %vm1491, %v1489, 0.0
    %v1496 = vadd.f32 %v1494, %v1495
    %v1497 = vsel %vm1491, %v1490, 0.0
    %v1498 = vadd.f32 %v1496, %v1497
    %1499 = vadd.xlane.f32.xlu0 %v1498
    %v1500 = vpop.xlane.xlu0 %1499
    %v1501 = vmul.f32 %v1500, 0.001953125
    %v1502 = vsub.f32 %v1487, %v1501
    %v1503 = vsub.f32 %v1488, %v1501
    %v1504 = vsub.f32 %v1489, %v1501
    %v1505 = vsub.f32 %v1490, %v1501
    %v1506 = vmul.f32 %v1502, %v1502
    %v1507 = vmul.f32 %v1503, %v1503
    %v1508 = vmul.f32 %v1504, %v1504
    %v1509 = vmul.f32 %v1505, %v1505
    %v1510 = vsel %vm1491, %v1506, 0.0
    %v1511 = vsel %vm1491, %v1507, 0.0
    %v1512 = vadd.f32 %v1510, %v1511
    %v1513 = vsel %vm1491, %v1508, 0.0
    %v1514 = vadd.f32 %v1512, %v1513
    %v1515 = vsel %vm1491, %v1509, 0.0
    %v1516 = vadd.f32 %v1514, %v1515
    %1517 = vadd.xlane.f32.xlu0 %v1516
    %v1518 = vpop.xlane.xlu0 %1517
    %v1519 = vmul.f32 %v1518, 0.001953125
    %v1520 = vld [vmem:[%s4] sm:$0xf]
    %v1521 = vadd.f32 %v1519, 1e-05
    %v1522 = vrsqrt.pop %v1521
    %v1523 = vmul.f32 %v1520, %v1522
    %1525 = vset.pattern.permute.xlu0 0
    %1526 = vperm.xlu0 %1525, %v1523
    %v1527 = vpop.permute.xlu0 %1526
    %v1529 = vmul.f32 %v1502, %v1527
    %v1530 = vmul.f32 %v1503, %v1527
    %v1531 = vmul.f32 %v1504, %v1527
    %v1532 = vmul.f32 %v1505, %v1527
    %v1533 = vld [vmem:[%s5] sm:$0xf]
    %1535 = vset.pattern.permute.xlu0 0
    %1536 = vperm.xlu0 %1535, %v1533
    %v1537 = vpop.permute.xlu0 %1536
    %v1539 = vadd.f32 %v1529, %v1537
    %v1540 = vadd.f32 %v1530, %v1537
    %v1541 = vadd.f32 %v1531, %v1537
    %v1542 = vadd.f32 %v1532, %v1537
    %v1543 = vmax.f32 %v1539, 0.0
    %v1544 = vmax.f32 %v1540, 0.0
    %v1545 = vmax.f32 %v1541, 0.0
    %v1546 = vmax.f32 %v1542, 0.0
    %1547 = vrot.lane.b32.xlu0 %v1543, 17
    %v1548 = vpop.permute.xlu0 %1547
    %1549 = vrot.lane.b32.xlu0 %v1544, 17
    %v1550 = vpop.permute.xlu0 %1549
    %1551 = vrot.lane.b32.xlu0 %v1545, 17
    %v1552 = vpop.permute.xlu0 %1551
    %1553 = vrot.lane.b32.xlu0 %v1546, 17
    %v1554 = vpop.permute.xlu0 %1553
    %v1555 = vsel %vm55, %v1552, %v1554
    %v1556 = vsel %vm55, %v1550, %v1552
    %v1557 = vsel %vm55, %v1548, %v1550
    %v1558 = vsel %vm55, %v1554, %v1548
    %v1559 = vmul.f32 %v1558, %v65
    %v1560 = vmul.f32 %v1557, %v69
    %v1561 = vmul.f32 %v1556, %v73
    %v1562 = vmul.f32 %v1555, %v77
    %v1563 = vld [vmem:[%s6] sm:$0xf]
    %1565 = vset.pattern.permute.xlu0 0
    %1566 = vperm.xlu0 %1565, %v1563
    %v1567 = vpop.permute.xlu0 %1566
    %v1569 = vlaneseq
    %v1570 = vshrl.u32 %v1569, 7
    %v1571 = vsub.s32 0, %v1570
    %v1572 = vrot.slane %v1559, %v1571
    %v1573 = vlaneseq
    %v1574 = vshrl.u32 %v1573, 7
    %v1575 = vsub.s32 0, %v1574
    %v1576 = vrot.slane %v1560, %v1575
    %v1577 = vlaneseq
    %v1578 = vshrl.u32 %v1577, 7
    %v1579 = vsub.s32 0, %v1578
    %v1580 = vrot.slane %v1561, %v1579
    %v1581 = vlaneseq
    %v1582 = vshrl.u32 %v1581, 7
    %v1583 = vsub.s32 0, %v1582
    %v1584 = vrot.slane %v1562, %v1583
    %v1585 = vmul.f32 %v1567, %v1572
    %v1586 = vmul.f32 %v1567, %v1576
    %v1587 = vmul.f32 %v1567, %v1580
    %v1588 = vmul.f32 %v1567, %v1584
    %v1589 = vadd.f32 %v1585, 0.0
    %v1590 = vadd.f32 %v1586, 0.0
    %v1591 = vadd.f32 %v1587, 0.0
    %v1592 = vadd.f32 %v1588, 0.0
    %s1593 = scalar_lea.vmem %s6, 4
    %v1594 = vld [vmem:[%s1593] sm:$0xf]
    %1596 = vset.pattern.permute.xlu0 0
    %1597 = vperm.xlu0 %1596, %v1594
    %v1598 = vpop.permute.xlu0 %1597
    %v1600 = vlaneseq
    %v1601 = vshrl.u32 %v1600, 7
    %v1602 = vsub.s32 1, %v1601
    %v1603 = vrot.slane %v1559, %v1602
    %v1604 = vlaneseq
    %v1605 = vshrl.u32 %v1604, 7
    %v1606 = vsub.s32 1, %v1605
    %v1607 = vrot.slane %v1560, %v1606
    %v1608 = vlaneseq
    %v1609 = vshrl.u32 %v1608, 7
    %v1610 = vsub.s32 1, %v1609
    %v1611 = vrot.slane %v1561, %v1610
    %v1612 = vlaneseq
    %v1613 = vshrl.u32 %v1612, 7
    %v1614 = vsub.s32 1, %v1613
    %v1615 = vrot.slane %v1562, %v1614
    %v1616 = vmul.f32 %v1598, %v1603
    %v1617 = vmul.f32 %v1598, %v1607
    %v1618 = vmul.f32 %v1598, %v1611
    %v1619 = vmul.f32 %v1598, %v1615
    %v1620 = vadd.f32 %v1589, %v1616
    %v1621 = vadd.f32 %v1590, %v1617
    %v1622 = vadd.f32 %v1591, %v1618
    %v1623 = vadd.f32 %v1592, %v1619
    %s1624 = scalar_lea.vmem %s6, 8
    %v1625 = vld [vmem:[%s1624] sm:$0xf]
    %1627 = vset.pattern.permute.xlu0 0
    %1628 = vperm.xlu0 %1627, %v1625
    %v1629 = vpop.permute.xlu0 %1628
    %v1631 = vlaneseq
    %v1632 = vshrl.u32 %v1631, 7
    %v1633 = vsub.s32 2, %v1632
    %v1634 = vrot.slane %v1559, %v1633
    %v1635 = vlaneseq
    %v1636 = vshrl.u32 %v1635, 7
    %v1637 = vsub.s32 2, %v1636
    %v1638 = vrot.slane %v1560, %v1637
    %v1639 = vlaneseq
    %v1640 = vshrl.u32 %v1639, 7
    %v1641 = vsub.s32 2, %v1640
    %v1642 = vrot.slane %v1561, %v1641
    %v1643 = vlaneseq
    %v1644 = vshrl.u32 %v1643, 7
    %v1645 = vsub.s32 2, %v1644
    %v1646 = vrot.slane %v1562, %v1645
    %v1647 = vmul.f32 %v1629, %v1634
    %v1648 = vmul.f32 %v1629, %v1638
    %v1649 = vmul.f32 %v1629, %v1642
    %v1650 = vmul.f32 %v1629, %v1646
    %v1651 = vadd.f32 %v1620, %v1647
    %v1652 = vadd.f32 %v1621, %v1648
    %v1653 = vadd.f32 %v1622, %v1649
    %v1654 = vadd.f32 %v1623, %v1650
    %s1655 = scalar_lea.vmem %s6, 12
    %v1656 = vld [vmem:[%s1655] sm:$0xf]
    %1658 = vset.pattern.permute.xlu0 0
    %1659 = vperm.xlu0 %1658, %v1656
    %v1660 = vpop.permute.xlu0 %1659
    %v1662 = vlaneseq
    %v1663 = vshrl.u32 %v1662, 7
    %v1664 = vsub.s32 3, %v1663
    %v1665 = vrot.slane %v1559, %v1664
    %v1666 = vlaneseq
    %v1667 = vshrl.u32 %v1666, 7
    %v1668 = vsub.s32 3, %v1667
    %v1669 = vrot.slane %v1560, %v1668
    %v1670 = vlaneseq
    %v1671 = vshrl.u32 %v1670, 7
    %v1672 = vsub.s32 3, %v1671
    %v1673 = vrot.slane %v1561, %v1672
    %v1674 = vlaneseq
    %v1675 = vshrl.u32 %v1674, 7
    %v1676 = vsub.s32 3, %v1675
    %v1677 = vrot.slane %v1562, %v1676
    %v1678 = vmul.f32 %v1660, %v1665
    %v1679 = vmul.f32 %v1660, %v1669
    %v1680 = vmul.f32 %v1660, %v1673
    %v1681 = vmul.f32 %v1660, %v1677
    %v1682 = vadd.f32 %v1651, %v1678
    %v1683 = vadd.f32 %v1652, %v1679
    %v1684 = vadd.f32 %v1653, %v1680
    %v1685 = vadd.f32 %v1654, %v1681
    %1686 = vrot.lane.b32.xlu0 %v1543, 16
    %v1687 = vpop.permute.xlu0 %1686
    %1688 = vrot.lane.b32.xlu0 %v1544, 16
    %v1689 = vpop.permute.xlu0 %1688
    %1690 = vrot.lane.b32.xlu0 %v1545, 16
    %v1691 = vpop.permute.xlu0 %1690
    %1692 = vrot.lane.b32.xlu0 %v1546, 16
    %v1693 = vpop.permute.xlu0 %1692
    %v1694 = vsel %vm217, %v1691, %v1693
    %v1695 = vsel %vm217, %v1689, %v1691
    %v1696 = vsel %vm217, %v1687, %v1689
    %v1697 = vsel %vm217, %v1693, %v1687
    %v1698 = vmul.f32 %v1697, %v228
    %v1699 = vmul.f32 %v1696, %v232
    %v1700 = vmul.f32 %v1695, %v236
    %v1701 = vmul.f32 %v1694, %v240
    %s1702 = scalar_lea.vmem %s6, 16
    %v1703 = vld [vmem:[%s1702] sm:$0xf]
    %1705 = vset.pattern.permute.xlu0 0
    %1706 = vperm.xlu0 %1705, %v1703
    %v1707 = vpop.permute.xlu0 %1706
    %v1709 = vlaneseq
    %v1710 = vshrl.u32 %v1709, 7
    %v1711 = vsub.s32 0, %v1710
    %v1712 = vrot.slane %v1698, %v1711
    %v1713 = vlaneseq
    %v1714 = vshrl.u32 %v1713, 7
    %v1715 = vsub.s32 0, %v1714
    %v1716 = vrot.slane %v1699, %v1715
    %v1717 = vlaneseq
    %v1718 = vshrl.u32 %v1717, 7
    %v1719 = vsub.s32 0, %v1718
    %v1720 = vrot.slane %v1700, %v1719
    %v1721 = vlaneseq
    %v1722 = vshrl.u32 %v1721, 7
    %v1723 = vsub.s32 0, %v1722
    %v1724 = vrot.slane %v1701, %v1723
    %v1725 = vmul.f32 %v1707, %v1712
    %v1726 = vmul.f32 %v1707, %v1716
    %v1727 = vmul.f32 %v1707, %v1720
    %v1728 = vmul.f32 %v1707, %v1724
    %v1729 = vadd.f32 %v1682, %v1725
    %v1730 = vadd.f32 %v1683, %v1726
    %v1731 = vadd.f32 %v1684, %v1727
    %v1732 = vadd.f32 %v1685, %v1728
    %s1733 = scalar_lea.vmem %s6, 20
    %v1734 = vld [vmem:[%s1733] sm:$0xf]
    %1736 = vset.pattern.permute.xlu0 0
    %1737 = vperm.xlu0 %1736, %v1734
    %v1738 = vpop.permute.xlu0 %1737
    %v1740 = vlaneseq
    %v1741 = vshrl.u32 %v1740, 7
    %v1742 = vsub.s32 1, %v1741
    %v1743 = vrot.slane %v1698, %v1742
    %v1744 = vlaneseq
    %v1745 = vshrl.u32 %v1744, 7
    %v1746 = vsub.s32 1, %v1745
    %v1747 = vrot.slane %v1699, %v1746
    %v1748 = vlaneseq
    %v1749 = vshrl.u32 %v1748, 7
    %v1750 = vsub.s32 1, %v1749
    %v1751 = vrot.slane %v1700, %v1750
    %v1752 = vlaneseq
    %v1753 = vshrl.u32 %v1752, 7
    %v1754 = vsub.s32 1, %v1753
    %v1755 = vrot.slane %v1701, %v1754
    %v1756 = vmul.f32 %v1738, %v1743
    %v1757 = vmul.f32 %v1738, %v1747
    %v1758 = vmul.f32 %v1738, %v1751
    %v1759 = vmul.f32 %v1738, %v1755
    %v1760 = vadd.f32 %v1729, %v1756
    %v1761 = vadd.f32 %v1730, %v1757
    %v1762 = vadd.f32 %v1731, %v1758
    %v1763 = vadd.f32 %v1732, %v1759
    %s1764 = scalar_lea.vmem %s6, 24
    %v1765 = vld [vmem:[%s1764] sm:$0xf]
    %1767 = vset.pattern.permute.xlu0 0
    %1768 = vperm.xlu0 %1767, %v1765
    %v1769 = vpop.permute.xlu0 %1768
    %v1771 = vlaneseq
    %v1772 = vshrl.u32 %v1771, 7
    %v1773 = vsub.s32 2, %v1772
    %v1774 = vrot.slane %v1698, %v1773
    %v1775 = vlaneseq
    %v1776 = vshrl.u32 %v1775, 7
    %v1777 = vsub.s32 2, %v1776
    %v1778 = vrot.slane %v1699, %v1777
    %v1779 = vlaneseq
    %v1780 = vshrl.u32 %v1779, 7
    %v1781 = vsub.s32 2, %v1780
    %v1782 = vrot.slane %v1700, %v1781
    %v1783 = vlaneseq
    %v1784 = vshrl.u32 %v1783, 7
    %v1785 = vsub.s32 2, %v1784
    %v1786 = vrot.slane %v1701, %v1785
    %v1787 = vmul.f32 %v1769, %v1774
    %v1788 = vmul.f32 %v1769, %v1778
    %v1789 = vmul.f32 %v1769, %v1782
    %v1790 = vmul.f32 %v1769, %v1786
    %v1791 = vadd.f32 %v1760, %v1787
    %v1792 = vadd.f32 %v1761, %v1788
    %v1793 = vadd.f32 %v1762, %v1789
    %v1794 = vadd.f32 %v1763, %v1790
    %s1795 = scalar_lea.vmem %s6, 28
    %v1796 = vld [vmem:[%s1795] sm:$0xf]
    %1798 = vset.pattern.permute.xlu0 0
    %1799 = vperm.xlu0 %1798, %v1796
    %v1800 = vpop.permute.xlu0 %1799
    %v1802 = vlaneseq
    %v1803 = vshrl.u32 %v1802, 7
    %v1804 = vsub.s32 3, %v1803
    %v1805 = vrot.slane %v1698, %v1804
    %v1806 = vlaneseq
    %v1807 = vshrl.u32 %v1806, 7
    %v1808 = vsub.s32 3, %v1807
    %v1809 = vrot.slane %v1699, %v1808
    %v1810 = vlaneseq
    %v1811 = vshrl.u32 %v1810, 7
    %v1812 = vsub.s32 3, %v1811
    %v1813 = vrot.slane %v1700, %v1812
    %v1814 = vlaneseq
    %v1815 = vshrl.u32 %v1814, 7
    %v1816 = vsub.s32 3, %v1815
    %v1817 = vrot.slane %v1701, %v1816
    %v1818 = vmul.f32 %v1800, %v1805
    %v1819 = vmul.f32 %v1800, %v1809
    %v1820 = vmul.f32 %v1800, %v1813
    %v1821 = vmul.f32 %v1800, %v1817
    %v1822 = vadd.f32 %v1791, %v1818
    %v1823 = vadd.f32 %v1792, %v1819
    %v1824 = vadd.f32 %v1793, %v1820
    %v1825 = vadd.f32 %v1794, %v1821
    %1826 = vrot.lane.b32.xlu0 %v1543, 15
    %v1827 = vpop.permute.xlu0 %1826
    %1828 = vrot.lane.b32.xlu0 %v1544, 15
    %v1829 = vpop.permute.xlu0 %1828
    %1830 = vrot.lane.b32.xlu0 %v1545, 15
    %v1831 = vpop.permute.xlu0 %1830
    %1832 = vrot.lane.b32.xlu0 %v1546, 15
    %v1833 = vpop.permute.xlu0 %1832
    %v1834 = vsel %vm381, %v1831, %v1833
    %v1835 = vsel %vm381, %v1829, %v1831
    %v1836 = vsel %vm381, %v1827, %v1829
    %v1837 = vsel %vm381, %v1833, %v1827
    %v1838 = vmul.f32 %v1837, %v392
    %v1839 = vmul.f32 %v1836, %v396
    %v1840 = vmul.f32 %v1835, %v400
    %v1841 = vmul.f32 %v1834, %v404
    %s1842 = scalar_lea.vmem %s6, 32
    %v1843 = vld [vmem:[%s1842] sm:$0xf]
    %1845 = vset.pattern.permute.xlu0 0
    %1846 = vperm.xlu0 %1845, %v1843
    %v1847 = vpop.permute.xlu0 %1846
    %v1849 = vlaneseq
    %v1850 = vshrl.u32 %v1849, 7
    %v1851 = vsub.s32 0, %v1850
    %v1852 = vrot.slane %v1838, %v1851
    %v1853 = vlaneseq
    %v1854 = vshrl.u32 %v1853, 7
    %v1855 = vsub.s32 0, %v1854
    %v1856 = vrot.slane %v1839, %v1855
    %v1857 = vlaneseq
    %v1858 = vshrl.u32 %v1857, 7
    %v1859 = vsub.s32 0, %v1858
    %v1860 = vrot.slane %v1840, %v1859
    %v1861 = vlaneseq
    %v1862 = vshrl.u32 %v1861, 7
    %v1863 = vsub.s32 0, %v1862
    %v1864 = vrot.slane %v1841, %v1863
    %v1865 = vmul.f32 %v1847, %v1852
    %v1866 = vmul.f32 %v1847, %v1856
    %v1867 = vmul.f32 %v1847, %v1860
    %v1868 = vmul.f32 %v1847, %v1864
    %v1869 = vadd.f32 %v1822, %v1865
    %v1870 = vadd.f32 %v1823, %v1866
    %v1871 = vadd.f32 %v1824, %v1867
    %v1872 = vadd.f32 %v1825, %v1868
    %s1873 = scalar_lea.vmem %s6, 36
    %v1874 = vld [vmem:[%s1873] sm:$0xf]
    %1876 = vset.pattern.permute.xlu0 0
    %1877 = vperm.xlu0 %1876, %v1874
    %v1878 = vpop.permute.xlu0 %1877
    %v1880 = vlaneseq
    %v1881 = vshrl.u32 %v1880, 7
    %v1882 = vsub.s32 1, %v1881
    %v1883 = vrot.slane %v1838, %v1882
    %v1884 = vlaneseq
    %v1885 = vshrl.u32 %v1884, 7
    %v1886 = vsub.s32 1, %v1885
    %v1887 = vrot.slane %v1839, %v1886
    %v1888 = vlaneseq
    %v1889 = vshrl.u32 %v1888, 7
    %v1890 = vsub.s32 1, %v1889
    %v1891 = vrot.slane %v1840, %v1890
    %v1892 = vlaneseq
    %v1893 = vshrl.u32 %v1892, 7
    %v1894 = vsub.s32 1, %v1893
    %v1895 = vrot.slane %v1841, %v1894
    %v1896 = vmul.f32 %v1878, %v1883
    %v1897 = vmul.f32 %v1878, %v1887
    %v1898 = vmul.f32 %v1878, %v1891
    %v1899 = vmul.f32 %v1878, %v1895
    %v1900 = vadd.f32 %v1869, %v1896
    %v1901 = vadd.f32 %v1870, %v1897
    %v1902 = vadd.f32 %v1871, %v1898
    %v1903 = vadd.f32 %v1872, %v1899
    %s1904 = scalar_lea.vmem %s6, 40
    %v1905 = vld [vmem:[%s1904] sm:$0xf]
    %1907 = vset.pattern.permute.xlu0 0
    %1908 = vperm.xlu0 %1907, %v1905
    %v1909 = vpop.permute.xlu0 %1908
    %v1911 = vlaneseq
    %v1912 = vshrl.u32 %v1911, 7
    %v1913 = vsub.s32 2, %v1912
    %v1914 = vrot.slane %v1838, %v1913
    %v1915 = vlaneseq
    %v1916 = vshrl.u32 %v1915, 7
    %v1917 = vsub.s32 2, %v1916
    %v1918 = vrot.slane %v1839, %v1917
    %v1919 = vlaneseq
    %v1920 = vshrl.u32 %v1919, 7
    %v1921 = vsub.s32 2, %v1920
    %v1922 = vrot.slane %v1840, %v1921
    %v1923 = vlaneseq
    %v1924 = vshrl.u32 %v1923, 7
    %v1925 = vsub.s32 2, %v1924
    %v1926 = vrot.slane %v1841, %v1925
    %v1927 = vmul.f32 %v1909, %v1914
    %v1928 = vmul.f32 %v1909, %v1918
    %v1929 = vmul.f32 %v1909, %v1922
    %v1930 = vmul.f32 %v1909, %v1926
    %v1931 = vadd.f32 %v1900, %v1927
    %v1932 = vadd.f32 %v1901, %v1928
    %v1933 = vadd.f32 %v1902, %v1929
    %v1934 = vadd.f32 %v1903, %v1930
    %s1935 = scalar_lea.vmem %s6, 44
    %v1936 = vld [vmem:[%s1935] sm:$0xf]
    %1938 = vset.pattern.permute.xlu0 0
    %1939 = vperm.xlu0 %1938, %v1936
    %v1940 = vpop.permute.xlu0 %1939
    %v1942 = vlaneseq
    %v1943 = vshrl.u32 %v1942, 7
    %v1944 = vsub.s32 3, %v1943
    %v1945 = vrot.slane %v1838, %v1944
    %v1946 = vlaneseq
    %v1947 = vshrl.u32 %v1946, 7
    %v1948 = vsub.s32 3, %v1947
    %v1949 = vrot.slane %v1839, %v1948
    %v1950 = vlaneseq
    %v1951 = vshrl.u32 %v1950, 7
    %v1952 = vsub.s32 3, %v1951
    %v1953 = vrot.slane %v1840, %v1952
    %v1954 = vlaneseq
    %v1955 = vshrl.u32 %v1954, 7
    %v1956 = vsub.s32 3, %v1955
    %v1957 = vrot.slane %v1841, %v1956
    %v1958 = vmul.f32 %v1940, %v1945
    %v1959 = vmul.f32 %v1940, %v1949
    %v1960 = vmul.f32 %v1940, %v1953
    %v1961 = vmul.f32 %v1940, %v1957
    %v1962 = vadd.f32 %v1931, %v1958
    %v1963 = vadd.f32 %v1932, %v1959
    %v1964 = vadd.f32 %v1933, %v1960
    %v1965 = vadd.f32 %v1934, %v1961
    %1966 = vrot.lane.b32.xlu0 %v1543, 1
    %v1967 = vpop.permute.xlu0 %1966
    %1968 = vrot.lane.b32.xlu0 %v1544, 1
    %v1969 = vpop.permute.xlu0 %1968
    %1970 = vrot.lane.b32.xlu0 %v1545, 1
    %v1971 = vpop.permute.xlu0 %1970
    %1972 = vrot.lane.b32.xlu0 %v1546, 1
    %v1973 = vpop.permute.xlu0 %1972
    %v1974 = vsel %vm545, %v1971, %v1973
    %v1975 = vsel %vm545, %v1969, %v1971
    %v1976 = vsel %vm545, %v1967, %v1969
    %v1977 = vsel %vm545, %v1973, %v1967
    %v1978 = vmul.f32 %v1977, %v556
    %v1979 = vmul.f32 %v1976, %v560
    %v1980 = vmul.f32 %v1975, %v564
    %v1981 = vmul.f32 %v1974, %v568
    %s1982 = scalar_lea.vmem %s6, 48
    %v1983 = vld [vmem:[%s1982] sm:$0xf]
    %1985 = vset.pattern.permute.xlu0 0
    %1986 = vperm.xlu0 %1985, %v1983
    %v1987 = vpop.permute.xlu0 %1986
    %v1989 = vlaneseq
    %v1990 = vshrl.u32 %v1989, 7
    %v1991 = vsub.s32 0, %v1990
    %v1992 = vrot.slane %v1978, %v1991
    %v1993 = vlaneseq
    %v1994 = vshrl.u32 %v1993, 7
    %v1995 = vsub.s32 0, %v1994
    %v1996 = vrot.slane %v1979, %v1995
    %v1997 = vlaneseq
    %v1998 = vshrl.u32 %v1997, 7
    %v1999 = vsub.s32 0, %v1998
    %v2000 = vrot.slane %v1980, %v1999
    %v2001 = vlaneseq
    %v2002 = vshrl.u32 %v2001, 7
    %v2003 = vsub.s32 0, %v2002
    %v2004 = vrot.slane %v1981, %v2003
    %v2005 = vmul.f32 %v1987, %v1992
    %v2006 = vmul.f32 %v1987, %v1996
    %v2007 = vmul.f32 %v1987, %v2000
    %v2008 = vmul.f32 %v1987, %v2004
    %v2009 = vadd.f32 %v1962, %v2005
    %v2010 = vadd.f32 %v1963, %v2006
    %v2011 = vadd.f32 %v1964, %v2007
    %v2012 = vadd.f32 %v1965, %v2008
    %s2013 = scalar_lea.vmem %s6, 52
    %v2014 = vld [vmem:[%s2013] sm:$0xf]
    %2016 = vset.pattern.permute.xlu0 0
    %2017 = vperm.xlu0 %2016, %v2014
    %v2018 = vpop.permute.xlu0 %2017
    %v2020 = vlaneseq
    %v2021 = vshrl.u32 %v2020, 7
    %v2022 = vsub.s32 1, %v2021
    %v2023 = vrot.slane %v1978, %v2022
    %v2024 = vlaneseq
    %v2025 = vshrl.u32 %v2024, 7
    %v2026 = vsub.s32 1, %v2025
    %v2027 = vrot.slane %v1979, %v2026
    %v2028 = vlaneseq
    %v2029 = vshrl.u32 %v2028, 7
    %v2030 = vsub.s32 1, %v2029
    %v2031 = vrot.slane %v1980, %v2030
    %v2032 = vlaneseq
    %v2033 = vshrl.u32 %v2032, 7
    %v2034 = vsub.s32 1, %v2033
    %v2035 = vrot.slane %v1981, %v2034
    %v2036 = vmul.f32 %v2018, %v2023
    %v2037 = vmul.f32 %v2018, %v2027
    %v2038 = vmul.f32 %v2018, %v2031
    %v2039 = vmul.f32 %v2018, %v2035
    %v2040 = vadd.f32 %v2009, %v2036
    %v2041 = vadd.f32 %v2010, %v2037
    %v2042 = vadd.f32 %v2011, %v2038
    %v2043 = vadd.f32 %v2012, %v2039
    %s2044 = scalar_lea.vmem %s6, 56
    %v2045 = vld [vmem:[%s2044] sm:$0xf]
    %2047 = vset.pattern.permute.xlu0 0
    %2048 = vperm.xlu0 %2047, %v2045
    %v2049 = vpop.permute.xlu0 %2048
    %v2051 = vlaneseq
    %v2052 = vshrl.u32 %v2051, 7
    %v2053 = vsub.s32 2, %v2052
    %v2054 = vrot.slane %v1978, %v2053
    %v2055 = vlaneseq
    %v2056 = vshrl.u32 %v2055, 7
    %v2057 = vsub.s32 2, %v2056
    %v2058 = vrot.slane %v1979, %v2057
    %v2059 = vlaneseq
    %v2060 = vshrl.u32 %v2059, 7
    %v2061 = vsub.s32 2, %v2060
    %v2062 = vrot.slane %v1980, %v2061
    %v2063 = vlaneseq
    %v2064 = vshrl.u32 %v2063, 7
    %v2065 = vsub.s32 2, %v2064
    %v2066 = vrot.slane %v1981, %v2065
    %v2067 = vmul.f32 %v2049, %v2054
    %v2068 = vmul.f32 %v2049, %v2058
    %v2069 = vmul.f32 %v2049, %v2062
    %v2070 = vmul.f32 %v2049, %v2066
    %v2071 = vadd.f32 %v2040, %v2067
    %v2072 = vadd.f32 %v2041, %v2068
    %v2073 = vadd.f32 %v2042, %v2069
    %v2074 = vadd.f32 %v2043, %v2070
    %s2075 = scalar_lea.vmem %s6, 60
    %v2076 = vld [vmem:[%s2075] sm:$0xf]
    %2078 = vset.pattern.permute.xlu0 0
    %2079 = vperm.xlu0 %2078, %v2076
    %v2080 = vpop.permute.xlu0 %2079
    %v2082 = vlaneseq
    %v2083 = vshrl.u32 %v2082, 7
    %v2084 = vsub.s32 3, %v2083
    %v2085 = vrot.slane %v1978, %v2084
    %v2086 = vlaneseq
    %v2087 = vshrl.u32 %v2086, 7
    %v2088 = vsub.s32 3, %v2087
    %v2089 = vrot.slane %v1979, %v2088
    %v2090 = vlaneseq
    %v2091 = vshrl.u32 %v2090, 7
    %v2092 = vsub.s32 3, %v2091
    %v2093 = vrot.slane %v1980, %v2092
    %v2094 = vlaneseq
    %v2095 = vshrl.u32 %v2094, 7
    %v2096 = vsub.s32 3, %v2095
    %v2097 = vrot.slane %v1981, %v2096
    %v2098 = vmul.f32 %v2080, %v2085
    %v2099 = vmul.f32 %v2080, %v2089
    %v2100 = vmul.f32 %v2080, %v2093
    %v2101 = vmul.f32 %v2080, %v2097
    %v2102 = vadd.f32 %v2071, %v2098
    %v2103 = vadd.f32 %v2072, %v2099
    %v2104 = vadd.f32 %v2073, %v2100
    %v2105 = vadd.f32 %v2074, %v2101
    %s2106 = scalar_lea.vmem %s6, 64
    %v2107 = vld [vmem:[%s2106] sm:$0xf]
    %2109 = vset.pattern.permute.xlu0 0
    %2110 = vperm.xlu0 %2109, %v2107
    %v2111 = vpop.permute.xlu0 %2110
    %v2113 = vlaneseq
    %v2114 = vshrl.u32 %v2113, 7
    %v2115 = vsub.s32 0, %v2114
    %v2116 = vrot.slane %v1543, %v2115
    %v2117 = vlaneseq
    %v2118 = vshrl.u32 %v2117, 7
    %v2119 = vsub.s32 0, %v2118
    %v2120 = vrot.slane %v1544, %v2119
    %v2121 = vlaneseq
    %v2122 = vshrl.u32 %v2121, 7
    %v2123 = vsub.s32 0, %v2122
    %v2124 = vrot.slane %v1545, %v2123
    %v2125 = vlaneseq
    %v2126 = vshrl.u32 %v2125, 7
    %v2127 = vsub.s32 0, %v2126
    %v2128 = vrot.slane %v1546, %v2127
    %v2129 = vmul.f32 %v2111, %v2116
    %v2130 = vmul.f32 %v2111, %v2120
    %v2131 = vmul.f32 %v2111, %v2124
    %v2132 = vmul.f32 %v2111, %v2128
    %v2133 = vadd.f32 %v2102, %v2129
    %v2134 = vadd.f32 %v2103, %v2130
    %v2135 = vadd.f32 %v2104, %v2131
    %v2136 = vadd.f32 %v2105, %v2132
    %s2137 = scalar_lea.vmem %s6, 68
    %v2138 = vld [vmem:[%s2137] sm:$0xf]
    %2140 = vset.pattern.permute.xlu0 0
    %2141 = vperm.xlu0 %2140, %v2138
    %v2142 = vpop.permute.xlu0 %2141
    %v2144 = vlaneseq
    %v2145 = vshrl.u32 %v2144, 7
    %v2146 = vsub.s32 1, %v2145
    %v2147 = vrot.slane %v1543, %v2146
    %v2148 = vlaneseq
    %v2149 = vshrl.u32 %v2148, 7
    %v2150 = vsub.s32 1, %v2149
    %v2151 = vrot.slane %v1544, %v2150
    %v2152 = vlaneseq
    %v2153 = vshrl.u32 %v2152, 7
    %v2154 = vsub.s32 1, %v2153
    %v2155 = vrot.slane %v1545, %v2154
    %v2156 = vlaneseq
    %v2157 = vshrl.u32 %v2156, 7
    %v2158 = vsub.s32 1, %v2157
    %v2159 = vrot.slane %v1546, %v2158
    %v2160 = vmul.f32 %v2142, %v2147
    %v2161 = vmul.f32 %v2142, %v2151
    %v2162 = vmul.f32 %v2142, %v2155
    %v2163 = vmul.f32 %v2142, %v2159
    %v2164 = vadd.f32 %v2133, %v2160
    %v2165 = vadd.f32 %v2134, %v2161
    %v2166 = vadd.f32 %v2135, %v2162
    %v2167 = vadd.f32 %v2136, %v2163
    %s2168 = scalar_lea.vmem %s6, 72
    %v2169 = vld [vmem:[%s2168] sm:$0xf]
    %2171 = vset.pattern.permute.xlu0 0
    %2172 = vperm.xlu0 %2171, %v2169
    %v2173 = vpop.permute.xlu0 %2172
    %v2175 = vlaneseq
    %v2176 = vshrl.u32 %v2175, 7
    %v2177 = vsub.s32 2, %v2176
    %v2178 = vrot.slane %v1543, %v2177
    %v2179 = vlaneseq
    %v2180 = vshrl.u32 %v2179, 7
    %v2181 = vsub.s32 2, %v2180
    %v2182 = vrot.slane %v1544, %v2181
    %v2183 = vlaneseq
    %v2184 = vshrl.u32 %v2183, 7
    %v2185 = vsub.s32 2, %v2184
    %v2186 = vrot.slane %v1545, %v2185
    %v2187 = vlaneseq
    %v2188 = vshrl.u32 %v2187, 7
    %v2189 = vsub.s32 2, %v2188
    %v2190 = vrot.slane %v1546, %v2189
    %v2191 = vmul.f32 %v2173, %v2178
    %v2192 = vmul.f32 %v2173, %v2182
    %v2193 = vmul.f32 %v2173, %v2186
    %v2194 = vmul.f32 %v2173, %v2190
    %v2195 = vadd.f32 %v2164, %v2191
    %v2196 = vadd.f32 %v2165, %v2192
    %v2197 = vadd.f32 %v2166, %v2193
    %v2198 = vadd.f32 %v2167, %v2194
    %s2199 = scalar_lea.vmem %s6, 76
    %v2200 = vld [vmem:[%s2199] sm:$0xf]
    %2202 = vset.pattern.permute.xlu0 0
    %2203 = vperm.xlu0 %2202, %v2200
    %v2204 = vpop.permute.xlu0 %2203
    %v2206 = vlaneseq
    %v2207 = vshrl.u32 %v2206, 7
    %v2208 = vsub.s32 3, %v2207
    %v2209 = vrot.slane %v1543, %v2208
    %v2210 = vlaneseq
    %v2211 = vshrl.u32 %v2210, 7
    %v2212 = vsub.s32 3, %v2211
    %v2213 = vrot.slane %v1544, %v2212
    %v2214 = vlaneseq
    %v2215 = vshrl.u32 %v2214, 7
    %v2216 = vsub.s32 3, %v2215
    %v2217 = vrot.slane %v1545, %v2216
    %v2218 = vlaneseq
    %v2219 = vshrl.u32 %v2218, 7
    %v2220 = vsub.s32 3, %v2219
    %v2221 = vrot.slane %v1546, %v2220
    %v2222 = vmul.f32 %v2204, %v2209
    %v2223 = vmul.f32 %v2204, %v2213
    %v2224 = vmul.f32 %v2204, %v2217
    %v2225 = vmul.f32 %v2204, %v2221
    %v2226 = vadd.f32 %v2195, %v2222
    %v2227 = vadd.f32 %v2196, %v2223
    %v2228 = vadd.f32 %v2197, %v2224
    %v2229 = vadd.f32 %v2198, %v2225
    %2230 = vrot.lane.b32.xlu0 %v1543, 127
    %v2231 = vpop.permute.xlu0 %2230
    %2232 = vrot.lane.b32.xlu0 %v1544, 127
    %v2233 = vpop.permute.xlu0 %2232
    %2234 = vrot.lane.b32.xlu0 %v1545, 127
    %v2235 = vpop.permute.xlu0 %2234
    %2236 = vrot.lane.b32.xlu0 %v1546, 127
    %v2237 = vpop.permute.xlu0 %2236
    %v2238 = vsel %vm833, %v2235, %v2237
    %v2239 = vsel %vm833, %v2233, %v2235
    %v2240 = vsel %vm833, %v2231, %v2233
    %v2241 = vsel %vm833, %v2237, %v2231
    %v2242 = vmul.f32 %v2240, %v844
    %v2243 = vmul.f32 %v2239, %v848
    %v2244 = vmul.f32 %v2238, %v852
    %v2245 = vmul.f32 %v2241, %v856
    %s2246 = scalar_lea.vmem %s6, 80
    %v2247 = vld [vmem:[%s2246] sm:$0xf]
    %2249 = vset.pattern.permute.xlu0 0
    %2250 = vperm.xlu0 %2249, %v2247
    %v2251 = vpop.permute.xlu0 %2250
    %v2253 = vlaneseq
    %v2254 = vshrl.u32 %v2253, 7
    %v2255 = vsub.s32 0, %v2254
    %v2256 = vrot.slane %v2242, %v2255
    %v2257 = vlaneseq
    %v2258 = vshrl.u32 %v2257, 7
    %v2259 = vsub.s32 0, %v2258
    %v2260 = vrot.slane %v2243, %v2259
    %v2261 = vlaneseq
    %v2262 = vshrl.u32 %v2261, 7
    %v2263 = vsub.s32 0, %v2262
    %v2264 = vrot.slane %v2244, %v2263
    %v2265 = vlaneseq
    %v2266 = vshrl.u32 %v2265, 7
    %v2267 = vsub.s32 0, %v2266
    %v2268 = vrot.slane %v2245, %v2267
    %v2269 = vmul.f32 %v2251, %v2256
    %v2270 = vmul.f32 %v2251, %v2260
    %v2271 = vmul.f32 %v2251, %v2264
    %v2272 = vmul.f32 %v2251, %v2268
    %v2273 = vadd.f32 %v2226, %v2269
    %v2274 = vadd.f32 %v2227, %v2270
    %v2275 = vadd.f32 %v2228, %v2271
    %v2276 = vadd.f32 %v2229, %v2272
    %s2277 = scalar_lea.vmem %s6, 84
    %v2278 = vld [vmem:[%s2277] sm:$0xf]
    %2280 = vset.pattern.permute.xlu0 0
    %2281 = vperm.xlu0 %2280, %v2278
    %v2282 = vpop.permute.xlu0 %2281
    %v2284 = vlaneseq
    %v2285 = vshrl.u32 %v2284, 7
    %v2286 = vsub.s32 1, %v2285
    %v2287 = vrot.slane %v2242, %v2286
    %v2288 = vlaneseq
    %v2289 = vshrl.u32 %v2288, 7
    %v2290 = vsub.s32 1, %v2289
    %v2291 = vrot.slane %v2243, %v2290
    %v2292 = vlaneseq
    %v2293 = vshrl.u32 %v2292, 7
    %v2294 = vsub.s32 1, %v2293
    %v2295 = vrot.slane %v2244, %v2294
    %v2296 = vlaneseq
    %v2297 = vshrl.u32 %v2296, 7
    %v2298 = vsub.s32 1, %v2297
    %v2299 = vrot.slane %v2245, %v2298
    %v2300 = vmul.f32 %v2282, %v2287
    %v2301 = vmul.f32 %v2282, %v2291
    %v2302 = vmul.f32 %v2282, %v2295
    %v2303 = vmul.f32 %v2282, %v2299
    %v2304 = vadd.f32 %v2273, %v2300
    %v2305 = vadd.f32 %v2274, %v2301
    %v2306 = vadd.f32 %v2275, %v2302
    %v2307 = vadd.f32 %v2276, %v2303
    %s2308 = scalar_lea.vmem %s6, 88
    %v2309 = vld [vmem:[%s2308] sm:$0xf]
    %2311 = vset.pattern.permute.xlu0 0
    %2312 = vperm.xlu0 %2311, %v2309
    %v2313 = vpop.permute.xlu0 %2312
    %v2315 = vlaneseq
    %v2316 = vshrl.u32 %v2315, 7
    %v2317 = vsub.s32 2, %v2316
    %v2318 = vrot.slane %v2242, %v2317
    %v2319 = vlaneseq
    %v2320 = vshrl.u32 %v2319, 7
    %v2321 = vsub.s32 2, %v2320
    %v2322 = vrot.slane %v2243, %v2321
    %v2323 = vlaneseq
    %v2324 = vshrl.u32 %v2323, 7
    %v2325 = vsub.s32 2, %v2324
    %v2326 = vrot.slane %v2244, %v2325
    %v2327 = vlaneseq
    %v2328 = vshrl.u32 %v2327, 7
    %v2329 = vsub.s32 2, %v2328
    %v2330 = vrot.slane %v2245, %v2329
    %v2331 = vmul.f32 %v2313, %v2318
    %v2332 = vmul.f32 %v2313, %v2322
    %v2333 = vmul.f32 %v2313, %v2326
    %v2334 = vmul.f32 %v2313, %v2330
    %v2335 = vadd.f32 %v2304, %v2331
    %v2336 = vadd.f32 %v2305, %v2332
    %v2337 = vadd.f32 %v2306, %v2333
    %v2338 = vadd.f32 %v2307, %v2334
    %s2339 = scalar_lea.vmem %s6, 92
    %v2340 = vld [vmem:[%s2339] sm:$0xf]
    %2342 = vset.pattern.permute.xlu0 0
    %2343 = vperm.xlu0 %2342, %v2340
    %v2344 = vpop.permute.xlu0 %2343
    %v2346 = vlaneseq
    %v2347 = vshrl.u32 %v2346, 7
    %v2348 = vsub.s32 3, %v2347
    %v2349 = vrot.slane %v2242, %v2348
    %v2350 = vlaneseq
    %v2351 = vshrl.u32 %v2350, 7
    %v2352 = vsub.s32 3, %v2351
    %v2353 = vrot.slane %v2243, %v2352
    %v2354 = vlaneseq
    %v2355 = vshrl.u32 %v2354, 7
    %v2356 = vsub.s32 3, %v2355
    %v2357 = vrot.slane %v2244, %v2356
    %v2358 = vlaneseq
    %v2359 = vshrl.u32 %v2358, 7
    %v2360 = vsub.s32 3, %v2359
    %v2361 = vrot.slane %v2245, %v2360
    %v2362 = vmul.f32 %v2344, %v2349
    %v2363 = vmul.f32 %v2344, %v2353
    %v2364 = vmul.f32 %v2344, %v2357
    %v2365 = vmul.f32 %v2344, %v2361
    %v2366 = vadd.f32 %v2335, %v2362
    %v2367 = vadd.f32 %v2336, %v2363
    %v2368 = vadd.f32 %v2337, %v2364
    %v2369 = vadd.f32 %v2338, %v2365
    %2370 = vrot.lane.b32.xlu0 %v1543, 113
    %v2371 = vpop.permute.xlu0 %2370
    %2372 = vrot.lane.b32.xlu0 %v1544, 113
    %v2373 = vpop.permute.xlu0 %2372
    %2374 = vrot.lane.b32.xlu0 %v1545, 113
    %v2375 = vpop.permute.xlu0 %2374
    %2376 = vrot.lane.b32.xlu0 %v1546, 113
    %v2377 = vpop.permute.xlu0 %2376
    %v2378 = vsel %vm997, %v2375, %v2377
    %v2379 = vsel %vm997, %v2373, %v2375
    %v2380 = vsel %vm997, %v2371, %v2373
    %v2381 = vsel %vm997, %v2377, %v2371
    %v2382 = vmul.f32 %v2380, %v1008
    %v2383 = vmul.f32 %v2379, %v1012
    %v2384 = vmul.f32 %v2378, %v1016
    %v2385 = vmul.f32 %v2381, %v1020
    %s2386 = scalar_lea.vmem %s6, 96
    %v2387 = vld [vmem:[%s2386] sm:$0xf]
    %2389 = vset.pattern.permute.xlu0 0
    %2390 = vperm.xlu0 %2389, %v2387
    %v2391 = vpop.permute.xlu0 %2390
    %v2393 = vlaneseq
    %v2394 = vshrl.u32 %v2393, 7
    %v2395 = vsub.s32 0, %v2394
    %v2396 = vrot.slane %v2382, %v2395
    %v2397 = vlaneseq
    %v2398 = vshrl.u32 %v2397, 7
    %v2399 = vsub.s32 0, %v2398
    %v2400 = vrot.slane %v2383, %v2399
    %v2401 = vlaneseq
    %v2402 = vshrl.u32 %v2401, 7
    %v2403 = vsub.s32 0, %v2402
    %v2404 = vrot.slane %v2384, %v2403
    %v2405 = vlaneseq
    %v2406 = vshrl.u32 %v2405, 7
    %v2407 = vsub.s32 0, %v2406
    %v2408 = vrot.slane %v2385, %v2407
    %v2409 = vmul.f32 %v2391, %v2396
    %v2410 = vmul.f32 %v2391, %v2400
    %v2411 = vmul.f32 %v2391, %v2404
    %v2412 = vmul.f32 %v2391, %v2408
    %v2413 = vadd.f32 %v2366, %v2409
    %v2414 = vadd.f32 %v2367, %v2410
    %v2415 = vadd.f32 %v2368, %v2411
    %v2416 = vadd.f32 %v2369, %v2412
    %s2417 = scalar_lea.vmem %s6, 100
    %v2418 = vld [vmem:[%s2417] sm:$0xf]
    %2420 = vset.pattern.permute.xlu0 0
    %2421 = vperm.xlu0 %2420, %v2418
    %v2422 = vpop.permute.xlu0 %2421
    %v2424 = vlaneseq
    %v2425 = vshrl.u32 %v2424, 7
    %v2426 = vsub.s32 1, %v2425
    %v2427 = vrot.slane %v2382, %v2426
    %v2428 = vlaneseq
    %v2429 = vshrl.u32 %v2428, 7
    %v2430 = vsub.s32 1, %v2429
    %v2431 = vrot.slane %v2383, %v2430
    %v2432 = vlaneseq
    %v2433 = vshrl.u32 %v2432, 7
    %v2434 = vsub.s32 1, %v2433
    %v2435 = vrot.slane %v2384, %v2434
    %v2436 = vlaneseq
    %v2437 = vshrl.u32 %v2436, 7
    %v2438 = vsub.s32 1, %v2437
    %v2439 = vrot.slane %v2385, %v2438
    %v2440 = vmul.f32 %v2422, %v2427
    %v2441 = vmul.f32 %v2422, %v2431
    %v2442 = vmul.f32 %v2422, %v2435
    %v2443 = vmul.f32 %v2422, %v2439
    %v2444 = vadd.f32 %v2413, %v2440
    %v2445 = vadd.f32 %v2414, %v2441
    %v2446 = vadd.f32 %v2415, %v2442
    %v2447 = vadd.f32 %v2416, %v2443
    %s2448 = scalar_lea.vmem %s6, 104
    %v2449 = vld [vmem:[%s2448] sm:$0xf]
    %2451 = vset.pattern.permute.xlu0 0
    %2452 = vperm.xlu0 %2451, %v2449
    %v2453 = vpop.permute.xlu0 %2452
    %v2455 = vlaneseq
    %v2456 = vshrl.u32 %v2455, 7
    %v2457 = vsub.s32 2, %v2456
    %v2458 = vrot.slane %v2382, %v2457
    %v2459 = vlaneseq
    %v2460 = vshrl.u32 %v2459, 7
    %v2461 = vsub.s32 2, %v2460
    %v2462 = vrot.slane %v2383, %v2461
    %v2463 = vlaneseq
    %v2464 = vshrl.u32 %v2463, 7
    %v2465 = vsub.s32 2, %v2464
    %v2466 = vrot.slane %v2384, %v2465
    %v2467 = vlaneseq
    %v2468 = vshrl.u32 %v2467, 7
    %v2469 = vsub.s32 2, %v2468
    %v2470 = vrot.slane %v2385, %v2469
    %v2471 = vmul.f32 %v2453, %v2458
    %v2472 = vmul.f32 %v2453, %v2462
    %v2473 = vmul.f32 %v2453, %v2466
    %v2474 = vmul.f32 %v2453, %v2470
    %v2475 = vadd.f32 %v2444, %v2471
    %v2476 = vadd.f32 %v2445, %v2472
    %v2477 = vadd.f32 %v2446, %v2473
    %v2478 = vadd.f32 %v2447, %v2474
    %s2479 = scalar_lea.vmem %s6, 108
    %v2480 = vld [vmem:[%s2479] sm:$0xf]
    %2482 = vset.pattern.permute.xlu0 0
    %2483 = vperm.xlu0 %2482, %v2480
    %v2484 = vpop.permute.xlu0 %2483
    %v2486 = vlaneseq
    %v2487 = vshrl.u32 %v2486, 7
    %v2488 = vsub.s32 3, %v2487
    %v2489 = vrot.slane %v2382, %v2488
    %v2490 = vlaneseq
    %v2491 = vshrl.u32 %v2490, 7
    %v2492 = vsub.s32 3, %v2491
    %v2493 = vrot.slane %v2383, %v2492
    %v2494 = vlaneseq
    %v2495 = vshrl.u32 %v2494, 7
    %v2496 = vsub.s32 3, %v2495
    %v2497 = vrot.slane %v2384, %v2496
    %v2498 = vlaneseq
    %v2499 = vshrl.u32 %v2498, 7
    %v2500 = vsub.s32 3, %v2499
    %v2501 = vrot.slane %v2385, %v2500
    %v2502 = vmul.f32 %v2484, %v2489
    %v2503 = vmul.f32 %v2484, %v2493
    %v2504 = vmul.f32 %v2484, %v2497
    %v2505 = vmul.f32 %v2484, %v2501
    %v2506 = vadd.f32 %v2475, %v2502
    %v2507 = vadd.f32 %v2476, %v2503
    %v2508 = vadd.f32 %v2477, %v2504
    %v2509 = vadd.f32 %v2478, %v2505
    %2510 = vrot.lane.b32.xlu0 %v1543, 112
    %v2511 = vpop.permute.xlu0 %2510
    %2512 = vrot.lane.b32.xlu0 %v1544, 112
    %v2513 = vpop.permute.xlu0 %2512
    %2514 = vrot.lane.b32.xlu0 %v1545, 112
    %v2515 = vpop.permute.xlu0 %2514
    %2516 = vrot.lane.b32.xlu0 %v1546, 112
    %v2517 = vpop.permute.xlu0 %2516
    %v2518 = vsel %vm1161, %v2515, %v2517
    %v2519 = vsel %vm1161, %v2513, %v2515
    %v2520 = vsel %vm1161, %v2511, %v2513
    %v2521 = vsel %vm1161, %v2517, %v2511
    %v2522 = vmul.f32 %v2520, %v1172
    %v2523 = vmul.f32 %v2519, %v1176
    %v2524 = vmul.f32 %v2518, %v1180
    %v2525 = vmul.f32 %v2521, %v1184
    %s2526 = scalar_lea.vmem %s6, 112
    %v2527 = vld [vmem:[%s2526] sm:$0xf]
    %2529 = vset.pattern.permute.xlu0 0
    %2530 = vperm.xlu0 %2529, %v2527
    %v2531 = vpop.permute.xlu0 %2530
    %v2533 = vlaneseq
    %v2534 = vshrl.u32 %v2533, 7
    %v2535 = vsub.s32 0, %v2534
    %v2536 = vrot.slane %v2522, %v2535
    %v2537 = vlaneseq
    %v2538 = vshrl.u32 %v2537, 7
    %v2539 = vsub.s32 0, %v2538
    %v2540 = vrot.slane %v2523, %v2539
    %v2541 = vlaneseq
    %v2542 = vshrl.u32 %v2541, 7
    %v2543 = vsub.s32 0, %v2542
    %v2544 = vrot.slane %v2524, %v2543
    %v2545 = vlaneseq
    %v2546 = vshrl.u32 %v2545, 7
    %v2547 = vsub.s32 0, %v2546
    %v2548 = vrot.slane %v2525, %v2547
    %v2549 = vmul.f32 %v2531, %v2536
    %v2550 = vmul.f32 %v2531, %v2540
    %v2551 = vmul.f32 %v2531, %v2544
    %v2552 = vmul.f32 %v2531, %v2548
    %v2553 = vadd.f32 %v2506, %v2549
    %v2554 = vadd.f32 %v2507, %v2550
    %v2555 = vadd.f32 %v2508, %v2551
    %v2556 = vadd.f32 %v2509, %v2552
    %s2557 = scalar_lea.vmem %s6, 116
    %v2558 = vld [vmem:[%s2557] sm:$0xf]
    %2560 = vset.pattern.permute.xlu0 0
    %2561 = vperm.xlu0 %2560, %v2558
    %v2562 = vpop.permute.xlu0 %2561
    %v2564 = vlaneseq
    %v2565 = vshrl.u32 %v2564, 7
    %v2566 = vsub.s32 1, %v2565
    %v2567 = vrot.slane %v2522, %v2566
    %v2568 = vlaneseq
    %v2569 = vshrl.u32 %v2568, 7
    %v2570 = vsub.s32 1, %v2569
    %v2571 = vrot.slane %v2523, %v2570
    %v2572 = vlaneseq
    %v2573 = vshrl.u32 %v2572, 7
    %v2574 = vsub.s32 1, %v2573
    %v2575 = vrot.slane %v2524, %v2574
    %v2576 = vlaneseq
    %v2577 = vshrl.u32 %v2576, 7
    %v2578 = vsub.s32 1, %v2577
    %v2579 = vrot.slane %v2525, %v2578
    %v2580 = vmul.f32 %v2562, %v2567
    %v2581 = vmul.f32 %v2562, %v2571
    %v2582 = vmul.f32 %v2562, %v2575
    %v2583 = vmul.f32 %v2562, %v2579
    %v2584 = vadd.f32 %v2553, %v2580
    %v2585 = vadd.f32 %v2554, %v2581
    %v2586 = vadd.f32 %v2555, %v2582
    %v2587 = vadd.f32 %v2556, %v2583
    %s2588 = scalar_lea.vmem %s6, 120
    %v2589 = vld [vmem:[%s2588] sm:$0xf]
    %2591 = vset.pattern.permute.xlu0 0
    %2592 = vperm.xlu0 %2591, %v2589
    %v2593 = vpop.permute.xlu0 %2592
    %v2595 = vlaneseq
    %v2596 = vshrl.u32 %v2595, 7
    %v2597 = vsub.s32 2, %v2596
    %v2598 = vrot.slane %v2522, %v2597
    %v2599 = vlaneseq
    %v2600 = vshrl.u32 %v2599, 7
    %v2601 = vsub.s32 2, %v2600
    %v2602 = vrot.slane %v2523, %v2601
    %v2603 = vlaneseq
    %v2604 = vshrl.u32 %v2603, 7
    %v2605 = vsub.s32 2, %v2604
    %v2606 = vrot.slane %v2524, %v2605
    %v2607 = vlaneseq
    %v2608 = vshrl.u32 %v2607, 7
    %v2609 = vsub.s32 2, %v2608
    %v2610 = vrot.slane %v2525, %v2609
    %v2611 = vmul.f32 %v2593, %v2598
    %v2612 = vmul.f32 %v2593, %v2602
    %v2613 = vmul.f32 %v2593, %v2606
    %v2614 = vmul.f32 %v2593, %v2610
    %v2615 = vadd.f32 %v2584, %v2611
    %v2616 = vadd.f32 %v2585, %v2612
    %v2617 = vadd.f32 %v2586, %v2613
    %v2618 = vadd.f32 %v2587, %v2614
    %s2619 = scalar_lea.vmem %s6, 124
    %v2620 = vld [vmem:[%s2619] sm:$0xf]
    %2622 = vset.pattern.permute.xlu0 0
    %2623 = vperm.xlu0 %2622, %v2620
    %v2624 = vpop.permute.xlu0 %2623
    %v2626 = vlaneseq
    %v2627 = vshrl.u32 %v2626, 7
    %v2628 = vsub.s32 3, %v2627
    %v2629 = vrot.slane %v2522, %v2628
    %v2630 = vlaneseq
    %v2631 = vshrl.u32 %v2630, 7
    %v2632 = vsub.s32 3, %v2631
    %v2633 = vrot.slane %v2523, %v2632
    %v2634 = vlaneseq
    %v2635 = vshrl.u32 %v2634, 7
    %v2636 = vsub.s32 3, %v2635
    %v2637 = vrot.slane %v2524, %v2636
    %v2638 = vlaneseq
    %v2639 = vshrl.u32 %v2638, 7
    %v2640 = vsub.s32 3, %v2639
    %v2641 = vrot.slane %v2525, %v2640
    %v2642 = vmul.f32 %v2624, %v2629
    %v2643 = vmul.f32 %v2624, %v2633
    %v2644 = vmul.f32 %v2624, %v2637
    %v2645 = vmul.f32 %v2624, %v2641
    %v2646 = vadd.f32 %v2615, %v2642
    %v2647 = vadd.f32 %v2616, %v2643
    %v2648 = vadd.f32 %v2617, %v2644
    %v2649 = vadd.f32 %v2618, %v2645
    %2650 = vrot.lane.b32.xlu0 %v1543, 111
    %v2651 = vpop.permute.xlu0 %2650
    %2652 = vrot.lane.b32.xlu0 %v1544, 111
    %v2653 = vpop.permute.xlu0 %2652
    %2654 = vrot.lane.b32.xlu0 %v1545, 111
    %v2655 = vpop.permute.xlu0 %2654
    %2656 = vrot.lane.b32.xlu0 %v1546, 111
    %v2657 = vpop.permute.xlu0 %2656
    %v2658 = vsel %vm1325, %v2655, %v2657
    %v2659 = vsel %vm1325, %v2653, %v2655
    %v2660 = vsel %vm1325, %v2651, %v2653
    %v2661 = vsel %vm1325, %v2657, %v2651
    %v2662 = vmul.f32 %v2660, %v1336
    %v2663 = vmul.f32 %v2659, %v1340
    %v2664 = vmul.f32 %v2658, %v1344
    %v2665 = vmul.f32 %v2661, %v1348
    %s2666 = scalar_lea.vmem %s6, 128
    %v2667 = vld [vmem:[%s2666] sm:$0xf]
    %2669 = vset.pattern.permute.xlu0 0
    %2670 = vperm.xlu0 %2669, %v2667
    %v2671 = vpop.permute.xlu0 %2670
    %v2673 = vlaneseq
    %v2674 = vshrl.u32 %v2673, 7
    %v2675 = vsub.s32 0, %v2674
    %v2676 = vrot.slane %v2662, %v2675
    %v2677 = vlaneseq
    %v2678 = vshrl.u32 %v2677, 7
    %v2679 = vsub.s32 0, %v2678
    %v2680 = vrot.slane %v2663, %v2679
    %v2681 = vlaneseq
    %v2682 = vshrl.u32 %v2681, 7
    %v2683 = vsub.s32 0, %v2682
    %v2684 = vrot.slane %v2664, %v2683
    %v2685 = vlaneseq
    %v2686 = vshrl.u32 %v2685, 7
    %v2687 = vsub.s32 0, %v2686
    %v2688 = vrot.slane %v2665, %v2687
    %v2689 = vmul.f32 %v2671, %v2676
    %v2690 = vmul.f32 %v2671, %v2680
    %v2691 = vmul.f32 %v2671, %v2684
    %v2692 = vmul.f32 %v2671, %v2688
    %v2693 = vadd.f32 %v2646, %v2689
    %v2694 = vadd.f32 %v2647, %v2690
    %v2695 = vadd.f32 %v2648, %v2691
    %v2696 = vadd.f32 %v2649, %v2692
    %s2697 = scalar_lea.vmem %s6, 132
    %v2698 = vld [vmem:[%s2697] sm:$0xf]
    %2700 = vset.pattern.permute.xlu0 0
    %2701 = vperm.xlu0 %2700, %v2698
    %v2702 = vpop.permute.xlu0 %2701
    %v2704 = vlaneseq
    %v2705 = vshrl.u32 %v2704, 7
    %v2706 = vsub.s32 1, %v2705
    %v2707 = vrot.slane %v2662, %v2706
    %v2708 = vlaneseq
    %v2709 = vshrl.u32 %v2708, 7
    %v2710 = vsub.s32 1, %v2709
    %v2711 = vrot.slane %v2663, %v2710
    %v2712 = vlaneseq
    %v2713 = vshrl.u32 %v2712, 7
    %v2714 = vsub.s32 1, %v2713
    %v2715 = vrot.slane %v2664, %v2714
    %v2716 = vlaneseq
    %v2717 = vshrl.u32 %v2716, 7
    %v2718 = vsub.s32 1, %v2717
    %v2719 = vrot.slane %v2665, %v2718
    %v2720 = vmul.f32 %v2702, %v2707
    %v2721 = vmul.f32 %v2702, %v2711
    %v2722 = vmul.f32 %v2702, %v2715
    %v2723 = vmul.f32 %v2702, %v2719
    %v2724 = vadd.f32 %v2693, %v2720
    %v2725 = vadd.f32 %v2694, %v2721
    %v2726 = vadd.f32 %v2695, %v2722
    %v2727 = vadd.f32 %v2696, %v2723
    %s2728 = scalar_lea.vmem %s6, 136
    %v2729 = vld [vmem:[%s2728] sm:$0xf]
    %2731 = vset.pattern.permute.xlu0 0
    %2732 = vperm.xlu0 %2731, %v2729
    %v2733 = vpop.permute.xlu0 %2732
    %v2735 = vlaneseq
    %v2736 = vshrl.u32 %v2735, 7
    %v2737 = vsub.s32 2, %v2736
    %v2738 = vrot.slane %v2662, %v2737
    %v2739 = vlaneseq
    %v2740 = vshrl.u32 %v2739, 7
    %v2741 = vsub.s32 2, %v2740
    %v2742 = vrot.slane %v2663, %v2741
    %v2743 = vlaneseq
    %v2744 = vshrl.u32 %v2743, 7
    %v2745 = vsub.s32 2, %v2744
    %v2746 = vrot.slane %v2664, %v2745
    %v2747 = vlaneseq
    %v2748 = vshrl.u32 %v2747, 7
    %v2749 = vsub.s32 2, %v2748
    %v2750 = vrot.slane %v2665, %v2749
    %v2751 = vmul.f32 %v2733, %v2738
    %v2752 = vmul.f32 %v2733, %v2742
    %v2753 = vmul.f32 %v2733, %v2746
    %v2754 = vmul.f32 %v2733, %v2750
    %v2755 = vadd.f32 %v2724, %v2751
    %v2756 = vadd.f32 %v2725, %v2752
    %v2757 = vadd.f32 %v2726, %v2753
    %v2758 = vadd.f32 %v2727, %v2754
    %s2759 = scalar_lea.vmem %s6, 140
    %v2760 = vld [vmem:[%s2759] sm:$0xf]
    %2762 = vset.pattern.permute.xlu0 0
    %2763 = vperm.xlu0 %2762, %v2760
    %v2764 = vpop.permute.xlu0 %2763
    %v2766 = vlaneseq
    %v2767 = vshrl.u32 %v2766, 7
    %v2768 = vsub.s32 3, %v2767
    %v2769 = vrot.slane %v2662, %v2768
    %v2770 = vlaneseq
    %v2771 = vshrl.u32 %v2770, 7
    %v2772 = vsub.s32 3, %v2771
    %v2773 = vrot.slane %v2663, %v2772
    %v2774 = vlaneseq
    %v2775 = vshrl.u32 %v2774, 7
    %v2776 = vsub.s32 3, %v2775
    %v2777 = vrot.slane %v2664, %v2776
    %v2778 = vlaneseq
    %v2779 = vshrl.u32 %v2778, 7
    %v2780 = vsub.s32 3, %v2779
    %v2781 = vrot.slane %v2665, %v2780
    %v2782 = vmul.f32 %v2764, %v2769
    %v2783 = vmul.f32 %v2764, %v2773
    %v2784 = vmul.f32 %v2764, %v2777
    %v2785 = vmul.f32 %v2764, %v2781
    %v2786 = vadd.f32 %v2755, %v2782
    %v2787 = vadd.f32 %v2756, %v2783
    %v2788 = vadd.f32 %v2757, %v2784
    %v2789 = vadd.f32 %v2758, %v2785
    %v2790 = vld [vmem:[%s7] sm:$0xf]
    %2792 = vset.pattern.permute.xlu0 0
    %2793 = vperm.xlu0 %2792, %v2790
    %v2794 = vpop.permute.xlu0 %2793
    %v2796 = vadd.f32 %v2786, %v2794
    %v2797 = vadd.f32 %v2787, %v2794
    %v2798 = vadd.f32 %v2788, %v2794
    %v2799 = vadd.f32 %v2789, %v2794
    %v2800 = vsel %vm1491, %v2796, 0.0
    %v2801 = vsel %vm1491, %v2797, 0.0
    %v2802 = vadd.f32 %v2800, %v2801
    %v2803 = vsel %vm1491, %v2798, 0.0
    %v2804 = vadd.f32 %v2802, %v2803
    %v2805 = vsel %vm1491, %v2799, 0.0
    %v2806 = vadd.f32 %v2804, %v2805
    %2807 = vadd.xlane.f32.xlu0 %v2806
    %v2808 = vpop.xlane.xlu0 %2807
    %v2809 = vmul.f32 %v2808, 0.001953125
    %v2810 = vsub.f32 %v2796, %v2809
    %v2811 = vsub.f32 %v2797, %v2809
    %v2812 = vsub.f32 %v2798, %v2809
    %v2813 = vsub.f32 %v2799, %v2809
    %v2814 = vmul.f32 %v2810, %v2810
    %v2815 = vmul.f32 %v2811, %v2811
    %v2816 = vmul.f32 %v2812, %v2812
    %v2817 = vmul.f32 %v2813, %v2813
    %v2818 = vsel %vm1491, %v2814, 0.0
    %v2819 = vsel %vm1491, %v2815, 0.0
    %v2820 = vadd.f32 %v2818, %v2819
    %v2821 = vsel %vm1491, %v2816, 0.0
    %v2822 = vadd.f32 %v2820, %v2821
    %v2823 = vsel %vm1491, %v2817, 0.0
    %v2824 = vadd.f32 %v2822, %v2823
    %2825 = vadd.xlane.f32.xlu0 %v2824
    %v2826 = vpop.xlane.xlu0 %2825
    %v2827 = vmul.f32 %v2826, 0.001953125
    %v2828 = vld [vmem:[%s8] sm:$0xf]
    %v2829 = vadd.f32 %v2827, 1e-05
    %v2830 = vrsqrt.pop %v2829
    %v2831 = vmul.f32 %v2828, %v2830
    %2833 = vset.pattern.permute.xlu0 0
    %2834 = vperm.xlu0 %2833, %v2831
    %v2835 = vpop.permute.xlu0 %2834
    %v2837 = vmul.f32 %v2810, %v2835
    %v2838 = vmul.f32 %v2811, %v2835
    %v2839 = vmul.f32 %v2812, %v2835
    %v2840 = vmul.f32 %v2813, %v2835
    %v2841 = vld [vmem:[%s9] sm:$0xf]
    %2843 = vset.pattern.permute.xlu0 0
    %2844 = vperm.xlu0 %2843, %v2841
    %v2845 = vpop.permute.xlu0 %2844
    %v2847 = vadd.f32 %v2837, %v2845
    %v2848 = vadd.f32 %v2838, %v2845
    %v2849 = vadd.f32 %v2839, %v2845
    %v2850 = vadd.f32 %v2840, %v2845
    %v2851 = vadd.f32 %v2847, %v36
    %v2852 = vadd.f32 %v2848, %v40
    %v2853 = vadd.f32 %v2849, %v38
    %v2854 = vadd.f32 %v2850, %v43
    %v2855 = vmax.f32 %v2851, 0.0
    %v2856 = vmax.f32 %v2852, 0.0
    %v2857 = vmax.f32 %v2853, 0.0
    %v2858 = vmax.f32 %v2854, 0.0
    %v2861 = vcombine.low %v2855, %v2856
    %2863 = vst [vmem:[#allocation2] sm:$0xff] %v2861
    %v2866 = vcombine.low %v2857, %v2858
    %s2868 = scalar_lea.vmem [#allocation2], 8
    %2869 = vst [vmem:[%s2868] sm:$0xff] %v2866
    // Predicated region
    $region42: #{tpu_custom_call.1} parent=1 // pred_check
      _
    $region43: #{tpu_custom_call.1} parent=1 // pred_check_branch
      %2871 = sbr.rel (0) target = $region45
    $region44: #{tpu_custom_call.1} parent=1 // pred_region
      %s2873 = ssub.s32 256, 256
      %2874 = vsyncadd [#allocation3], %s2873
      %s2875 = sshll.u32 [#allocation2], 4
      %s2876 = int_to_ptr.vmem [resolvable:$true] %s2875
      %2881 = dma.vmem_to_hbm [thread:$0]  %s2876, 256, %s10, [#allocation3], 128, 128, 8
    $region45: #{tpu_custom_call.1} parent=1 // pred_fallthru
      _
    // Predicated region
    $region46: #{tpu_custom_call.1} parent=1 // pred_check
      _
    $region47: #{tpu_custom_call.1} parent=1 // pred_check_branch
      %2883 = sbr.rel (0) target = $region49
    $region48: #{tpu_custom_call.1} parent=1 // pred_region
      %2884 = dma.done [#allocation3], 256
    $region49: #{tpu_custom_call.1} parent=1 // pred_fallthru
      _
    %2885 = vsyncpa [#allocation3], 1

</llo_original>
